<compile_context>
chip_gen: v7x
topology: tpu7x:2x2x1
jax: 0.10.0
libtpu: 0.0.40
codegen_flags: <defaults>
</compile_context>

<pallas_src>
import functools

import jax
import jax.numpy as jnp
from jax.experimental import pallas as pl
from jax.experimental.pallas import tpu as pltpu


# ------------------------------ Pallas kernel --------------------------------

def _lenet_kernel(xq_ref, b1_ref, bias1_ref, b2_ref, bias2_ref, g_ref,
                  fc1b_ref, fc2w_ref, fc2b_ref, fc3w_ref, fc3b_ref, out_ref):
    """Fully fused LeNet forward for one block of B images (B along the sublane axis)."""
    f32 = jnp.float32
    bf16 = jnp.bfloat16
    B = out_ref.shape[0]                       # images per grid step

    def wpool_bias_relu(m, bias):
        # 2x2 max-pool along W: even conv columns live in lanes [0,128), odd ones in
        # [128,256) (folded into the Toeplitz weights), so the column max is a
        # vreg-aligned slice max -- no lane shifts, no scratch round trip.
        return jnp.maximum(jnp.maximum(m[:, :128], m[:, 128:]) + bias, 0.0)

    # ---- conv1 (5x5, 1->6) + 2x2 max pool (fused) ---------------------------
    # xq_ref[0, m, t*B + b, :] holds row 4*t + m of image b.  Conv row r of image b:
    #   Y1[r] = sum_kh X[r+kh] @ B1[kh]     (B1[kh]: (32,256) block-Toeplitz; even
    #   output columns in lanes [0,128), odd in [128,256)).
    # H-pooling is built from the row phases d, d+1 (even pooled rows) / d+2, d+3
    # (odd), so only contiguous, B-aligned sublane slices of xq are ever read.
    def conv1_pooled_rows(d_pair):
        m = None
        for d in d_pair:
            acc = None
            for kh in range(5):
                o = d + kh                                               # 0..7
                xs = xq_ref[0, o % 4, (o // 4) * B:(o // 4 + 7) * B, :]  # (7B, 32) bf16
                y = jnp.dot(xs, b1_ref[kh], preferred_element_type=f32)  # (7B, 256)
                acc = y if acc is None else acc + y
            m = acc if m is None else jnp.maximum(m, acc)
        return m

    bias1 = bias1_ref[...]                                               # (1, 128)
    a1_e = wpool_bias_relu(conv1_pooled_rows((0, 1)), bias1).astype(bf16)  # rows 0,2,..,12
    a1_o = wpool_bias_relu(conv1_pooled_rows((2, 3)), bias1).astype(bf16)  # rows 1,3,..,13

    # ---- conv2 (5x5, 6->16) + 2x2 max pool (fused) --------------------------
    #   Y2[r] = sum_kh A1[r+kh] @ B2[kh]    (B2[kh]: (128,256) block-Toeplitz whose
    #   zero rows also neutralize the pad lanes of a1)
    def conv2_pooled_rows(d):
        acc = None
        for kh in range(5):
            o = d + kh                                                   # 0..5
            src = a1_e if o % 2 == 0 else a1_o
            xs = src[(o // 2) * B:(o // 2 + 5) * B, :]                   # (5B, 128)
            y = jnp.dot(xs, b2_ref[kh], preferred_element_type=f32)      # (5B, 256)
            acc = y if acc is None else acc + y
        return acc

    m2 = jnp.maximum(conv2_pooled_rows(0), conv2_pooled_rows(1))         # (5B, 256)
    a2 = wpool_bias_relu(m2, bias2_ref[...]).astype(bf16)                # (5B, 128)

    # ---- fc1 + ReLU  (torch.flatten NCHW order folded into g_ref) ------------
    h = fc1b_ref[...]                                                    # (1, 128)
    for i in range(5):
        h = h + jnp.dot(a2[i * B:(i + 1) * B, :], g_ref[i],
                        preferred_element_type=f32)                      # (B, 128)
    h = jnp.maximum(h, 0.0)

    # ---- fc2 + dropout + ReLU -------------------------------------------------
    # TODO(synk): nn.Dropout(0.5) implemented as inference-mode identity (no RNG masking).
    h = jnp.maximum(jnp.dot(h.astype(bf16), fc2w_ref[...],
                            preferred_element_type=f32) + fc2b_ref[...], 0.0)

    # ---- fc3 (padded to 128 output lanes -> dense, unmasked store) ------------
    out_ref[...] = jnp.dot(h.astype(bf16), fc3w_ref[...],
                           preferred_element_type=f32) + fc3b_ref[...]


# ---------------------- host-side constant weight transforms ------------------

def _conv1_toeplitz(w1):
    """w1 (5,5,1,6) HWIO -> B1 (5,32,256).

    Output lane 6*p + c (p<14, c<6) of half h (offset 128*h) holds conv column
    ow = 2*p + h, channel c:  B1[kh, wi, .] = w1[kh, wi - ow, 0, c] for 0 <= wi-ow < 5.
    Pad lanes (>= 84 per half) are zero.
    """
    w = w1[:, :, 0, :]                                    # (5, 5, 6)  [kh, kw, c]
    lane = jnp.arange(128)
    p, c = lane // 6, lane % 6
    wi = jnp.arange(32)[:, None]                          # (32, 1)

    def half(parity):
        ow = 2 * p + parity                               # (128,)
        kw = wi - ow[None, :]                             # (32, 128)
        valid = (p < 14)[None, :] & (kw >= 0) & (kw < 5)
        b = w[:, jnp.clip(kw, 0, 4), c]                   # (5, 32, 128)
        return jnp.where(valid[None], b, 0.0)

    return jnp.concatenate([half(0), half(1)], axis=-1)   # (5, 32, 256)


def _conv2_toeplitz(w2):
    """w2 (5,5,6,16) HWIO -> B2 (5,128,256).

    Input row 6*pin + ci is pooled-conv1 column pin (<14), channel ci (<6); rows >= 84
    are zero (they absorb the pad lanes of a1).  Output lane 16*q + co of half h holds
    conv2 column j = 2*q + h, channel co; lanes >= 80 per half are zero.
    """
    rin = jnp.arange(128)
    pin, ci = rin // 6, rin % 6
    lane = jnp.arange(128)
    q, co = lane // 16, lane % 16

    def half(parity):
        j = 2 * q + parity                                # (128,)
        kw = pin[:, None] - j[None, :]                    # (128, 128)
        valid = (pin < 14)[:, None] & (q < 5)[None, :] & (kw >= 0) & (kw < 5)
        b = w2[:, jnp.clip(kw, 0, 4), ci[:, None], co[None, :]]   # (5, 128, 128)
        return jnp.where(valid[None], b, 0.0)

    return jnp.concatenate([half(0), half(1)], axis=-1)   # (5, 128, 256)


def _fc1_gather(fc1_w):
    """fc1_w (400,120) -> G (5,128,128): G[i, 16*q+co, :120] = fc1_w[co*25 + i*5 + q, :]
    (torch.flatten NCHW order: channel co, row i, column q); pad lanes / columns are zero."""
    lane = jnp.arange(128)
    q, co = lane // 16, lane % 16
    i = jnp.arange(5)[:, None]
    src = co[None, :] * 25 + i * 5 + jnp.clip(q, 0, 4)[None, :]    # (5, 128)
    g = jnp.where((q < 5)[None, :, None], fc1_w[src, :], 0.0)      # (5, 128, 120)
    return jnp.pad(g, ((0, 0), (0, 0), (0, 8)))                    # (5, 128, 128)


def _lane_bias(bias, group, limit):
    """(1,128) lane bias: lane l -> bias[l % group] when (l // group) < limit, else 0."""
    lane = jnp.arange(128)
    return jnp.where(lane // group < limit, bias[lane % group], 0.0)[None, :]


def _round_up(x, m):
    return (x + m - 1) // m * m


# ----------------------------------- forward ----------------------------------

def init_params(key):
    """Deterministic synthetic parameters matching the nn.Module shapes."""
    ks = jax.random.split(key, 10)

    def u(k, shape, fan_in):
        bound = 1.0 / jnp.sqrt(jnp.float32(fan_in))
        return jax.random.uniform(k, shape, jnp.float32, -bound, bound)

    return {
        "w1": u(ks[0], (5, 5, 1, 6), 25),        # nn.Conv2d(1, 6, 5, 1)  (HWIO)
        "b1": u(ks[1], (6,), 25),
        "w2": u(ks[2], (5, 5, 6, 16), 150),      # nn.Conv2d(6, 16, 5, 1) (HWIO)
        "b2": u(ks[3], (16,), 150),
        "fc1_w": u(ks[4], (400, 120), 400),      # nn.Linear(400, 120) (in,out)
        "fc1_b": u(ks[5], (120,), 400),
        "fc2_w": u(ks[6], (120, 84), 120),       # nn.Linear(120, 84)
        "fc2_b": u(ks[7], (84,), 120),
        "fc3_w": u(ks[8], (84, 10), 84),         # nn.Linear(84, 10)
        "fc3_b": u(ks[9], (10,), 84),
    }


def lenet_forward(params, x_nchw, *, batch_block=32):
    """LeNet forward for x_nchw (N, 1, 32, 32) -> logits (N, 10)."""
    f32, bf16 = jnp.float32, jnp.bfloat16
    n = x_nchw.shape[0]
    assert batch_block % 8 == 0
    # Images per grid step.  Tune per generation: ~16-32 on v5e (128-row MXU), 32-64 on
    # v6e/v7x (256-row MXU); keep >= 2 grid steps on v7x so ("parallel",) can use both TCs.
    B = min(batch_block, _round_up(n, 8))
    n_pad = _round_up(n, B)
    nsteps = n_pad // B

    # constant (tiny, ~0.6 MB) weight rearrangements; VMEM-resident across all grid steps
    b1m = _conv1_toeplitz(params["w1"]).astype(bf16)                 # (5, 32, 256)
    bias1 = _lane_bias(params["b1"], 6, 14)                          # (1, 128)
    b2m = _conv2_toeplitz(params["w2"]).astype(bf16)                 # (5, 128, 256)
    bias2 = _lane_bias(params["b2"], 16, 5)                          # (1, 128)
    g = _fc1_gather(params["fc1_w"]).astype(bf16)                    # (5, 128, 128)
    fc1b = jnp.pad(params["fc1_b"], (0, 8)).reshape(1, 128)
    fc2w = jnp.zeros((128, 128), f32).at[:120, :84].set(params["fc2_w"]).astype(bf16)
    fc2b = jnp.pad(params["fc2_b"], (0, 44)).reshape(1, 128)
    fc3w = jnp.zeros((128, 128), f32).at[:84, :10].set(params["fc3_w"]).astype(bf16)
    fc3b = jnp.pad(params["fc3_b"], (0, 118)).reshape(1, 128)

    # input packing: pad batch to a multiple of B, split rows mod 4 (so the fused
    # conv + H-pool only ever reads contiguous slices) and interleave the B images of a
    # step along the sublane axis:  xq[g, m, t*B + b, :] = image g*B+b, row 4*t + m.
    x = x_nchw[:, 0].astype(f32)
    x = jnp.pad(x, ((0, n_pad - n), (0, 0), (0, 0)))
    xq = x.reshape(nsteps, B, 8, 4, 32).transpose(0, 3, 2, 1, 4)
    xq = xq.reshape(nsteps, 4, 8 * B, 32).astype(bf16)

    out = pl.pallas_call(
        _lenet_kernel,
        out_shape=jax.ShapeDtypeStruct((n_pad, 128), f32),
        grid=(nsteps,),
        in_specs=[
            pl.BlockSpec((1, 4, 8 * B, 32), lambda i: (i, 0, 0, 0)),  # images (B per step)
            pl.BlockSpec((5, 32, 256), lambda i: (0, 0, 0)),          # conv1 Toeplitz
            pl.BlockSpec((1, 128), lambda i: (0, 0)),                 # conv1 lane bias
            pl.BlockSpec((5, 128, 256), lambda i: (0, 0, 0)),         # conv2 Toeplitz
            pl.BlockSpec((1, 128), lambda i: (0, 0)),                 # conv2 lane bias
            pl.BlockSpec((5, 128, 128), lambda i: (0, 0, 0)),         # fc1 gather matrix
            pl.BlockSpec((1, 128), lambda i: (0, 0)),                 # fc1 bias (padded)
            pl.BlockSpec((128, 128), lambda i: (0, 0)),               # fc2 weight (padded)
            pl.BlockSpec((1, 128), lambda i: (0, 0)),                 # fc2 bias (padded)
            pl.BlockSpec((128, 128), lambda i: (0, 0)),               # fc3 weight (padded)
            pl.BlockSpec((1, 128), lambda i: (0, 0)),                 # fc3 bias (padded)
        ],
        out_specs=pl.BlockSpec((B, 128), lambda i: (i, 0)),
        compiler_params=pltpu.CompilerParams(
            dimension_semantics=("parallel",)),
    )(xq, b1m, bias1, b2m, bias2, g, fc1b, fc2w, fc2b, fc3w, fc3b)

    return out[:n, :10]                                              # (N, 10)


# ------------------------- pure-JAX reference (for checking) -------------------

def lenet_reference(params, x_nchw):
    """XLA reference with the PyTorch module's forward semantics (dropout in eval mode)."""
    dn = ("NCHW", "HWIO", "NCHW")
    y = jax.lax.conv_general_dilated(x_nchw.astype(jnp.float32), params["w1"],
                                     (1, 1), "VALID", dimension_numbers=dn)
    y = jax.nn.relu(y + params["b1"][None, :, None, None])
    y = jax.lax.reduce_window(y, -jnp.inf, jax.lax.max, (1, 1, 2, 2), (1, 1, 2, 2), "VALID")
    y = jax.nn.relu(y)
    y = jax.lax.conv_general_dilated(y, params["w2"], (1, 1), "VALID", dimension_numbers=dn)
    y = jax.nn.relu(y + params["b2"][None, :, None, None])
    y = jax.lax.reduce_window(y, -jnp.inf, jax.lax.max, (1, 1, 2, 2), (1, 1, 2, 2), "VALID")
    y = jax.nn.relu(y).reshape(x_nchw.shape[0], -1)            # torch.flatten NCHW order
    y = jax.nn.relu(y @ params["fc1_w"] + params["fc1_b"])
    y = jax.nn.relu(y @ params["fc2_w"] + params["fc2_b"])     # dropout = identity (eval)
    return y @ params["fc3_w"] + params["fc3_b"]


if __name__ == "__main__":
    key = jax.random.PRNGKey(0)
    pkey, xkey = jax.random.split(key)
    params = init_params(pkey)
    # fc1 = Linear(400, 120) implies a 32x32 single-channel input.
    x = jax.random.normal(xkey, (12, 1, 32, 32), jnp.float32)
    # batch_block=8 keeps the test small while still exercising >1 grid step and the
    # batch-padding path (12 images -> 16, 2 grid steps of 8 images each).
    fwd = jax.jit(functools.partial(lenet_forward, batch_block=8))
    out = jax.block_until_ready(fwd(params, x))
    assert out.shape == (12, 10) and out.dtype == jnp.float32
    ref = jax.block_until_ready(jax.jit(lenet_reference)(params, x))
    err = float(jnp.max(jnp.abs(out - ref)))
    assert err < 3e-2, f"max abs err vs reference: {err}"
    print("KERNEL_OK")
</pallas_src>

<mosaic_0001>
module attributes {stable_mosaic.version = 11 : i64} {
  func.func @_lenet_kernel(%arg0: i32, %arg1: memref<1x4x64x32xbf16, #tpu.memory_space<vmem>>, %arg2: memref<5x32x256xbf16, #tpu.memory_space<vmem>>, %arg3: memref<1x128xf32, #tpu.memory_space<vmem>>, %arg4: memref<5x128x256xbf16, #tpu.memory_space<vmem>>, %arg5: memref<1x128xf32, #tpu.memory_space<vmem>>, %arg6: memref<5x128x128xbf16, #tpu.memory_space<vmem>>, %arg7: memref<1x128xf32, #tpu.memory_space<vmem>>, %arg8: memref<128x128xbf16, #tpu.memory_space<vmem>>, %arg9: memref<1x128xf32, #tpu.memory_space<vmem>>, %arg10: memref<128x128xbf16, #tpu.memory_space<vmem>>, %arg11: memref<1x128xf32, #tpu.memory_space<vmem>>, %arg12: memref<8x128xf32, #tpu.memory_space<vmem>>) attributes {dimension_semantics = [#tpu.dimension_semantics<parallel>], iteration_bounds = array<i64: 2>, scalar_prefetch = 0 : i64, scratch_operands = 0 : i64, tpu.core_type = #tpu.core_type<tc>, window_params = [{transform_indices = @transform_0, window_bounds = array<i64: 1, 4, 64, 32>}, {pipeline_mode = #tpu.pipeline_mode<synchronous>, transform_indices = @transform_1, window_bounds = array<i64: 5, 32, 256>}, {pipeline_mode = #tpu.pipeline_mode<synchronous>, transform_indices = @transform_2, window_bounds = array<i64: 1, 128>}, {pipeline_mode = #tpu.pipeline_mode<synchronous>, transform_indices = @transform_3, window_bounds = array<i64: 5, 128, 256>}, {pipeline_mode = #tpu.pipeline_mode<synchronous>, transform_indices = @transform_4, window_bounds = array<i64: 1, 128>}, {pipeline_mode = #tpu.pipeline_mode<synchronous>, transform_indices = @transform_5, window_bounds = array<i64: 5, 128, 128>}, {pipeline_mode = #tpu.pipeline_mode<synchronous>, transform_indices = @transform_6, window_bounds = array<i64: 1, 128>}, {pipeline_mode = #tpu.pipeline_mode<synchronous>, transform_indices = @transform_7, window_bounds = array<i64: 128, 128>}, {pipeline_mode = #tpu.pipeline_mode<synchronous>, transform_indices = @transform_8, window_bounds = array<i64: 1, 128>}, {pipeline_mode = #tpu.pipeline_mode<synchronous>, transform_indices = @transform_9, window_bounds = array<i64: 128, 128>}, {pipeline_mode = #tpu.pipeline_mode<synchronous>, transform_indices = @transform_10, window_bounds = array<i64: 1, 128>}, {transform_indices = @transform_11, window_bounds = array<i64: 8, 128>}]} {
    %c0 = arith.constant 0 : index
    %c0_0 = arith.constant 0 : index
    %0 = vector.load %arg3[%c0, %c0_0] : memref<1x128xf32, #tpu.memory_space<vmem>>, vector<1x128xf32>
    %c0_1 = arith.constant 0 : index
    %c0_2 = arith.constant 0 : index
    %c0_3 = arith.constant 0 : index
    %c0_4 = arith.constant 0 : index
    %1 = vector.load %arg1[%c0_1, %c0_2, %c0_3, %c0_4] : memref<1x4x64x32xbf16, #tpu.memory_space<vmem>>, vector<1x1x56x32xbf16>
    %2 = vector.shape_cast %1 : vector<1x1x56x32xbf16> to vector<56x32xbf16>
    %c0_5 = arith.constant 0 : index
    %c0_6 = arith.constant 0 : index
    %c0_7 = arith.constant 0 : index
    %3 = vector.load %arg2[%c0_5, %c0_6, %c0_7] : memref<5x32x256xbf16, #tpu.memory_space<vmem>>, vector<1x32x256xbf16>
    %4 = vector.shape_cast %3 : vector<1x32x256xbf16> to vector<32x256xbf16>
    %cst = arith.constant dense<0.000000e+00> : vector<56x256xf32>
    %5 = tpu.matmul %2, %4, %cst {dimension_numbers = #tpu.dot_dimension_numbers<[1], [0], [0], [1], [0, 0, 1, 1], [], []>} : vector<56x32xbf16>, vector<32x256xbf16>, vector<56x256xf32> -> vector<56x256xf32>
    %c0_8 = arith.constant 0 : index
    %c1 = arith.constant 1 : index
    %c0_9 = arith.constant 0 : index
    %c0_10 = arith.constant 0 : index
    %6 = vector.load %arg1[%c0_8, %c1, %c0_9, %c0_10] : memref<1x4x64x32xbf16, #tpu.memory_space<vmem>>, vector<1x1x56x32xbf16>
    %7 = vector.shape_cast %6 : vector<1x1x56x32xbf16> to vector<56x32xbf16>
    %c1_11 = arith.constant 1 : index
    %c0_12 = arith.constant 0 : index
    %c0_13 = arith.constant 0 : index
    %8 = vector.load %arg2[%c1_11, %c0_12, %c0_13] : memref<5x32x256xbf16, #tpu.memory_space<vmem>>, vector<1x32x256xbf16>
    %9 = vector.shape_cast %8 : vector<1x32x256xbf16> to vector<32x256xbf16>
    %cst_14 = arith.constant dense<0.000000e+00> : vector<56x256xf32>
    %10 = tpu.matmul %7, %9, %cst_14 {dimension_numbers = #tpu.dot_dimension_numbers<[1], [0], [0], [1], [0, 0, 1, 1], [], []>} : vector<56x32xbf16>, vector<32x256xbf16>, vector<56x256xf32> -> vector<56x256xf32>
    %11 = arith.addf %5, %10 : vector<56x256xf32>
    %c0_15 = arith.constant 0 : index
    %c2 = arith.constant 2 : index
    %c0_16 = arith.constant 0 : index
    %c0_17 = arith.constant 0 : index
    %12 = vector.load %arg1[%c0_15, %c2, %c0_16, %c0_17] : memref<1x4x64x32xbf16, #tpu.memory_space<vmem>>, vector<1x1x56x32xbf16>
    %13 = vector.shape_cast %12 : vector<1x1x56x32xbf16> to vector<56x32xbf16>
    %c2_18 = arith.constant 2 : index
    %c0_19 = arith.constant 0 : index
    %c0_20 = arith.constant 0 : index
    %14 = vector.load %arg2[%c2_18, %c0_19, %c0_20] : memref<5x32x256xbf16, #tpu.memory_space<vmem>>, vector<1x32x256xbf16>
    %15 = vector.shape_cast %14 : vector<1x32x256xbf16> to vector<32x256xbf16>
    %cst_21 = arith.constant dense<0.000000e+00> : vector<56x256xf32>
    %16 = tpu.matmul %13, %15, %cst_21 {dimension_numbers = #tpu.dot_dimension_numbers<[1], [0], [0], [1], [0, 0, 1, 1], [], []>} : vector<56x32xbf16>, vector<32x256xbf16>, vector<56x256xf32> -> vector<56x256xf32>
    %17 = arith.addf %11, %16 : vector<56x256xf32>
    %c0_22 = arith.constant 0 : index
    %c3 = arith.constant 3 : index
    %c0_23 = arith.constant 0 : index
    %c0_24 = arith.constant 0 : index
    %18 = vector.load %arg1[%c0_22, %c3, %c0_23, %c0_24] : memref<1x4x64x32xbf16, #tpu.memory_space<vmem>>, vector<1x1x56x32xbf16>
    %19 = vector.shape_cast %18 : vector<1x1x56x32xbf16> to vector<56x32xbf16>
    %c3_25 = arith.constant 3 : index
    %c0_26 = arith.constant 0 : index
    %c0_27 = arith.constant 0 : index
    %20 = vector.load %arg2[%c3_25, %c0_26, %c0_27] : memref<5x32x256xbf16, #tpu.memory_space<vmem>>, vector<1x32x256xbf16>
    %21 = vector.shape_cast %20 : vector<1x32x256xbf16> to vector<32x256xbf16>
    %cst_28 = arith.constant dense<0.000000e+00> : vector<56x256xf32>
    %22 = tpu.matmul %19, %21, %cst_28 {dimension_numbers = #tpu.dot_dimension_numbers<[1], [0], [0], [1], [0, 0, 1, 1], [], []>} : vector<56x32xbf16>, vector<32x256xbf16>, vector<56x256xf32> -> vector<56x256xf32>
    %23 = arith.addf %17, %22 : vector<56x256xf32>
    %c0_29 = arith.constant 0 : index
    %c0_30 = arith.constant 0 : index
    %c8 = arith.constant 8 : index
    %c0_31 = arith.constant 0 : index
    %24 = vector.load %arg1[%c0_29, %c0_30, %c8, %c0_31] : memref<1x4x64x32xbf16, #tpu.memory_space<vmem>>, vector<1x1x56x32xbf16>
    %25 = vector.shape_cast %24 : vector<1x1x56x32xbf16> to vector<56x32xbf16>
    %c4 = arith.constant 4 : index
    %c0_32 = arith.constant 0 : index
    %c0_33 = arith.constant 0 : index
    %26 = vector.load %arg2[%c4, %c0_32, %c0_33] : memref<5x32x256xbf16, #tpu.memory_space<vmem>>, vector<1x32x256xbf16>
    %27 = vector.shape_cast %26 : vector<1x32x256xbf16> to vector<32x256xbf16>
    %cst_34 = arith.constant dense<0.000000e+00> : vector<56x256xf32>
    %28 = tpu.matmul %25, %27, %cst_34 {dimension_numbers = #tpu.dot_dimension_numbers<[1], [0], [0], [1], [0, 0, 1, 1], [], []>} : vector<56x32xbf16>, vector<32x256xbf16>, vector<56x256xf32> -> vector<56x256xf32>
    %29 = arith.addf %23, %28 : vector<56x256xf32>
    %c0_35 = arith.constant 0 : index
    %c1_36 = arith.constant 1 : index
    %c0_37 = arith.constant 0 : index
    %c0_38 = arith.constant 0 : index
    %30 = vector.load %arg1[%c0_35, %c1_36, %c0_37, %c0_38] : memref<1x4x64x32xbf16, #tpu.memory_space<vmem>>, vector<1x1x56x32xbf16>
    %31 = vector.shape_cast %30 : vector<1x1x56x32xbf16> to vector<56x32xbf16>
    %c0_39 = arith.constant 0 : index
    %c0_40 = arith.constant 0 : index
    %c0_41 = arith.constant 0 : index
    %32 = vector.load %arg2[%c0_39, %c0_40, %c0_41] : memref<5x32x256xbf16, #tpu.memory_space<vmem>>, vector<1x32x256xbf16>
    %33 = vector.shape_cast %32 : vector<1x32x256xbf16> to vector<32x256xbf16>
    %cst_42 = arith.constant dense<0.000000e+00> : vector<56x256xf32>
    %34 = tpu.matmul %31, %33, %cst_42 {dimension_numbers = #tpu.dot_dimension_numbers<[1], [0], [0], [1], [0, 0, 1, 1], [], []>} : vector<56x32xbf16>, vector<32x256xbf16>, vector<56x256xf32> -> vector<56x256xf32>
    %c0_43 = arith.constant 0 : index
    %c2_44 = arith.constant 2 : index
    %c0_45 = arith.constant 0 : index
    %c0_46 = arith.constant 0 : index
    %35 = vector.load %arg1[%c0_43, %c2_44, %c0_45, %c0_46] : memref<1x4x64x32xbf16, #tpu.memory_space<vmem>>, vector<1x1x56x32xbf16>
    %36 = vector.shape_cast %35 : vector<1x1x56x32xbf16> to vector<56x32xbf16>
    %c1_47 = arith.constant 1 : index
    %c0_48 = arith.constant 0 : index
    %c0_49 = arith.constant 0 : index
    %37 = vector.load %arg2[%c1_47, %c0_48, %c0_49] : memref<5x32x256xbf16, #tpu.memory_space<vmem>>, vector<1x32x256xbf16>
    %38 = vector.shape_cast %37 : vector<1x32x256xbf16> to vector<32x256xbf16>
    %cst_50 = arith.constant dense<0.000000e+00> : vector<56x256xf32>
    %39 = tpu.matmul %36, %38, %cst_50 {dimension_numbers = #tpu.dot_dimension_numbers<[1], [0], [0], [1], [0, 0, 1, 1], [], []>} : vector<56x32xbf16>, vector<32x256xbf16>, vector<56x256xf32> -> vector<56x256xf32>
    %40 = arith.addf %34, %39 : vector<56x256xf32>
    %c0_51 = arith.constant 0 : index
    %c3_52 = arith.constant 3 : index
    %c0_53 = arith.constant 0 : index
    %c0_54 = arith.constant 0 : index
    %41 = vector.load %arg1[%c0_51, %c3_52, %c0_53, %c0_54] : memref<1x4x64x32xbf16, #tpu.memory_space<vmem>>, vector<1x1x56x32xbf16>
    %42 = vector.shape_cast %41 : vector<1x1x56x32xbf16> to vector<56x32xbf16>
    %c2_55 = arith.constant 2 : index
    %c0_56 = arith.constant 0 : index
    %c0_57 = arith.constant 0 : index
    %43 = vector.load %arg2[%c2_55, %c0_56, %c0_57] : memref<5x32x256xbf16, #tpu.memory_space<vmem>>, vector<1x32x256xbf16>
    %44 = vector.shape_cast %43 : vector<1x32x256xbf16> to vector<32x256xbf16>
    %cst_58 = arith.constant dense<0.000000e+00> : vector<56x256xf32>
    %45 = tpu.matmul %42, %44, %cst_58 {dimension_numbers = #tpu.dot_dimension_numbers<[1], [0], [0], [1], [0, 0, 1, 1], [], []>} : vector<56x32xbf16>, vector<32x256xbf16>, vector<56x256xf32> -> vector<56x256xf32>
    %46 = arith.addf %40, %45 : vector<56x256xf32>
    %c0_59 = arith.constant 0 : index
    %c0_60 = arith.constant 0 : index
    %c8_61 = arith.constant 8 : index
    %c0_62 = arith.constant 0 : index
    %47 = vector.load %arg1[%c0_59, %c0_60, %c8_61, %c0_62] : memref<1x4x64x32xbf16, #tpu.memory_space<vmem>>, vector<1x1x56x32xbf16>
    %48 = vector.shape_cast %47 : vector<1x1x56x32xbf16> to vector<56x32xbf16>
    %c3_63 = arith.constant 3 : index
    %c0_64 = arith.constant 0 : index
    %c0_65 = arith.constant 0 : index
    %49 = vector.load %arg2[%c3_63, %c0_64, %c0_65] : memref<5x32x256xbf16, #tpu.memory_space<vmem>>, vector<1x32x256xbf16>
    %50 = vector.shape_cast %49 : vector<1x32x256xbf16> to vector<32x256xbf16>
    %cst_66 = arith.constant dense<0.000000e+00> : vector<56x256xf32>
    %51 = tpu.matmul %48, %50, %cst_66 {dimension_numbers = #tpu.dot_dimension_numbers<[1], [0], [0], [1], [0, 0, 1, 1], [], []>} : vector<56x32xbf16>, vector<32x256xbf16>, vector<56x256xf32> -> vector<56x256xf32>
    %52 = arith.addf %46, %51 : vector<56x256xf32>
    %c0_67 = arith.constant 0 : index
    %c1_68 = arith.constant 1 : index
    %c8_69 = arith.constant 8 : index
    %c0_70 = arith.constant 0 : index
    %53 = vector.load %arg1[%c0_67, %c1_68, %c8_69, %c0_70] : memref<1x4x64x32xbf16, #tpu.memory_space<vmem>>, vector<1x1x56x32xbf16>
    %54 = vector.shape_cast %53 : vector<1x1x56x32xbf16> to vector<56x32xbf16>
    %c4_71 = arith.constant 4 : index
    %c0_72 = arith.constant 0 : index
    %c0_73 = arith.constant 0 : index
    %55 = vector.load %arg2[%c4_71, %c0_72, %c0_73] : memref<5x32x256xbf16, #tpu.memory_space<vmem>>, vector<1x32x256xbf16>
    %56 = vector.shape_cast %55 : vector<1x32x256xbf16> to vector<32x256xbf16>
    %cst_74 = arith.constant dense<0.000000e+00> : vector<56x256xf32>
    %57 = tpu.matmul %54, %56, %cst_74 {dimension_numbers = #tpu.dot_dimension_numbers<[1], [0], [0], [1], [0, 0, 1, 1], [], []>} : vector<56x32xbf16>, vector<32x256xbf16>, vector<56x256xf32> -> vector<56x256xf32>
    %58 = arith.addf %52, %57 : vector<56x256xf32>
    %59 = arith.maximumf %29, %58 : vector<56x256xf32>
    %60 = vector.extract_strided_slice %59 {offsets = [0, 0], sizes = [56, 128], strides = [1, 1]} : vector<56x256xf32> to vector<56x128xf32>
    %61 = vector.extract_strided_slice %59 {offsets = [0, 128], sizes = [56, 128], strides = [1, 1]} : vector<56x256xf32> to vector<56x128xf32>
    %62 = arith.maximumf %60, %61 : vector<56x128xf32>
    %63 = vector.broadcast %0 : vector<1x128xf32> to vector<56x128xf32>
    %64 = arith.addf %62, %63 : vector<56x128xf32>
    %cst_75 = arith.constant 0.000000e+00 : f32
    %65 = vector.broadcast %cst_75 : f32 to vector<56x128xf32>
    %66 = arith.maximumf %64, %65 : vector<56x128xf32>
    %67 = arith.truncf %66 : vector<56x128xf32> to vector<56x128xbf16>
    %c0_76 = arith.constant 0 : index
    %c2_77 = arith.constant 2 : index
    %c0_78 = arith.constant 0 : index
    %c0_79 = arith.constant 0 : index
    %68 = vector.load %arg1[%c0_76, %c2_77, %c0_78, %c0_79] : memref<1x4x64x32xbf16, #tpu.memory_space<vmem>>, vector<1x1x56x32xbf16>
    %69 = vector.shape_cast %68 : vector<1x1x56x32xbf16> to vector<56x32xbf16>
    %c0_80 = arith.constant 0 : index
    %c0_81 = arith.constant 0 : index
    %c0_82 = arith.constant 0 : index
    %70 = vector.load %arg2[%c0_80, %c0_81, %c0_82] : memref<5x32x256xbf16, #tpu.memory_space<vmem>>, vector<1x32x256xbf16>
    %71 = vector.shape_cast %70 : vector<1x32x256xbf16> to vector<32x256xbf16>
    %cst_83 = arith.constant dense<0.000000e+00> : vector<56x256xf32>
    %72 = tpu.matmul %69, %71, %cst_83 {dimension_numbers = #tpu.dot_dimension_numbers<[1], [0], [0], [1], [0, 0, 1, 1], [], []>} : vector<56x32xbf16>, vector<32x256xbf16>, vector<56x256xf32> -> vector<56x256xf32>
    %c0_84 = arith.constant 0 : index
    %c3_85 = arith.constant 3 : index
    %c0_86 = arith.constant 0 : index
    %c0_87 = arith.constant 0 : index
    %73 = vector.load %arg1[%c0_84, %c3_85, %c0_86, %c0_87] : memref<1x4x64x32xbf16, #tpu.memory_space<vmem>>, vector<1x1x56x32xbf16>
    %74 = vector.shape_cast %73 : vector<1x1x56x32xbf16> to vector<56x32xbf16>
    %c1_88 = arith.constant 1 : index
    %c0_89 = arith.constant 0 : index
    %c0_90 = arith.constant 0 : index
    %75 = vector.load %arg2[%c1_88, %c0_89, %c0_90] : memref<5x32x256xbf16, #tpu.memory_space<vmem>>, vector<1x32x256xbf16>
    %76 = vector.shape_cast %75 : vector<1x32x256xbf16> to vector<32x256xbf16>
    %cst_91 = arith.constant dense<0.000000e+00> : vector<56x256xf32>
    %77 = tpu.matmul %74, %76, %cst_91 {dimension_numbers = #tpu.dot_dimension_numbers<[1], [0], [0], [1], [0, 0, 1, 1], [], []>} : vector<56x32xbf16>, vector<32x256xbf16>, vector<56x256xf32> -> vector<56x256xf32>
    %78 = arith.addf %72, %77 : vector<56x256xf32>
    %c0_92 = arith.constant 0 : index
    %c0_93 = arith.constant 0 : index
    %c8_94 = arith.constant 8 : index
    %c0_95 = arith.constant 0 : index
    %79 = vector.load %arg1[%c0_92, %c0_93, %c8_94, %c0_95] : memref<1x4x64x32xbf16, #tpu.memory_space<vmem>>, vector<1x1x56x32xbf16>
    %80 = vector.shape_cast %79 : vector<1x1x56x32xbf16> to vector<56x32xbf16>
    %c2_96 = arith.constant 2 : index
    %c0_97 = arith.constant 0 : index
    %c0_98 = arith.constant 0 : index
    %81 = vector.load %arg2[%c2_96, %c0_97, %c0_98] : memref<5x32x256xbf16, #tpu.memory_space<vmem>>, vector<1x32x256xbf16>
    %82 = vector.shape_cast %81 : vector<1x32x256xbf16> to vector<32x256xbf16>
    %cst_99 = arith.constant dense<0.000000e+00> : vector<56x256xf32>
    %83 = tpu.matmul %80, %82, %cst_99 {dimension_numbers = #tpu.dot_dimension_numbers<[1], [0], [0], [1], [0, 0, 1, 1], [], []>} : vector<56x32xbf16>, vector<32x256xbf16>, vector<56x256xf32> -> vector<56x256xf32>
    %84 = arith.addf %78, %83 : vector<56x256xf32>
    %c0_100 = arith.constant 0 : index
    %c1_101 = arith.constant 1 : index
    %c8_102 = arith.constant 8 : index
    %c0_103 = arith.constant 0 : index
    %85 = vector.load %arg1[%c0_100, %c1_101, %c8_102, %c0_103] : memref<1x4x64x32xbf16, #tpu.memory_space<vmem>>, vector<1x1x56x32xbf16>
    %86 = vector.shape_cast %85 : vector<1x1x56x32xbf16> to vector<56x32xbf16>
    %c3_104 = arith.constant 3 : index
    %c0_105 = arith.constant 0 : index
    %c0_106 = arith.constant 0 : index
    %87 = vector.load %arg2[%c3_104, %c0_105, %c0_106] : memref<5x32x256xbf16, #tpu.memory_space<vmem>>, vector<1x32x256xbf16>
    %88 = vector.shape_cast %87 : vector<1x32x256xbf16> to vector<32x256xbf16>
    %cst_107 = arith.constant dense<0.000000e+00> : vector<56x256xf32>
    %89 = tpu.matmul %86, %88, %cst_107 {dimension_numbers = #tpu.dot_dimension_numbers<[1], [0], [0], [1], [0, 0, 1, 1], [], []>} : vector<56x32xbf16>, vector<32x256xbf16>, vector<56x256xf32> -> vector<56x256xf32>
    %90 = arith.addf %84, %89 : vector<56x256xf32>
    %c0_108 = arith.constant 0 : index
    %c2_109 = arith.constant 2 : index
    %c8_110 = arith.constant 8 : index
    %c0_111 = arith.constant 0 : index
    %91 = vector.load %arg1[%c0_108, %c2_109, %c8_110, %c0_111] : memref<1x4x64x32xbf16, #tpu.memory_space<vmem>>, vector<1x1x56x32xbf16>
    %92 = vector.shape_cast %91 : vector<1x1x56x32xbf16> to vector<56x32xbf16>
    %c4_112 = arith.constant 4 : index
    %c0_113 = arith.constant 0 : index
    %c0_114 = arith.constant 0 : index
    %93 = vector.load %arg2[%c4_112, %c0_113, %c0_114] : memref<5x32x256xbf16, #tpu.memory_space<vmem>>, vector<1x32x256xbf16>
    %94 = vector.shape_cast %93 : vector<1x32x256xbf16> to vector<32x256xbf16>
    %cst_115 = arith.constant dense<0.000000e+00> : vector<56x256xf32>
    %95 = tpu.matmul %92, %94, %cst_115 {dimension_numbers = #tpu.dot_dimension_numbers<[1], [0], [0], [1], [0, 0, 1, 1], [], []>} : vector<56x32xbf16>, vector<32x256xbf16>, vector<56x256xf32> -> vector<56x256xf32>
    %96 = arith.addf %90, %95 : vector<56x256xf32>
    %c0_116 = arith.constant 0 : index
    %c3_117 = arith.constant 3 : index
    %c0_118 = arith.constant 0 : index
    %c0_119 = arith.constant 0 : index
    %97 = vector.load %arg1[%c0_116, %c3_117, %c0_118, %c0_119] : memref<1x4x64x32xbf16, #tpu.memory_space<vmem>>, vector<1x1x56x32xbf16>
    %98 = vector.shape_cast %97 : vector<1x1x56x32xbf16> to vector<56x32xbf16>
    %c0_120 = arith.constant 0 : index
    %c0_121 = arith.constant 0 : index
    %c0_122 = arith.constant 0 : index
    %99 = vector.load %arg2[%c0_120, %c0_121, %c0_122] : memref<5x32x256xbf16, #tpu.memory_space<vmem>>, vector<1x32x256xbf16>
    %100 = vector.shape_cast %99 : vector<1x32x256xbf16> to vector<32x256xbf16>
    %cst_123 = arith.constant dense<0.000000e+00> : vector<56x256xf32>
    %101 = tpu.matmul %98, %100, %cst_123 {dimension_numbers = #tpu.dot_dimension_numbers<[1], [0], [0], [1], [0, 0, 1, 1], [], []>} : vector<56x32xbf16>, vector<32x256xbf16>, vector<56x256xf32> -> vector<56x256xf32>
    %c0_124 = arith.constant 0 : index
    %c0_125 = arith.constant 0 : index
    %c8_126 = arith.constant 8 : index
    %c0_127 = arith.constant 0 : index
    %102 = vector.load %arg1[%c0_124, %c0_125, %c8_126, %c0_127] : memref<1x4x64x32xbf16, #tpu.memory_space<vmem>>, vector<1x1x56x32xbf16>
    %103 = vector.shape_cast %102 : vector<1x1x56x32xbf16> to vector<56x32xbf16>
    %c1_128 = arith.constant 1 : index
    %c0_129 = arith.constant 0 : index
    %c0_130 = arith.constant 0 : index
    %104 = vector.load %arg2[%c1_128, %c0_129, %c0_130] : memref<5x32x256xbf16, #tpu.memory_space<vmem>>, vector<1x32x256xbf16>
    %105 = vector.shape_cast %104 : vector<1x32x256xbf16> to vector<32x256xbf16>
    %cst_131 = arith.constant dense<0.000000e+00> : vector<56x256xf32>
    %106 = tpu.matmul %103, %105, %cst_131 {dimension_numbers = #tpu.dot_dimension_numbers<[1], [0], [0], [1], [0, 0, 1, 1], [], []>} : vector<56x32xbf16>, vector<32x256xbf16>, vector<56x256xf32> -> vector<56x256xf32>
    %107 = arith.addf %101, %106 : vector<56x256xf32>
    %c0_132 = arith.constant 0 : index
    %c1_133 = arith.constant 1 : index
    %c8_134 = arith.constant 8 : index
    %c0_135 = arith.constant 0 : index
    %108 = vector.load %arg1[%c0_132, %c1_133, %c8_134, %c0_135] : memref<1x4x64x32xbf16, #tpu.memory_space<vmem>>, vector<1x1x56x32xbf16>
    %109 = vector.shape_cast %108 : vector<1x1x56x32xbf16> to vector<56x32xbf16>
    %c2_136 = arith.constant 2 : index
    %c0_137 = arith.constant 0 : index
    %c0_138 = arith.constant 0 : index
    %110 = vector.load %arg2[%c2_136, %c0_137, %c0_138] : memref<5x32x256xbf16, #tpu.memory_space<vmem>>, vector<1x32x256xbf16>
    %111 = vector.shape_cast %110 : vector<1x32x256xbf16> to vector<32x256xbf16>
    %cst_139 = arith.constant dense<0.000000e+00> : vector<56x256xf32>
    %112 = tpu.matmul %109, %111, %cst_139 {dimension_numbers = #tpu.dot_dimension_numbers<[1], [0], [0], [1], [0, 0, 1, 1], [], []>} : vector<56x32xbf16>, vector<32x256xbf16>, vector<56x256xf32> -> vector<56x256xf32>
    %113 = arith.addf %107, %112 : vector<56x256xf32>
    %c0_140 = arith.constant 0 : index
    %c2_141 = arith.constant 2 : index
    %c8_142 = arith.constant 8 : index
    %c0_143 = arith.constant 0 : index
    %114 = vector.load %arg1[%c0_140, %c2_141, %c8_142, %c0_143] : memref<1x4x64x32xbf16, #tpu.memory_space<vmem>>, vector<1x1x56x32xbf16>
    %115 = vector.shape_cast %114 : vector<1x1x56x32xbf16> to vector<56x32xbf16>
    %c3_144 = arith.constant 3 : index
    %c0_145 = arith.constant 0 : index
    %c0_146 = arith.constant 0 : index
    %116 = vector.load %arg2[%c3_144, %c0_145, %c0_146] : memref<5x32x256xbf16, #tpu.memory_space<vmem>>, vector<1x32x256xbf16>
    %117 = vector.shape_cast %116 : vector<1x32x256xbf16> to vector<32x256xbf16>
    %cst_147 = arith.constant dense<0.000000e+00> : vector<56x256xf32>
    %118 = tpu.matmul %115, %117, %cst_147 {dimension_numbers = #tpu.dot_dimension_numbers<[1], [0], [0], [1], [0, 0, 1, 1], [], []>} : vector<56x32xbf16>, vector<32x256xbf16>, vector<56x256xf32> -> vector<56x256xf32>
    %119 = arith.addf %113, %118 : vector<56x256xf32>
    %c0_148 = arith.constant 0 : index
    %c3_149 = arith.constant 3 : index
    %c8_150 = arith.constant 8 : index
    %c0_151 = arith.constant 0 : index
    %120 = vector.load %arg1[%c0_148, %c3_149, %c8_150, %c0_151] : memref<1x4x64x32xbf16, #tpu.memory_space<vmem>>, vector<1x1x56x32xbf16>
    %121 = vector.shape_cast %120 : vector<1x1x56x32xbf16> to vector<56x32xbf16>
    %c4_152 = arith.constant 4 : index
    %c0_153 = arith.constant 0 : index
    %c0_154 = arith.constant 0 : index
    %122 = vector.load %arg2[%c4_152, %c0_153, %c0_154] : memref<5x32x256xbf16, #tpu.memory_space<vmem>>, vector<1x32x256xbf16>
    %123 = vector.shape_cast %122 : vector<1x32x256xbf16> to vector<32x256xbf16>
    %cst_155 = arith.constant dense<0.000000e+00> : vector<56x256xf32>
    %124 = tpu.matmul %121, %123, %cst_155 {dimension_numbers = #tpu.dot_dimension_numbers<[1], [0], [0], [1], [0, 0, 1, 1], [], []>} : vector<56x32xbf16>, vector<32x256xbf16>, vector<56x256xf32> -> vector<56x256xf32>
    %125 = arith.addf %119, %124 : vector<56x256xf32>
    %126 = arith.maximumf %96, %125 : vector<56x256xf32>
    %127 = vector.extract_strided_slice %126 {offsets = [0, 0], sizes = [56, 128], strides = [1, 1]} : vector<56x256xf32> to vector<56x128xf32>
    %128 = vector.extract_strided_slice %126 {offsets = [0, 128], sizes = [56, 128], strides = [1, 1]} : vector<56x256xf32> to vector<56x128xf32>
    %129 = arith.maximumf %127, %128 : vector<56x128xf32>
    %130 = vector.broadcast %0 : vector<1x128xf32> to vector<56x128xf32>
    %131 = arith.addf %129, %130 : vector<56x128xf32>
    %cst_156 = arith.constant 0.000000e+00 : f32
    %132 = vector.broadcast %cst_156 : f32 to vector<56x128xf32>
    %133 = arith.maximumf %131, %132 : vector<56x128xf32>
    %134 = arith.truncf %133 : vector<56x128xf32> to vector<56x128xbf16>
    %135 = vector.extract_strided_slice %67 {offsets = [0, 0], sizes = [40, 128], strides = [1, 1]} : vector<56x128xbf16> to vector<40x128xbf16>
    %c0_157 = arith.constant 0 : index
    %c0_158 = arith.constant 0 : index
    %c0_159 = arith.constant 0 : index
    %136 = vector.load %arg4[%c0_157, %c0_158, %c0_159] : memref<5x128x256xbf16, #tpu.memory_space<vmem>>, vector<1x128x256xbf16>
    %137 = vector.shape_cast %136 : vector<1x128x256xbf16> to vector<128x256xbf16>
    %cst_160 = arith.constant dense<0.000000e+00> : vector<40x256xf32>
    %138 = tpu.matmul %135, %137, %cst_160 {dimension_numbers = #tpu.dot_dimension_numbers<[1], [0], [0], [1], [0, 0, 1, 1], [], []>} : vector<40x128xbf16>, vector<128x256xbf16>, vector<40x256xf32> -> vector<40x256xf32>
    %139 = vector.extract_strided_slice %134 {offsets = [0, 0], sizes = [40, 128], strides = [1, 1]} : vector<56x128xbf16> to vector<40x128xbf16>
    %c1_161 = arith.constant 1 : index
    %c0_162 = arith.constant 0 : index
    %c0_163 = arith.constant 0 : index
    %140 = vector.load %arg4[%c1_161, %c0_162, %c0_163] : memref<5x128x256xbf16, #tpu.memory_space<vmem>>, vector<1x128x256xbf16>
    %141 = vector.shape_cast %140 : vector<1x128x256xbf16> to vector<128x256xbf16>
    %cst_164 = arith.constant dense<0.000000e+00> : vector<40x256xf32>
    %142 = tpu.matmul %139, %141, %cst_164 {dimension_numbers = #tpu.dot_dimension_numbers<[1], [0], [0], [1], [0, 0, 1, 1], [], []>} : vector<40x128xbf16>, vector<128x256xbf16>, vector<40x256xf32> -> vector<40x256xf32>
    %143 = arith.addf %138, %142 : vector<40x256xf32>
    %144 = vector.extract_strided_slice %67 {offsets = [8, 0], sizes = [40, 128], strides = [1, 1]} : vector<56x128xbf16> to vector<40x128xbf16>
    %c2_165 = arith.constant 2 : index
    %c0_166 = arith.constant 0 : index
    %c0_167 = arith.constant 0 : index
    %145 = vector.load %arg4[%c2_165, %c0_166, %c0_167] : memref<5x128x256xbf16, #tpu.memory_space<vmem>>, vector<1x128x256xbf16>
    %146 = vector.shape_cast %145 : vector<1x128x256xbf16> to vector<128x256xbf16>
    %cst_168 = arith.constant dense<0.000000e+00> : vector<40x256xf32>
    %147 = tpu.matmul %144, %146, %cst_168 {dimension_numbers = #tpu.dot_dimension_numbers<[1], [0], [0], [1], [0, 0, 1, 1], [], []>} : vector<40x128xbf16>, vector<128x256xbf16>, vector<40x256xf32> -> vector<40x256xf32>
    %148 = arith.addf %143, %147 : vector<40x256xf32>
    %149 = vector.extract_strided_slice %134 {offsets = [8, 0], sizes = [40, 128], strides = [1, 1]} : vector<56x128xbf16> to vector<40x128xbf16>
    %c3_169 = arith.constant 3 : index
    %c0_170 = arith.constant 0 : index
    %c0_171 = arith.constant 0 : index
    %150 = vector.load %arg4[%c3_169, %c0_170, %c0_171] : memref<5x128x256xbf16, #tpu.memory_space<vmem>>, vector<1x128x256xbf16>
    %151 = vector.shape_cast %150 : vector<1x128x256xbf16> to vector<128x256xbf16>
    %cst_172 = arith.constant dense<0.000000e+00> : vector<40x256xf32>
    %152 = tpu.matmul %149, %151, %cst_172 {dimension_numbers = #tpu.dot_dimension_numbers<[1], [0], [0], [1], [0, 0, 1, 1], [], []>} : vector<40x128xbf16>, vector<128x256xbf16>, vector<40x256xf32> -> vector<40x256xf32>
    %153 = arith.addf %148, %152 : vector<40x256xf32>
    %154 = vector.extract_strided_slice %67 {offsets = [16, 0], sizes = [40, 128], strides = [1, 1]} : vector<56x128xbf16> to vector<40x128xbf16>
    %c4_173 = arith.constant 4 : index
    %c0_174 = arith.constant 0 : index
    %c0_175 = arith.constant 0 : index
    %155 = vector.load %arg4[%c4_173, %c0_174, %c0_175] : memref<5x128x256xbf16, #tpu.memory_space<vmem>>, vector<1x128x256xbf16>
    %156 = vector.shape_cast %155 : vector<1x128x256xbf16> to vector<128x256xbf16>
    %cst_176 = arith.constant dense<0.000000e+00> : vector<40x256xf32>
    %157 = tpu.matmul %154, %156, %cst_176 {dimension_numbers = #tpu.dot_dimension_numbers<[1], [0], [0], [1], [0, 0, 1, 1], [], []>} : vector<40x128xbf16>, vector<128x256xbf16>, vector<40x256xf32> -> vector<40x256xf32>
    %158 = arith.addf %153, %157 : vector<40x256xf32>
    %159 = vector.extract_strided_slice %134 {offsets = [0, 0], sizes = [40, 128], strides = [1, 1]} : vector<56x128xbf16> to vector<40x128xbf16>
    %c0_177 = arith.constant 0 : index
    %c0_178 = arith.constant 0 : index
    %c0_179 = arith.constant 0 : index
    %160 = vector.load %arg4[%c0_177, %c0_178, %c0_179] : memref<5x128x256xbf16, #tpu.memory_space<vmem>>, vector<1x128x256xbf16>
    %161 = vector.shape_cast %160 : vector<1x128x256xbf16> to vector<128x256xbf16>
    %cst_180 = arith.constant dense<0.000000e+00> : vector<40x256xf32>
    %162 = tpu.matmul %159, %161, %cst_180 {dimension_numbers = #tpu.dot_dimension_numbers<[1], [0], [0], [1], [0, 0, 1, 1], [], []>} : vector<40x128xbf16>, vector<128x256xbf16>, vector<40x256xf32> -> vector<40x256xf32>
    %163 = vector.extract_strided_slice %67 {offsets = [8, 0], sizes = [40, 128], strides = [1, 1]} : vector<56x128xbf16> to vector<40x128xbf16>
    %c1_181 = arith.constant 1 : index
    %c0_182 = arith.constant 0 : index
    %c0_183 = arith.constant 0 : index
    %164 = vector.load %arg4[%c1_181, %c0_182, %c0_183] : memref<5x128x256xbf16, #tpu.memory_space<vmem>>, vector<1x128x256xbf16>
    %165 = vector.shape_cast %164 : vector<1x128x256xbf16> to vector<128x256xbf16>
    %cst_184 = arith.constant dense<0.000000e+00> : vector<40x256xf32>
    %166 = tpu.matmul %163, %165, %cst_184 {dimension_numbers = #tpu.dot_dimension_numbers<[1], [0], [0], [1], [0, 0, 1, 1], [], []>} : vector<40x128xbf16>, vector<128x256xbf16>, vector<40x256xf32> -> vector<40x256xf32>
    %167 = arith.addf %162, %166 : vector<40x256xf32>
    %168 = vector.extract_strided_slice %134 {offsets = [8, 0], sizes = [40, 128], strides = [1, 1]} : vector<56x128xbf16> to vector<40x128xbf16>
    %c2_185 = arith.constant 2 : index
    %c0_186 = arith.constant 0 : index
    %c0_187 = arith.constant 0 : index
    %169 = vector.load %arg4[%c2_185, %c0_186, %c0_187] : memref<5x128x256xbf16, #tpu.memory_space<vmem>>, vector<1x128x256xbf16>
    %170 = vector.shape_cast %169 : vector<1x128x256xbf16> to vector<128x256xbf16>
    %cst_188 = arith.constant dense<0.000000e+00> : vector<40x256xf32>
    %171 = tpu.matmul %168, %170, %cst_188 {dimension_numbers = #tpu.dot_dimension_numbers<[1], [0], [0], [1], [0, 0, 1, 1], [], []>} : vector<40x128xbf16>, vector<128x256xbf16>, vector<40x256xf32> -> vector<40x256xf32>
    %172 = arith.addf %167, %171 : vector<40x256xf32>
    %173 = vector.extract_strided_slice %67 {offsets = [16, 0], sizes = [40, 128], strides = [1, 1]} : vector<56x128xbf16> to vector<40x128xbf16>
    %c3_189 = arith.constant 3 : index
    %c0_190 = arith.constant 0 : index
    %c0_191 = arith.constant 0 : index
    %174 = vector.load %arg4[%c3_189, %c0_190, %c0_191] : memref<5x128x256xbf16, #tpu.memory_space<vmem>>, vector<1x128x256xbf16>
    %175 = vector.shape_cast %174 : vector<1x128x256xbf16> to vector<128x256xbf16>
    %cst_192 = arith.constant dense<0.000000e+00> : vector<40x256xf32>
    %176 = tpu.matmul %173, %175, %cst_192 {dimension_numbers = #tpu.dot_dimension_numbers<[1], [0], [0], [1], [0, 0, 1, 1], [], []>} : vector<40x128xbf16>, vector<128x256xbf16>, vector<40x256xf32> -> vector<40x256xf32>
    %177 = arith.addf %172, %176 : vector<40x256xf32>
    %178 = vector.extract_strided_slice %134 {offsets = [16, 0], sizes = [40, 128], strides = [1, 1]} : vector<56x128xbf16> to vector<40x128xbf16>
    %c4_193 = arith.constant 4 : index
    %c0_194 = arith.constant 0 : index
    %c0_195 = arith.constant 0 : index
    %179 = vector.load %arg4[%c4_193, %c0_194, %c0_195] : memref<5x128x256xbf16, #tpu.memory_space<vmem>>, vector<1x128x256xbf16>
    %180 = vector.shape_cast %179 : vector<1x128x256xbf16> to vector<128x256xbf16>
    %cst_196 = arith.constant dense<0.000000e+00> : vector<40x256xf32>
    %181 = tpu.matmul %178, %180, %cst_196 {dimension_numbers = #tpu.dot_dimension_numbers<[1], [0], [0], [1], [0, 0, 1, 1], [], []>} : vector<40x128xbf16>, vector<128x256xbf16>, vector<40x256xf32> -> vector<40x256xf32>
    %182 = arith.addf %177, %181 : vector<40x256xf32>
    %183 = arith.maximumf %158, %182 : vector<40x256xf32>
    %c0_197 = arith.constant 0 : index
    %c0_198 = arith.constant 0 : index
    %184 = vector.load %arg5[%c0_197, %c0_198] : memref<1x128xf32, #tpu.memory_space<vmem>>, vector<1x128xf32>
    %185 = vector.extract_strided_slice %183 {offsets = [0, 0], sizes = [40, 128], strides = [1, 1]} : vector<40x256xf32> to vector<40x128xf32>
    %186 = vector.extract_strided_slice %183 {offsets = [0, 128], sizes = [40, 128], strides = [1, 1]} : vector<40x256xf32> to vector<40x128xf32>
    %187 = arith.maximumf %185, %186 : vector<40x128xf32>
    %188 = vector.broadcast %184 : vector<1x128xf32> to vector<40x128xf32>
    %189 = arith.addf %187, %188 : vector<40x128xf32>
    %cst_199 = arith.constant 0.000000e+00 : f32
    %190 = vector.broadcast %cst_199 : f32 to vector<40x128xf32>
    %191 = arith.maximumf %189, %190 : vector<40x128xf32>
    %192 = arith.truncf %191 : vector<40x128xf32> to vector<40x128xbf16>
    %c0_200 = arith.constant 0 : index
    %c0_201 = arith.constant 0 : index
    %193 = vector.load %arg7[%c0_200, %c0_201] : memref<1x128xf32, #tpu.memory_space<vmem>>, vector<1x128xf32>
    %194 = vector.extract_strided_slice %192 {offsets = [0, 0], sizes = [8, 128], strides = [1, 1]} : vector<40x128xbf16> to vector<8x128xbf16>
    %c0_202 = arith.constant 0 : index
    %c0_203 = arith.constant 0 : index
    %c0_204 = arith.constant 0 : index
    %195 = vector.load %arg6[%c0_202, %c0_203, %c0_204] : memref<5x128x128xbf16, #tpu.memory_space<vmem>>, vector<1x128x128xbf16>
    %196 = vector.shape_cast %195 : vector<1x128x128xbf16> to vector<128x128xbf16>
    %cst_205 = arith.constant dense<0.000000e+00> : vector<8x128xf32>
    %197 = tpu.matmul %194, %196, %cst_205 {dimension_numbers = #tpu.dot_dimension_numbers<[1], [0], [0], [1], [0, 0, 1, 1], [], []>} : vector<8x128xbf16>, vector<128x128xbf16>, vector<8x128xf32> -> vector<8x128xf32>
    %198 = vector.broadcast %193 : vector<1x128xf32> to vector<8x128xf32>
    %199 = arith.addf %198, %197 : vector<8x128xf32>
    %200 = vector.extract_strided_slice %192 {offsets = [8, 0], sizes = [8, 128], strides = [1, 1]} : vector<40x128xbf16> to vector<8x128xbf16>
    %c1_206 = arith.constant 1 : index
    %c0_207 = arith.constant 0 : index
    %c0_208 = arith.constant 0 : index
    %201 = vector.load %arg6[%c1_206, %c0_207, %c0_208] : memref<5x128x128xbf16, #tpu.memory_space<vmem>>, vector<1x128x128xbf16>
    %202 = vector.shape_cast %201 : vector<1x128x128xbf16> to vector<128x128xbf16>
    %cst_209 = arith.constant dense<0.000000e+00> : vector<8x128xf32>
    %203 = tpu.matmul %200, %202, %cst_209 {dimension_numbers = #tpu.dot_dimension_numbers<[1], [0], [0], [1], [0, 0, 1, 1], [], []>} : vector<8x128xbf16>, vector<128x128xbf16>, vector<8x128xf32> -> vector<8x128xf32>
    %204 = arith.addf %199, %203 : vector<8x128xf32>
    %205 = vector.extract_strided_slice %192 {offsets = [16, 0], sizes = [8, 128], strides = [1, 1]} : vector<40x128xbf16> to vector<8x128xbf16>
    %c2_210 = arith.constant 2 : index
    %c0_211 = arith.constant 0 : index
    %c0_212 = arith.constant 0 : index
    %206 = vector.load %arg6[%c2_210, %c0_211, %c0_212] : memref<5x128x128xbf16, #tpu.memory_space<vmem>>, vector<1x128x128xbf16>
    %207 = vector.shape_cast %206 : vector<1x128x128xbf16> to vector<128x128xbf16>
    %cst_213 = arith.constant dense<0.000000e+00> : vector<8x128xf32>
    %208 = tpu.matmul %205, %207, %cst_213 {dimension_numbers = #tpu.dot_dimension_numbers<[1], [0], [0], [1], [0, 0, 1, 1], [], []>} : vector<8x128xbf16>, vector<128x128xbf16>, vector<8x128xf32> -> vector<8x128xf32>
    %209 = arith.addf %204, %208 : vector<8x128xf32>
    %210 = vector.extract_strided_slice %192 {offsets = [24, 0], sizes = [8, 128], strides = [1, 1]} : vector<40x128xbf16> to vector<8x128xbf16>
    %c3_214 = arith.constant 3 : index
    %c0_215 = arith.constant 0 : index
    %c0_216 = arith.constant 0 : index
    %211 = vector.load %arg6[%c3_214, %c0_215, %c0_216] : memref<5x128x128xbf16, #tpu.memory_space<vmem>>, vector<1x128x128xbf16>
    %212 = vector.shape_cast %211 : vector<1x128x128xbf16> to vector<128x128xbf16>
    %cst_217 = arith.constant dense<0.000000e+00> : vector<8x128xf32>
    %213 = tpu.matmul %210, %212, %cst_217 {dimension_numbers = #tpu.dot_dimension_numbers<[1], [0], [0], [1], [0, 0, 1, 1], [], []>} : vector<8x128xbf16>, vector<128x128xbf16>, vector<8x128xf32> -> vector<8x128xf32>
    %214 = arith.addf %209, %213 : vector<8x128xf32>
    %215 = vector.extract_strided_slice %192 {offsets = [32, 0], sizes = [8, 128], strides = [1, 1]} : vector<40x128xbf16> to vector<8x128xbf16>
    %c4_218 = arith.constant 4 : index
    %c0_219 = arith.constant 0 : index
    %c0_220 = arith.constant 0 : index
    %216 = vector.load %arg6[%c4_218, %c0_219, %c0_220] : memref<5x128x128xbf16, #tpu.memory_space<vmem>>, vector<1x128x128xbf16>
    %217 = vector.shape_cast %216 : vector<1x128x128xbf16> to vector<128x128xbf16>
    %cst_221 = arith.constant dense<0.000000e+00> : vector<8x128xf32>
    %218 = tpu.matmul %215, %217, %cst_221 {dimension_numbers = #tpu.dot_dimension_numbers<[1], [0], [0], [1], [0, 0, 1, 1], [], []>} : vector<8x128xbf16>, vector<128x128xbf16>, vector<8x128xf32> -> vector<8x128xf32>
    %219 = arith.addf %214, %218 : vector<8x128xf32>
    %cst_222 = arith.constant 0.000000e+00 : f32
    %220 = vector.broadcast %cst_222 : f32 to vector<8x128xf32>
    %221 = arith.maximumf %219, %220 : vector<8x128xf32>
    %222 = arith.truncf %221 : vector<8x128xf32> to vector<8x128xbf16>
    %c0_223 = arith.constant 0 : index
    %c0_224 = arith.constant 0 : index
    %223 = vector.load %arg8[%c0_223, %c0_224] : memref<128x128xbf16, #tpu.memory_space<vmem>>, vector<128x128xbf16>
    %cst_225 = arith.constant dense<0.000000e+00> : vector<8x128xf32>
    %224 = tpu.matmul %222, %223, %cst_225 {dimension_numbers = #tpu.dot_dimension_numbers<[1], [0], [0], [1], [0, 0, 1, 1], [], []>} : vector<8x128xbf16>, vector<128x128xbf16>, vector<8x128xf32> -> vector<8x128xf32>
    %c0_226 = arith.constant 0 : index
    %c0_227 = arith.constant 0 : index
    %225 = vector.load %arg9[%c0_226, %c0_227] : memref<1x128xf32, #tpu.memory_space<vmem>>, vector<1x128xf32>
    %226 = vector.broadcast %225 : vector<1x128xf32> to vector<8x128xf32>
    %227 = arith.addf %224, %226 : vector<8x128xf32>
    %cst_228 = arith.constant 0.000000e+00 : f32
    %228 = vector.broadcast %cst_228 : f32 to vector<8x128xf32>
    %229 = arith.maximumf %227, %228 : vector<8x128xf32>
    %230 = arith.truncf %229 : vector<8x128xf32> to vector<8x128xbf16>
    %c0_229 = arith.constant 0 : index
    %c0_230 = arith.constant 0 : index
    %231 = vector.load %arg10[%c0_229, %c0_230] : memref<128x128xbf16, #tpu.memory_space<vmem>>, vector<128x128xbf16>
    %cst_231 = arith.constant dense<0.000000e+00> : vector<8x128xf32>
    %232 = tpu.matmul %230, %231, %cst_231 {dimension_numbers = #tpu.dot_dimension_numbers<[1], [0], [0], [1], [0, 0, 1, 1], [], []>} : vector<8x128xbf16>, vector<128x128xbf16>, vector<8x128xf32> -> vector<8x128xf32>
    %c0_232 = arith.constant 0 : index
    %c0_233 = arith.constant 0 : index
    %233 = vector.load %arg11[%c0_232, %c0_233] : memref<1x128xf32, #tpu.memory_space<vmem>>, vector<1x128xf32>
    %234 = vector.broadcast %233 : vector<1x128xf32> to vector<8x128xf32>
    %235 = arith.addf %232, %234 : vector<8x128xf32>
    %c0_234 = arith.constant 0 : index
    %c0_235 = arith.constant 0 : index
    %236 = vector.load %arg12[%c0_234, %c0_235] : memref<8x128xf32, #tpu.memory_space<vmem>>, vector<8x128xf32>
    tpu.vector_store %arg12[%c0_234, %c0_235], %235 {strides = array<i32>} : memref<8x128xf32, #tpu.memory_space<vmem>>, vector<8x128xf32>,
    return
  }
  func.func @transform_0(%arg0: i32) -> (i32, i32, i32, i32) {
    %c0_i32 = arith.constant 0 : i32
    %c0_i32_0 = arith.constant 0 : i32
    %c0_i32_1 = arith.constant 0 : i32
    %c0_i32_2 = arith.constant 0 : i32
    return %arg0, %c0_i32, %c0_i32_0, %c0_i32_1 : i32, i32, i32, i32
  }
  func.func @transform_1(%arg0: i32) -> (i32, i32, i32) {
    %c0_i32 = arith.constant 0 : i32
    %c0_i32_0 = arith.constant 0 : i32
    %c0_i32_1 = arith.constant 0 : i32
    %c0_i32_2 = arith.constant 0 : i32
    return %c0_i32, %c0_i32_0, %c0_i32_1 : i32, i32, i32
  }
  func.func @transform_2(%arg0: i32) -> (i32, i32) {
    %c0_i32 = arith.constant 0 : i32
    %c0_i32_0 = arith.constant 0 : i32
    %c0_i32_1 = arith.constant 0 : i32
    return %c0_i32, %c0_i32_0 : i32, i32
  }
  func.func @transform_3(%arg0: i32) -> (i32, i32, i32) {
    %c0_i32 = arith.constant 0 : i32
    %c0_i32_0 = arith.constant 0 : i32
    %c0_i32_1 = arith.constant 0 : i32
    %c0_i32_2 = arith.constant 0 : i32
    return %c0_i32, %c0_i32_0, %c0_i32_1 : i32, i32, i32
  }
  func.func @transform_4(%arg0: i32) -> (i32, i32) {
    %c0_i32 = arith.constant 0 : i32
    %c0_i32_0 = arith.constant 0 : i32
    %c0_i32_1 = arith.constant 0 : i32
    return %c0_i32, %c0_i32_0 : i32, i32
  }
  func.func @transform_5(%arg0: i32) -> (i32, i32, i32) {
    %c0_i32 = arith.constant 0 : i32
    %c0_i32_0 = arith.constant 0 : i32
    %c0_i32_1 = arith.constant 0 : i32
    %c0_i32_2 = arith.constant 0 : i32
    return %c0_i32, %c0_i32_0, %c0_i32_1 : i32, i32, i32
  }
  func.func @transform_6(%arg0: i32) -> (i32, i32) {
    %c0_i32 = arith.constant 0 : i32
    %c0_i32_0 = arith.constant 0 : i32
    %c0_i32_1 = arith.constant 0 : i32
    return %c0_i32, %c0_i32_0 : i32, i32
  }
  func.func @transform_7(%arg0: i32) -> (i32, i32) {
    %c0_i32 = arith.constant 0 : i32
    %c0_i32_0 = arith.constant 0 : i32
    %c0_i32_1 = arith.constant 0 : i32
    return %c0_i32, %c0_i32_0 : i32, i32
  }
  func.func @transform_8(%arg0: i32) -> (i32, i32) {
    %c0_i32 = arith.constant 0 : i32
    %c0_i32_0 = arith.constant 0 : i32
    %c0_i32_1 = arith.constant 0 : i32
    return %c0_i32, %c0_i32_0 : i32, i32
  }
  func.func @transform_9(%arg0: i32) -> (i32, i32) {
    %c0_i32 = arith.constant 0 : i32
    %c0_i32_0 = arith.constant 0 : i32
    %c0_i32_1 = arith.constant 0 : i32
    return %c0_i32, %c0_i32_0 : i32, i32
  }
  func.func @transform_10(%arg0: i32) -> (i32, i32) {
    %c0_i32 = arith.constant 0 : i32
    %c0_i32_0 = arith.constant 0 : i32
    %c0_i32_1 = arith.constant 0 : i32
    return %c0_i32, %c0_i32_0 : i32, i32
  }
  func.func @transform_11(%arg0: i32) -> (i32, i32) {
    %c0_i32 = arith.constant 0 : i32
    %c0_i32_0 = arith.constant 0 : i32
    return %arg0, %c0_i32 : i32, i32
  }
}

</mosaic_0001>

<llo_original>
// kernel: lenet_forward.1
$region0: #{lenet_forward.1}
  #allocation0 [shape = 'u32[]', space=smem, size = 0x4, offset = 0x4, fixed_abs, tag = 'smem constant byte address 0x4 - core index']
  #allocation1 [shape = 'u32[144,128]{1,0:T(1,128)}', space=vmem, size = 0x12000, scoped, tag = 'internal scratch']
  %s0 = inlined_call_operand.vmem [shape: bf16[2,4,64,32], index: 0, kind: input, shape index: {}]
  %s1 = inlined_call_operand.vmem [shape: bf16[5,32,256], index: 1, kind: input, shape index: {}]
  %s2 = inlined_call_operand.vmem [shape: f32[1,128], index: 2, kind: input, shape index: {}]
  %s3 = inlined_call_operand.vmem [shape: bf16[5,128,256], index: 3, kind: input, shape index: {}]
  %s4 = inlined_call_operand.vmem [shape: f32[1,128], index: 4, kind: input, shape index: {}]
  %s5 = inlined_call_operand.vmem [shape: bf16[5,128,128], index: 5, kind: input, shape index: {}]
  %s6 = inlined_call_operand.vmem [shape: f32[1,128], index: 6, kind: input, shape index: {}]
  %s7 = inlined_call_operand.vmem [shape: bf16[128,128], index: 7, kind: input, shape index: {}]
  %s8 = inlined_call_operand.vmem [shape: f32[1,128], index: 8, kind: input, shape index: {}]
  %s9 = inlined_call_operand.vmem [shape: bf16[128,128], index: 9, kind: input, shape index: {}]
  %s10 = inlined_call_operand.vmem [shape: f32[1,128], index: 10, kind: input, shape index: {}]
  %s11 = inlined_call_operand.hbm [shape: f32[16,128], index: 11, kind: output, shape index: {}]
  %s12 = sld [smem:[#allocation0]]
  $region77: #{lenet_forward.1} parent=0
    _
  %s14 = ssub.s32 1, %s12
  %s15 = scalar_select 0, %s14, %s12
  $region1: #{lenet_forward.1} parent=0
    #allocation2 [shape = 'u8[8192]{0}', space=vmem, size = 0x2000, scoped, tag = 'output window, operand 0']
    #allocation3 [shape = 's32[2]{0}', space=sflag, size = 0x8, scoped, tag = 'scoped memory for lenet_forward.1']
    %16 = vsyncpa [#allocation3], 0
    %s17 = scalar_lea.sflag [#allocation3], 1
    %18 = vsyncpa %s17, 0
    loop: start=0, step=1, limit=4
    $region2: #{lenet_forward.1} parent=1 // loop_pre_header
      _
    $region3: #{lenet_forward.1} parent=1 // loop_header
      %s20 = sphi 0, %s24
      %p21 = scmp.ge.s32.totalorder %s20, 4
      %s30 = sphi 0, %s32
      %s33 = sphi 0, %s30
      %s34 = sphi 0, %s33
      %s50 = sphi 0, %s34
      %s54 = sphi 0, %s54
      %s56 = sphi 0, %s54
      %s57 = sphi 0, %s56
      %s71 = sphi 0, %s57
      %s75 = sphi 0, %s75
      %s77 = sphi 0, %s75
      %s78 = sphi 0, %s77
      %s92 = sphi 0, %s78
      %s96 = sphi 0, %s96
      %s98 = sphi 0, %s96
      %s99 = sphi 0, %s98
      %s113 = sphi 0, %s99
      %s117 = sphi 0, %s117
      %s119 = sphi 0, %s117
      %s120 = sphi 0, %s119
      %s134 = sphi 0, %s120
      %s138 = sphi 0, %s138
      %s140 = sphi 0, %s138
      %s141 = sphi 0, %s140
      %s155 = sphi 0, %s141
      %s159 = sphi 0, %s159
      %s161 = sphi 0, %s159
      %s162 = sphi 0, %s161
      %s176 = sphi 0, %s162
      %s180 = sphi 0, %s180
      %s182 = sphi 0, %s180
      %s183 = sphi 0, %s182
      %s197 = sphi 0, %s183
      %s201 = sphi 0, %s201
      %s203 = sphi 0, %s201
      %s204 = sphi 0, %s203
      %s218 = sphi 0, %s204
      %s222 = sphi 0, %s222
      %s224 = sphi 0, %s222
      %s225 = sphi 0, %s224
      %s239 = sphi 0, %s225
      %s243 = sphi 0, %s243
      %s245 = sphi 0, %s243
      %s246 = sphi 0, %s245
      %s260 = sphi 0, %s246
      %s266 = sphi 0, %s268
      %s269 = sphi 0, %s266
      %s270 = sphi 0, %s269
      %s286 = sphi 0, %s270
    $region4: #{lenet_forward.1} parent=1 // loop_header_branch
      %23 = sbr.rel (%p21) target = $region8
    $region5: #{lenet_forward.1} parent=1 // loop_body
      %s25 = ssub.s32 %s20, 1
      %s26 = ssub.s32 %s20, 2
      %s27 = sadd.s32 %s20, 1
      %s28 = ssub.s32 %s20, %s27
      %p29 = scmp.eq.s32.totalorder %s28, 0
      %s31 = sadd.s32 %s30, 1
      %s32 = scalar_select %p29, %s30, %s31
      %p35 = pneg %p29
      %p36 = scmp.eq.s32.totalorder %s20, 1
      %p37 = por %p35, %p36
      %p38 = scmp.ne.s32.totalorder %s30, %s33
      %p39 = scmp.eq.s32.totalorder %s20, 0
      %p40 = por %p38, %p39
      %p41 = scmp.ne.s32.totalorder %s30, %s33
      %p42 = scmp.eq.s32.totalorder %s25, 1
      %p43 = por %p41, %p42
      %p44 = scmp.ne.s32.totalorder %s33, %s34
      %p45 = scmp.eq.s32.totalorder %s25, 0
      %p46 = por %p44, %p45
      %p47 = scmp.ne.s32.totalorder %s33, %s34
      %p48 = scmp.eq.s32.totalorder %s26, 1
      %p49 = por %p47, %p48
      %p51 = scmp.ne.s32.totalorder %s34, %s50
      %p52 = scmp.eq.s32.totalorder %s26, 0
      %p53 = por %p51, %p52
      %s55 = sadd.s32 %s54, 1
      %p58 = scmp.eq.s32.totalorder %s20, 1
      %p59 = scmp.ne.s32.totalorder %s54, %s56
      %p60 = scmp.eq.s32.totalorder %s20, 0
      %p61 = por %p59, %p60
      %p62 = scmp.ne.s32.totalorder %s54, %s56
      %p63 = scmp.eq.s32.totalorder %s25, 1
      %p64 = por %p62, %p63
      %p65 = scmp.ne.s32.totalorder %s56, %s57
      %p66 = scmp.eq.s32.totalorder %s25, 0
      %p67 = por %p65, %p66
      %p68 = scmp.ne.s32.totalorder %s56, %s57
      %p69 = scmp.eq.s32.totalorder %s26, 1
      %p70 = por %p68, %p69
      %p72 = scmp.ne.s32.totalorder %s57, %s71
      %p73 = scmp.eq.s32.totalorder %s26, 0
      %p74 = por %p72, %p73
      %s76 = sadd.s32 %s75, 1
      %p79 = scmp.eq.s32.totalorder %s20, 1
      %p80 = scmp.ne.s32.totalorder %s75, %s77
      %p81 = scmp.eq.s32.totalorder %s20, 0
      %p82 = por %p80, %p81
      %p83 = scmp.ne.s32.totalorder %s75, %s77
      %p84 = scmp.eq.s32.totalorder %s25, 1
      %p85 = por %p83, %p84
      %p86 = scmp.ne.s32.totalorder %s77, %s78
      %p87 = scmp.eq.s32.totalorder %s25, 0
      %p88 = por %p86, %p87
      %p89 = scmp.ne.s32.totalorder %s77, %s78
      %p90 = scmp.eq.s32.totalorder %s26, 1
      %p91 = por %p89, %p90
      %p93 = scmp.ne.s32.totalorder %s78, %s92
      %p94 = scmp.eq.s32.totalorder %s26, 0
      %p95 = por %p93, %p94
      %s97 = sadd.s32 %s96, 1
      %p100 = scmp.eq.s32.totalorder %s20, 1
      %p101 = scmp.ne.s32.totalorder %s96, %s98
      %p102 = scmp.eq.s32.totalorder %s20, 0
      %p103 = por %p101, %p102
      %p104 = scmp.ne.s32.totalorder %s96, %s98
      %p105 = scmp.eq.s32.totalorder %s25, 1
      %p106 = por %p104, %p105
      %p107 = scmp.ne.s32.totalorder %s98, %s99
      %p108 = scmp.eq.s32.totalorder %s25, 0
      %p109 = por %p107, %p108
      %p110 = scmp.ne.s32.totalorder %s98, %s99
      %p111 = scmp.eq.s32.totalorder %s26, 1
      %p112 = por %p110, %p111
      %p114 = scmp.ne.s32.totalorder %s99, %s113
      %p115 = scmp.eq.s32.totalorder %s26, 0
      %p116 = por %p114, %p115
      %s118 = sadd.s32 %s117, 1
      %p121 = scmp.eq.s32.totalorder %s20, 1
      %p122 = scmp.ne.s32.totalorder %s117, %s119
      %p123 = scmp.eq.s32.totalorder %s20, 0
      %p124 = por %p122, %p123
      %p125 = scmp.ne.s32.totalorder %s117, %s119
      %p126 = scmp.eq.s32.totalorder %s25, 1
      %p127 = por %p125, %p126
      %p128 = scmp.ne.s32.totalorder %s119, %s120
      %p129 = scmp.eq.s32.totalorder %s25, 0
      %p130 = por %p128, %p129
      %p131 = scmp.ne.s32.totalorder %s119, %s120
      %p132 = scmp.eq.s32.totalorder %s26, 1
      %p133 = por %p131, %p132
      %p135 = scmp.ne.s32.totalorder %s120, %s134
      %p136 = scmp.eq.s32.totalorder %s26, 0
      %p137 = por %p135, %p136
      %s139 = sadd.s32 %s138, 1
      %p142 = scmp.eq.s32.totalorder %s20, 1
      %p143 = scmp.ne.s32.totalorder %s138, %s140
      %p144 = scmp.eq.s32.totalorder %s20, 0
      %p145 = por %p143, %p144
      %p146 = scmp.ne.s32.totalorder %s138, %s140
      %p147 = scmp.eq.s32.totalorder %s25, 1
      %p148 = por %p146, %p147
      %p149 = scmp.ne.s32.totalorder %s140, %s141
      %p150 = scmp.eq.s32.totalorder %s25, 0
      %p151 = por %p149, %p150
      %p152 = scmp.ne.s32.totalorder %s140, %s141
      %p153 = scmp.eq.s32.totalorder %s26, 1
      %p154 = por %p152, %p153
      %p156 = scmp.ne.s32.totalorder %s141, %s155
      %p157 = scmp.eq.s32.totalorder %s26, 0
      %p158 = por %p156, %p157
      %s160 = sadd.s32 %s159, 1
      %p163 = scmp.eq.s32.totalorder %s20, 1
      %p164 = scmp.ne.s32.totalorder %s159, %s161
      %p165 = scmp.eq.s32.totalorder %s20, 0
      %p166 = por %p164, %p165
      %p167 = scmp.ne.s32.totalorder %s159, %s161
      %p168 = scmp.eq.s32.totalorder %s25, 1
      %p169 = por %p167, %p168
      %p170 = scmp.ne.s32.totalorder %s161, %s162
      %p171 = scmp.eq.s32.totalorder %s25, 0
      %p172 = por %p170, %p171
      %p173 = scmp.ne.s32.totalorder %s161, %s162
      %p174 = scmp.eq.s32.totalorder %s26, 1
      %p175 = por %p173, %p174
      %p177 = scmp.ne.s32.totalorder %s162, %s176
      %p178 = scmp.eq.s32.totalorder %s26, 0
      %p179 = por %p177, %p178
      %s181 = sadd.s32 %s180, 1
      %p184 = scmp.eq.s32.totalorder %s20, 1
      %p185 = scmp.ne.s32.totalorder %s180, %s182
      %p186 = scmp.eq.s32.totalorder %s20, 0
      %p187 = por %p185, %p186
      %p188 = scmp.ne.s32.totalorder %s180, %s182
      %p189 = scmp.eq.s32.totalorder %s25, 1
      %p190 = por %p188, %p189
      %p191 = scmp.ne.s32.totalorder %s182, %s183
      %p192 = scmp.eq.s32.totalorder %s25, 0
      %p193 = por %p191, %p192
      %p194 = scmp.ne.s32.totalorder %s182, %s183
      %p195 = scmp.eq.s32.totalorder %s26, 1
      %p196 = por %p194, %p195
      %p198 = scmp.ne.s32.totalorder %s183, %s197
      %p199 = scmp.eq.s32.totalorder %s26, 0
      %p200 = por %p198, %p199
      %s202 = sadd.s32 %s201, 1
      %p205 = scmp.eq.s32.totalorder %s20, 1
      %p206 = scmp.ne.s32.totalorder %s201, %s203
      %p207 = scmp.eq.s32.totalorder %s20, 0
      %p208 = por %p206, %p207
      %p209 = scmp.ne.s32.totalorder %s201, %s203
      %p210 = scmp.eq.s32.totalorder %s25, 1
      %p211 = por %p209, %p210
      %p212 = scmp.ne.s32.totalorder %s203, %s204
      %p213 = scmp.eq.s32.totalorder %s25, 0
      %p214 = por %p212, %p213
      %p215 = scmp.ne.s32.totalorder %s203, %s204
      %p216 = scmp.eq.s32.totalorder %s26, 1
      %p217 = por %p215, %p216
      %p219 = scmp.ne.s32.totalorder %s204, %s218
      %p220 = scmp.eq.s32.totalorder %s26, 0
      %p221 = por %p219, %p220
      %s223 = sadd.s32 %s222, 1
      %p226 = scmp.eq.s32.totalorder %s20, 1
      %p227 = scmp.ne.s32.totalorder %s222, %s224
      %p228 = scmp.eq.s32.totalorder %s20, 0
      %p229 = por %p227, %p228
      %p230 = scmp.ne.s32.totalorder %s222, %s224
      %p231 = scmp.eq.s32.totalorder %s25, 1
      %p232 = por %p230, %p231
      %p233 = scmp.ne.s32.totalorder %s224, %s225
      %p234 = scmp.eq.s32.totalorder %s25, 0
      %p235 = por %p233, %p234
      %p236 = scmp.ne.s32.totalorder %s224, %s225
      %p237 = scmp.eq.s32.totalorder %s26, 1
      %p238 = por %p236, %p237
      %p240 = scmp.ne.s32.totalorder %s225, %s239
      %p241 = scmp.eq.s32.totalorder %s26, 0
      %p242 = por %p240, %p241
      %s244 = sadd.s32 %s243, 1
      %p247 = scmp.eq.s32.totalorder %s20, 1
      %p248 = scmp.ne.s32.totalorder %s243, %s245
      %p249 = scmp.eq.s32.totalorder %s20, 0
      %p250 = por %p248, %p249
      %p251 = scmp.ne.s32.totalorder %s243, %s245
      %p252 = scmp.eq.s32.totalorder %s25, 1
      %p253 = por %p251, %p252
      %p254 = scmp.ne.s32.totalorder %s245, %s246
      %p255 = scmp.eq.s32.totalorder %s25, 0
      %p256 = por %p254, %p255
      %p257 = scmp.ne.s32.totalorder %s245, %s246
      %p258 = scmp.eq.s32.totalorder %s26, 1
      %p259 = por %p257, %p258
      %p261 = scmp.ne.s32.totalorder %s246, %s260
      %p262 = scmp.eq.s32.totalorder %s26, 0
      %p263 = por %p261, %p262
      %s264 = ssub.s32 %s20, %s27
      %p265 = scmp.eq.s32.totalorder %s264, 0
      %s267 = sadd.s32 %s266, 1
      %s268 = scalar_select %p265, %s266, %s267
      %p271 = pneg %p265
      %p272 = scmp.eq.s32.totalorder %s20, 1
      %p273 = por %p271, %p272
      %p274 = scmp.ne.s32.totalorder %s266, %s269
      %p275 = scmp.eq.s32.totalorder %s20, 0
      %p276 = por %p274, %p275
      %p277 = scmp.ne.s32.totalorder %s266, %s269
      %p278 = scmp.eq.s32.totalorder %s25, 1
      %p279 = por %p277, %p278
      %p280 = scmp.ne.s32.totalorder %s269, %s270
      %p281 = scmp.eq.s32.totalorder %s25, 0
      %p282 = por %p280, %p281
      %p283 = scmp.ne.s32.totalorder %s269, %s270
      %p284 = scmp.eq.s32.totalorder %s26, 1
      %p285 = por %p283, %p284
      %p287 = scmp.ne.s32.totalorder %s270, %s286
      %p288 = scmp.eq.s32.totalorder %s26, 0
      %p289 = por %p287, %p288
      %p290 = scmp.le.s32.totalorder 1, %s20
      %p291 = scmp.lt.s32.totalorder %s20, 3
      %p292 = pnand %p290, %p291
      %p293 = pneg %p292
      // Predicated region
      $region9: #{lenet_forward.1} parent=5 // pred_check
        _
      $region10: #{lenet_forward.1} parent=5 // pred_check_branch
        %295 = sbr.rel (%p292) target = $region12
      $region11: #{lenet_forward.1} parent=5 // pred_region
        %s296 = ssub.s32 %s20, 1
        // Predicated region
        $region13: #{lenet_forward.1} parent=11 // pred_check
          %p297 = pneg %p67
        $region14: #{lenet_forward.1} parent=11 // pred_check_branch
          %299 = sbr.rel (%p297) target = $region16
        $region15: #{lenet_forward.1} parent=11 // pred_region
          _
        $region16: #{lenet_forward.1} parent=11 // pred_fallthru
          _
        // Predicated region
        $region17: #{lenet_forward.1} parent=11 // pred_check
          %p300 = pneg %p88
        $region18: #{lenet_forward.1} parent=11 // pred_check_branch
          %302 = sbr.rel (%p300) target = $region20
        $region19: #{lenet_forward.1} parent=11 // pred_region
          _
        $region20: #{lenet_forward.1} parent=11 // pred_fallthru
          _
        // Predicated region
        $region21: #{lenet_forward.1} parent=11 // pred_check
          %p303 = pneg %p109
        $region22: #{lenet_forward.1} parent=11 // pred_check_branch
          %305 = sbr.rel (%p303) target = $region24
        $region23: #{lenet_forward.1} parent=11 // pred_region
          _
        $region24: #{lenet_forward.1} parent=11 // pred_fallthru
          _
        // Predicated region
        $region25: #{lenet_forward.1} parent=11 // pred_check
          %p306 = pneg %p130
        $region26: #{lenet_forward.1} parent=11 // pred_check_branch
          %308 = sbr.rel (%p306) target = $region28
        $region27: #{lenet_forward.1} parent=11 // pred_region
          _
        $region28: #{lenet_forward.1} parent=11 // pred_fallthru
          _
        // Predicated region
        $region29: #{lenet_forward.1} parent=11 // pred_check
          %p309 = pneg %p151
        $region30: #{lenet_forward.1} parent=11 // pred_check_branch
          %311 = sbr.rel (%p309) target = $region32
        $region31: #{lenet_forward.1} parent=11 // pred_region
          _
        $region32: #{lenet_forward.1} parent=11 // pred_fallthru
          _
        // Predicated region
        $region33: #{lenet_forward.1} parent=11 // pred_check
          %p312 = pneg %p172
        $region34: #{lenet_forward.1} parent=11 // pred_check_branch
          %314 = sbr.rel (%p312) target = $region36
        $region35: #{lenet_forward.1} parent=11 // pred_region
          _
        $region36: #{lenet_forward.1} parent=11 // pred_fallthru
          _
        // Predicated region
        $region37: #{lenet_forward.1} parent=11 // pred_check
          %p315 = pneg %p193
        $region38: #{lenet_forward.1} parent=11 // pred_check_branch
          %317 = sbr.rel (%p315) target = $region40
        $region39: #{lenet_forward.1} parent=11 // pred_region
          _
        $region40: #{lenet_forward.1} parent=11 // pred_fallthru
          _
        // Predicated region
        $region41: #{lenet_forward.1} parent=11 // pred_check
          %p318 = pneg %p214
        $region42: #{lenet_forward.1} parent=11 // pred_check_branch
          %320 = sbr.rel (%p318) target = $region44
        $region43: #{lenet_forward.1} parent=11 // pred_region
          _
        $region44: #{lenet_forward.1} parent=11 // pred_fallthru
          _
        // Predicated region
        $region45: #{lenet_forward.1} parent=11 // pred_check
          %p321 = pneg %p235
        $region46: #{lenet_forward.1} parent=11 // pred_check_branch
          %323 = sbr.rel (%p321) target = $region48
        $region47: #{lenet_forward.1} parent=11 // pred_region
          _
        $region48: #{lenet_forward.1} parent=11 // pred_fallthru
          _
        // Predicated region
        $region49: #{lenet_forward.1} parent=11 // pred_check
          %p324 = pneg %p256
        $region50: #{lenet_forward.1} parent=11 // pred_check_branch
          %326 = sbr.rel (%p324) target = $region52
        $region51: #{lenet_forward.1} parent=11 // pred_region
          _
        $region52: #{lenet_forward.1} parent=11 // pred_fallthru
          _
      $region12: #{lenet_forward.1} parent=5 // pred_fallthru
        _
      %p327 = scmp.lt.s32.totalorder %s20, 2
      // Predicated region
      $region53: #{lenet_forward.1} parent=5 // pred_check
        %p328 = pneg %p327
      $region54: #{lenet_forward.1} parent=5 // pred_check_branch
        %330 = sbr.rel (%p328) target = $region56
      $region55: #{lenet_forward.1} parent=5 // pred_region
        // Predicated region
        $region57: #{lenet_forward.1} parent=55 // pred_check
          %p331 = pneg %p40
        $region58: #{lenet_forward.1} parent=55 // pred_check_branch
          %333 = sbr.rel (%p331) target = $region60
        $region59: #{lenet_forward.1} parent=55 // pred_region
          %p334 = scmp.lt.s32.totalorder %s20, 1
          %s335 = scalar_select %p334, %s20, 1
          %s336 = smul.addr %s335, 32
          %s337 = smul.addr %s336, 4
          %s338 = scalar_lea.vmem %s0, %s337
        $region60: #{lenet_forward.1} parent=55 // pred_fallthru
          _
      $region56: #{lenet_forward.1} parent=5 // pred_fallthru
        _
      %p339 = scmp.le.s32.totalorder 1, %s20
      %p340 = scmp.lt.s32.totalorder %s20, 3
      %p341 = pnand %p339, %p340
      %p342 = pneg %p341
      // Predicated region
      $region61: #{lenet_forward.1} parent=5 // pred_check
        _
      $region62: #{lenet_forward.1} parent=5 // pred_check_branch
        %344 = sbr.rel (%p341) target = $region64
      $region63: #{lenet_forward.1} parent=5 // pred_region
        %s345 = ssub.s32 %s20, 1
        %p346 = scmp.lt.s32.totalorder %s25, 1
        %s347 = scalar_select %p346, %s25, 1
        %s348 = smul.addr %s347, 32
        %s349 = smul.addr %s348, 4
        %s350 = scalar_lea.vmem %s0, %s349
        %p351 = pneg %p46
        %p352 = pneg %p43
        %p353 = pneg %p67
        %p354 = pneg %p64
        %p355 = pneg %p88
        %p356 = pneg %p85
        %p357 = pneg %p109
        %p358 = pneg %p106
        %p359 = pneg %p130
        %p360 = pneg %p127
        %p361 = pneg %p151
        %p362 = pneg %p148
        %p363 = pneg %p172
        %p364 = pneg %p169
        %p365 = pneg %p193
        %p366 = pneg %p190
        %p367 = pneg %p214
        %p368 = pneg %p211
        %p369 = pneg %p235
        %p370 = pneg %p232
        %p371 = pneg %p256
        %p372 = pneg %p253
        %p373 = pneg %p282
        %p374 = pneg %p279
        %s375 = sand.u32 %s269, 1
        %s376 = scalar_lea.sflag [#allocation3], %s375
        %s377 = sand.u32 %s269, 1
        %s378 = smul.addr %s377, 8
        %s379 = scalar_lea.vmem [#allocation2], %s378
        %p380 = scmp.lt.s32.totalorder %s25, 1
        %s381 = scalar_select %p380, %s25, 1
        %s382 = smul.addr %s381, 32
        %s383 = smul.addr %s382, 4
        %s384 = scalar_lea.vmem %s0, %s383
        %v386 = vld [vmem:[%s2] sm:$0x1]
        %v387 = vld [vmem:[%s384] sm:$0xf]
        %v388 = vld [vmem:[%s384 + $0x4] sm:$0xf]
        %v389 = vld [vmem:[%s384 + $0x8] sm:$0xf]
        %v390 = vld [vmem:[%s384 + $0xc] sm:$0xf]
        %v391 = vld [vmem:[%s384 + $0x10] sm:$0xf]
        %v392 = vld [vmem:[%s384 + $0x14] sm:$0xf]
        %v393 = vld [vmem:[%s384 + $0x18] sm:$0xf]
        %v394 = vld [vmem:[%s1] sm:$0xff]
        %v395 = vld [vmem:[%s1 + $0x8] sm:$0xff]
        %v396 = vld [vmem:[%s1 + $0x10] sm:$0xff]
        %v397 = vld [vmem:[%s1 + $0x18] sm:$0xff]
        %s398 = scalar_lea.vmem %s384, 32
        %v399 = vld [vmem:[%s398] sm:$0xf]
        %v400 = vld [vmem:[%s398 + $0x4] sm:$0xf]
        %v401 = vld [vmem:[%s398 + $0x8] sm:$0xf]
        %v402 = vld [vmem:[%s398 + $0xc] sm:$0xf]
        %v403 = vld [vmem:[%s398 + $0x10] sm:$0xf]
        %v404 = vld [vmem:[%s398 + $0x14] sm:$0xf]
        %v405 = vld [vmem:[%s398 + $0x18] sm:$0xf]
        %s406 = scalar_lea.vmem %s1, 32
        %v407 = vld [vmem:[%s406] sm:$0xff]
        %v408 = vld [vmem:[%s406 + $0x8] sm:$0xff]
        %v409 = vld [vmem:[%s406 + $0x10] sm:$0xff]
        %v410 = vld [vmem:[%s406 + $0x18] sm:$0xff]
        %v418 = vunpack.c.l.b16 %v399
        %v419 = vunpack.c.l.b16 %v400
        %v420 = vunpack.c.l.b16 %v401
        %v421 = vunpack.c.l.b16 %v402
        %v422 = vunpack.c.l.b16 %v403
        %v423 = vunpack.c.l.b16 %v404
        %v424 = vunpack.c.l.b16 %v405
        %v425 = vpack.c.b16 %v419, %v418
        %v426 = vpack.c.b16 %v421, %v420
        %v427 = vpack.c.b16 %v423, %v422
        %v428 = vpack.c.b16 %v424, %v424
        %v433 = vunpack.c.l.b16 %v407
        %v434 = vunpack.c.h.b16 %v407
        %v435 = vunpack.c.l.b16 %v408
        %v436 = vunpack.c.h.b16 %v408
        %v437 = vunpack.c.l.b16 %v409
        %v438 = vunpack.c.h.b16 %v409
        %v439 = vunpack.c.l.b16 %v410
        %v440 = vunpack.c.h.b16 %v410
        %v441 = vpack.c.b16 %v435, %v433
        %v442 = vpack.c.b16 %v436, %v434
        %v443 = vpack.c.b16 %v439, %v437
        %v444 = vpack.c.b16 %v440, %v438
        %vm449 = vcmask 261120
        %v451 = vsel %vm449, %v425, 0
        %v454 = vsel %vm449, %v426, 0
        %v457 = vsel %vm449, %v427, 0
        %v460 = vsel %vm449, %v428, 0
        %462 = vmatprep.subr.bf16.mxu0 %v442
        %463 = vmatpush1.bf16.msra.mxu0 %v441
        %464 = vmatprep.subr.bf16.mxu0 %v444
        %465 = vmatpush1.bf16.msra.mxu0 %v443
        %466 = vmatprep.subr.bf16.mxu0 0
        %467 = vmatpush1.bf16.msra.mxu0 0
        %468 = vmatprep.subr.bf16.mxu0 0
        %469 = vmatpush1.bf16.msra.mxu0 0
        %470 = vmatprep.subr.bf16.mxu0 0
        %471 = vmatpush1.bf16.msra.mxu0 0
        %472 = vmatprep.subr.bf16.mxu0 0
        %473 = vmatpush1.bf16.msra.mxu0 0
        %474 = vmatprep.subr.bf16.mxu0 0
        %475 = vmatpush1.bf16.msra.mxu0 0
        %476 = vmatprep.subr.bf16.mxu0 0
        %477 = vmatpush1.bf16.msra.mxu0 0
        %478 = vmatprep.subr.bf16.mxu0 0
        %479 = vmatpush1.bf16.msra.mxu0 0
        %480 = vmatprep.subr.bf16.mxu0 0
        %481 = vmatpush1.bf16.msra.mxu0 0
        %482 = vmatprep.subr.bf16.mxu0 0
        %483 = vmatpush1.bf16.msra.mxu0 0
        %484 = vmatprep.subr.bf16.mxu0 0
        %485 = vmatpush1.bf16.msra.mxu0 0
        %486 = vmatprep.subr.bf16.mxu0 0
        %487 = vmatpush1.bf16.msra.mxu0 0
        %488 = vmatprep.subr.bf16.mxu0 0
        %489 = vmatpush1.bf16.msra.mxu0 0
        %490 = vmatprep.subr.bf16.mxu0 0
        %491 = vmatpush1.bf16.msra.mxu0 0
        %492 = vmatprep.subr.bf16.mxu0 0
        %493 = vmatpush1.bf16.msra.mxu0 0
        %494 = vmatprep.mubr.bf16.mxu0 0
        %495 = vmatmul.mubr.bf16.gmra.mrb[0].mxu0 %v451
        %v496 = vpop.f32.mrb[0].mxu0
        %v497 = vadd.f32 0.0, %v496
        %v498 = vpop.f32.mrb[0].mxu0
        %v499 = vadd.f32 0.0, %v498
        %v500 = vpop.f32.mrb[0].mxu0
        %v501 = vadd.f32 0.0, %v500
        %v502 = vpop.f32.mrb[0].mxu0
        %v503 = vadd.f32 0.0, %v502
        %504 = vmatprep.mubr.bf16.mxu0 0
        %505 = vmatmul.mubr.bf16.gmra.mrb[0].mxu0 %v454
        %v506 = vpop.f32.mrb[0].mxu0
        %v507 = vadd.f32 0.0, %v506
        %v508 = vpop.f32.mrb[0].mxu0
        %v509 = vadd.f32 0.0, %v508
        %v510 = vpop.f32.mrb[0].mxu0
        %v511 = vadd.f32 0.0, %v510
        %v512 = vpop.f32.mrb[0].mxu0
        %v513 = vadd.f32 0.0, %v512
        %514 = vmatprep.mubr.bf16.mxu0 0
        %515 = vmatmul.mubr.bf16.gmra.mrb[0].mxu0 %v457
        %v516 = vpop.f32.mrb[0].mxu0
        %v517 = vadd.f32 0.0, %v516
        %v518 = vpop.f32.mrb[0].mxu0
        %v519 = vadd.f32 0.0, %v518
        %v520 = vpop.f32.mrb[0].mxu0
        %v521 = vadd.f32 0.0, %v520
        %v522 = vpop.f32.mrb[0].mxu0
        %v523 = vadd.f32 0.0, %v522
        %524 = vmatprep.mubr.bf16.mxu0 0
        %525 = vmatmul.mubr.bf16.gmra.mrb[0].mxu0 %v460
        %v526 = vpop.f32.mrb[0].mxu0
        %v527 = vadd.f32 0.0, %v526
        %v528 = vpop.f32.mrb[0].mxu0
        %v529 = vadd.f32 0.0, %v528
        %v530 = vpop.f32.mrb[0].mxu0
        %v531 = vpop.f32.mrb[0].mxu0
        %532 = vdwg.mxu0
        %v540 = vunpack.c.l.b16 %v387
        %v541 = vunpack.c.l.b16 %v388
        %v542 = vunpack.c.l.b16 %v389
        %v543 = vunpack.c.l.b16 %v390
        %v544 = vunpack.c.l.b16 %v391
        %v545 = vunpack.c.l.b16 %v392
        %v546 = vunpack.c.l.b16 %v393
        %v547 = vpack.c.b16 %v541, %v540
        %v548 = vpack.c.b16 %v543, %v542
        %v549 = vpack.c.b16 %v545, %v544
        %v550 = vpack.c.b16 %v546, %v546
        %v555 = vunpack.c.l.b16 %v394
        %v556 = vunpack.c.h.b16 %v394
        %v557 = vunpack.c.l.b16 %v395
        %v558 = vunpack.c.h.b16 %v395
        %v559 = vunpack.c.l.b16 %v396
        %v560 = vunpack.c.h.b16 %v396
        %v561 = vunpack.c.l.b16 %v397
        %v562 = vunpack.c.h.b16 %v397
        %v563 = vpack.c.b16 %v557, %v555
        %v564 = vpack.c.b16 %v558, %v556
        %v565 = vpack.c.b16 %v561, %v559
        %v566 = vpack.c.b16 %v562, %v560
        %v572 = vsel %vm449, %v547, 0
        %v575 = vsel %vm449, %v548, 0
        %v578 = vsel %vm449, %v549, 0
        %v581 = vsel %vm449, %v550, 0
        %583 = vmatprep.subr.bf16.mxu0 %v564
        %584 = vmatpush1.bf16.msra.mxu0 %v563
        %585 = vmatprep.subr.bf16.mxu0 %v566
        %586 = vmatpush1.bf16.msra.mxu0 %v565
        %587 = vmatprep.subr.bf16.mxu0 0
        %588 = vmatpush1.bf16.msra.mxu0 0
        %589 = vmatprep.subr.bf16.mxu0 0
        %590 = vmatpush1.bf16.msra.mxu0 0
        %591 = vmatprep.subr.bf16.mxu0 0
        %592 = vmatpush1.bf16.msra.mxu0 0
        %593 = vmatprep.subr.bf16.mxu0 0
        %594 = vmatpush1.bf16.msra.mxu0 0
        %595 = vmatprep.subr.bf16.mxu0 0
        %596 = vmatpush1.bf16.msra.mxu0 0
        %597 = vmatprep.subr.bf16.mxu0 0
        %598 = vmatpush1.bf16.msra.mxu0 0
        %599 = vmatprep.subr.bf16.mxu0 0
        %600 = vmatpush1.bf16.msra.mxu0 0
        %601 = vmatprep.subr.bf16.mxu0 0
        %602 = vmatpush1.bf16.msra.mxu0 0
        %603 = vmatprep.subr.bf16.mxu0 0
        %604 = vmatpush1.bf16.msra.mxu0 0
        %605 = vmatprep.subr.bf16.mxu0 0
        %606 = vmatpush1.bf16.msra.mxu0 0
        %607 = vmatprep.subr.bf16.mxu0 0
        %608 = vmatpush1.bf16.msra.mxu0 0
        %609 = vmatprep.subr.bf16.mxu0 0
        %610 = vmatpush1.bf16.msra.mxu0 0
        %611 = vmatprep.subr.bf16.mxu0 0
        %612 = vmatpush1.bf16.msra.mxu0 0
        %613 = vmatprep.subr.bf16.mxu0 0
        %614 = vmatpush1.bf16.msra.mxu0 0
        %615 = vmatprep.mubr.bf16.mxu0 0
        %616 = vmatmul.mubr.bf16.gmra.mrb[0].mxu0 %v572
        %v617 = vpop.f32.mrb[0].mxu0
        %v618 = vadd.f32 %v497, %v617
        %v619 = vpop.f32.mrb[0].mxu0
        %v620 = vadd.f32 %v499, %v619
        %v621 = vpop.f32.mrb[0].mxu0
        %v622 = vadd.f32 %v501, %v621
        %v623 = vpop.f32.mrb[0].mxu0
        %v624 = vadd.f32 %v503, %v623
        %625 = vmatprep.mubr.bf16.mxu0 0
        %626 = vmatmul.mubr.bf16.gmra.mrb[0].mxu0 %v575
        %v627 = vpop.f32.mrb[0].mxu0
        %v628 = vadd.f32 %v507, %v627
        %v629 = vpop.f32.mrb[0].mxu0
        %v630 = vadd.f32 %v509, %v629
        %v631 = vpop.f32.mrb[0].mxu0
        %v632 = vadd.f32 %v511, %v631
        %v633 = vpop.f32.mrb[0].mxu0
        %v634 = vadd.f32 %v513, %v633
        %635 = vmatprep.mubr.bf16.mxu0 0
        %636 = vmatmul.mubr.bf16.gmra.mrb[0].mxu0 %v578
        %v637 = vpop.f32.mrb[0].mxu0
        %v638 = vadd.f32 %v517, %v637
        %v639 = vpop.f32.mrb[0].mxu0
        %v640 = vadd.f32 %v519, %v639
        %v641 = vpop.f32.mrb[0].mxu0
        %v642 = vadd.f32 %v521, %v641
        %v643 = vpop.f32.mrb[0].mxu0
        %v644 = vadd.f32 %v523, %v643
        %645 = vmatprep.mubr.bf16.mxu0 0
        %646 = vmatmul.mubr.bf16.gmra.mrb[0].mxu0 %v581
        %v647 = vpop.f32.mrb[0].mxu0
        %v648 = vadd.f32 %v527, %v647
        %v649 = vpop.f32.mrb[0].mxu0
        %v650 = vadd.f32 %v529, %v649
        %v651 = vpop.f32.mrb[0].mxu0
        %v652 = vpop.f32.mrb[0].mxu0
        %653 = vdwg.mxu0
        %s654 = scalar_lea.vmem %s384, 64
        %v655 = vld [vmem:[%s654] sm:$0xf]
        %v656 = vld [vmem:[%s654 + $0x4] sm:$0xf]
        %v657 = vld [vmem:[%s654 + $0x8] sm:$0xf]
        %v658 = vld [vmem:[%s654 + $0xc] sm:$0xf]
        %v659 = vld [vmem:[%s654 + $0x10] sm:$0xf]
        %v660 = vld [vmem:[%s654 + $0x14] sm:$0xf]
        %v661 = vld [vmem:[%s654 + $0x18] sm:$0xf]
        %s662 = scalar_lea.vmem %s1, 64
        %v663 = vld [vmem:[%s662] sm:$0xff]
        %v664 = vld [vmem:[%s662 + $0x8] sm:$0xff]
        %v665 = vld [vmem:[%s662 + $0x10] sm:$0xff]
        %v666 = vld [vmem:[%s662 + $0x18] sm:$0xff]
        %v674 = vunpack.c.l.b16 %v655
        %v675 = vunpack.c.l.b16 %v656
        %v676 = vunpack.c.l.b16 %v657
        %v677 = vunpack.c.l.b16 %v658
        %v678 = vunpack.c.l.b16 %v659
        %v679 = vunpack.c.l.b16 %v660
        %v680 = vunpack.c.l.b16 %v661
        %v681 = vpack.c.b16 %v675, %v674
        %v682 = vpack.c.b16 %v677, %v676
        %v683 = vpack.c.b16 %v679, %v678
        %v684 = vpack.c.b16 %v680, %v680
        %v689 = vunpack.c.l.b16 %v663
        %v690 = vunpack.c.h.b16 %v663
        %v691 = vunpack.c.l.b16 %v664
        %v692 = vunpack.c.h.b16 %v664
        %v693 = vunpack.c.l.b16 %v665
        %v694 = vunpack.c.h.b16 %v665
        %v695 = vunpack.c.l.b16 %v666
        %v696 = vunpack.c.h.b16 %v666
        %v697 = vpack.c.b16 %v691, %v689
        %v698 = vpack.c.b16 %v692, %v690
        %v699 = vpack.c.b16 %v695, %v693
        %v700 = vpack.c.b16 %v696, %v694
        %v706 = vsel %vm449, %v681, 0
        %v709 = vsel %vm449, %v682, 0
        %v712 = vsel %vm449, %v683, 0
        %v715 = vsel %vm449, %v684, 0
        %717 = vmatprep.subr.bf16.mxu0 %v698
        %718 = vmatpush1.bf16.msra.mxu0 %v697
        %719 = vmatprep.subr.bf16.mxu0 %v700
        %720 = vmatpush1.bf16.msra.mxu0 %v699
        %721 = vmatprep.subr.bf16.mxu0 0
        %722 = vmatpush1.bf16.msra.mxu0 0
        %723 = vmatprep.subr.bf16.mxu0 0
        %724 = vmatpush1.bf16.msra.mxu0 0
        %725 = vmatprep.subr.bf16.mxu0 0
        %726 = vmatpush1.bf16.msra.mxu0 0
        %727 = vmatprep.subr.bf16.mxu0 0
        %728 = vmatpush1.bf16.msra.mxu0 0
        %729 = vmatprep.subr.bf16.mxu0 0
        %730 = vmatpush1.bf16.msra.mxu0 0
        %731 = vmatprep.subr.bf16.mxu0 0
        %732 = vmatpush1.bf16.msra.mxu0 0
        %733 = vmatprep.subr.bf16.mxu0 0
        %734 = vmatpush1.bf16.msra.mxu0 0
        %735 = vmatprep.subr.bf16.mxu0 0
        %736 = vmatpush1.bf16.msra.mxu0 0
        %737 = vmatprep.subr.bf16.mxu0 0
        %738 = vmatpush1.bf16.msra.mxu0 0
        %739 = vmatprep.subr.bf16.mxu0 0
        %740 = vmatpush1.bf16.msra.mxu0 0
        %741 = vmatprep.subr.bf16.mxu0 0
        %742 = vmatpush1.bf16.msra.mxu0 0
        %743 = vmatprep.subr.bf16.mxu0 0
        %744 = vmatpush1.bf16.msra.mxu0 0
        %745 = vmatprep.subr.bf16.mxu0 0
        %746 = vmatpush1.bf16.msra.mxu0 0
        %747 = vmatprep.subr.bf16.mxu0 0
        %748 = vmatpush1.bf16.msra.mxu0 0
        %749 = vmatprep.mubr.bf16.mxu0 0
        %750 = vmatmul.mubr.bf16.gmra.mrb[0].mxu0 %v706
        %v751 = vpop.f32.mrb[0].mxu0
        %v752 = vadd.f32 0.0, %v751
        %v753 = vpop.f32.mrb[0].mxu0
        %v754 = vadd.f32 0.0, %v753
        %v755 = vpop.f32.mrb[0].mxu0
        %v756 = vadd.f32 0.0, %v755
        %v757 = vpop.f32.mrb[0].mxu0
        %v758 = vadd.f32 0.0, %v757
        %759 = vmatprep.mubr.bf16.mxu0 0
        %760 = vmatmul.mubr.bf16.gmra.mrb[0].mxu0 %v709
        %v761 = vpop.f32.mrb[0].mxu0
        %v762 = vadd.f32 0.0, %v761
        %v763 = vpop.f32.mrb[0].mxu0
        %v764 = vadd.f32 0.0, %v763
        %v765 = vpop.f32.mrb[0].mxu0
        %v766 = vadd.f32 0.0, %v765
        %v767 = vpop.f32.mrb[0].mxu0
        %v768 = vadd.f32 0.0, %v767
        %769 = vmatprep.mubr.bf16.mxu0 0
        %770 = vmatmul.mubr.bf16.gmra.mrb[0].mxu0 %v712
        %v771 = vpop.f32.mrb[0].mxu0
        %v772 = vadd.f32 0.0, %v771
        %v773 = vpop.f32.mrb[0].mxu0
        %v774 = vadd.f32 0.0, %v773
        %v775 = vpop.f32.mrb[0].mxu0
        %v776 = vadd.f32 0.0, %v775
        %v777 = vpop.f32.mrb[0].mxu0
        %v778 = vadd.f32 0.0, %v777
        %779 = vmatprep.mubr.bf16.mxu0 0
        %780 = vmatmul.mubr.bf16.gmra.mrb[0].mxu0 %v715
        %v781 = vpop.f32.mrb[0].mxu0
        %v782 = vadd.f32 0.0, %v781
        %v783 = vpop.f32.mrb[0].mxu0
        %v784 = vadd.f32 0.0, %v783
        %v785 = vpop.f32.mrb[0].mxu0
        %v786 = vpop.f32.mrb[0].mxu0
        %787 = vdwg.mxu0
        %v788 = vadd.f32 %v618, %v752
        %v789 = vadd.f32 %v620, %v754
        %v790 = vadd.f32 %v622, %v756
        %v791 = vadd.f32 %v624, %v758
        %v792 = vadd.f32 %v628, %v762
        %v793 = vadd.f32 %v630, %v764
        %v794 = vadd.f32 %v632, %v766
        %v795 = vadd.f32 %v634, %v768
        %v796 = vadd.f32 %v638, %v772
        %v797 = vadd.f32 %v640, %v774
        %v798 = vadd.f32 %v642, %v776
        %v799 = vadd.f32 %v644, %v778
        %v800 = vadd.f32 %v648, %v782
        %v801 = vadd.f32 %v650, %v784
        %s802 = scalar_lea.vmem %s384, 96
        %v803 = vld [vmem:[%s802] sm:$0xf]
        %v804 = vld [vmem:[%s802 + $0x4] sm:$0xf]
        %v805 = vld [vmem:[%s802 + $0x8] sm:$0xf]
        %v806 = vld [vmem:[%s802 + $0xc] sm:$0xf]
        %v807 = vld [vmem:[%s802 + $0x10] sm:$0xf]
        %v808 = vld [vmem:[%s802 + $0x14] sm:$0xf]
        %v809 = vld [vmem:[%s802 + $0x18] sm:$0xf]
        %s810 = scalar_lea.vmem %s1, 96
        %v811 = vld [vmem:[%s810] sm:$0xff]
        %v812 = vld [vmem:[%s810 + $0x8] sm:$0xff]
        %v813 = vld [vmem:[%s810 + $0x10] sm:$0xff]
        %v814 = vld [vmem:[%s810 + $0x18] sm:$0xff]
        %v822 = vunpack.c.l.b16 %v803
        %v823 = vunpack.c.l.b16 %v804
        %v824 = vunpack.c.l.b16 %v805
        %v825 = vunpack.c.l.b16 %v806
        %v826 = vunpack.c.l.b16 %v807
        %v827 = vunpack.c.l.b16 %v808
        %v828 = vunpack.c.l.b16 %v809
        %v829 = vpack.c.b16 %v823, %v822
        %v830 = vpack.c.b16 %v825, %v824
        %v831 = vpack.c.b16 %v827, %v826
        %v832 = vpack.c.b16 %v828, %v828
        %v837 = vunpack.c.l.b16 %v811
        %v838 = vunpack.c.h.b16 %v811
        %v839 = vunpack.c.l.b16 %v812
        %v840 = vunpack.c.h.b16 %v812
        %v841 = vunpack.c.l.b16 %v813
        %v842 = vunpack.c.h.b16 %v813
        %v843 = vunpack.c.l.b16 %v814
        %v844 = vunpack.c.h.b16 %v814
        %v845 = vpack.c.b16 %v839, %v837
        %v846 = vpack.c.b16 %v840, %v838
        %v847 = vpack.c.b16 %v843, %v841
        %v848 = vpack.c.b16 %v844, %v842
        %v854 = vsel %vm449, %v829, 0
        %v857 = vsel %vm449, %v830, 0
        %v860 = vsel %vm449, %v831, 0
        %v863 = vsel %vm449, %v832, 0
        %865 = vmatprep.subr.bf16.mxu0 %v846
        %866 = vmatpush1.bf16.msra.mxu0 %v845
        %867 = vmatprep.subr.bf16.mxu0 %v848
        %868 = vmatpush1.bf16.msra.mxu0 %v847
        %869 = vmatprep.subr.bf16.mxu0 0
        %870 = vmatpush1.bf16.msra.mxu0 0
        %871 = vmatprep.subr.bf16.mxu0 0
        %872 = vmatpush1.bf16.msra.mxu0 0
        %873 = vmatprep.subr.bf16.mxu0 0
        %874 = vmatpush1.bf16.msra.mxu0 0
        %875 = vmatprep.subr.bf16.mxu0 0
        %876 = vmatpush1.bf16.msra.mxu0 0
        %877 = vmatprep.subr.bf16.mxu0 0
        %878 = vmatpush1.bf16.msra.mxu0 0
        %879 = vmatprep.subr.bf16.mxu0 0
        %880 = vmatpush1.bf16.msra.mxu0 0
        %881 = vmatprep.subr.bf16.mxu0 0
        %882 = vmatpush1.bf16.msra.mxu0 0
        %883 = vmatprep.subr.bf16.mxu0 0
        %884 = vmatpush1.bf16.msra.mxu0 0
        %885 = vmatprep.subr.bf16.mxu0 0
        %886 = vmatpush1.bf16.msra.mxu0 0
        %887 = vmatprep.subr.bf16.mxu0 0
        %888 = vmatpush1.bf16.msra.mxu0 0
        %889 = vmatprep.subr.bf16.mxu0 0
        %890 = vmatpush1.bf16.msra.mxu0 0
        %891 = vmatprep.subr.bf16.mxu0 0
        %892 = vmatpush1.bf16.msra.mxu0 0
        %893 = vmatprep.subr.bf16.mxu0 0
        %894 = vmatpush1.bf16.msra.mxu0 0
        %895 = vmatprep.subr.bf16.mxu0 0
        %896 = vmatpush1.bf16.msra.mxu0 0
        %897 = vmatprep.mubr.bf16.mxu0 0
        %898 = vmatmul.mubr.bf16.gmra.mrb[0].mxu0 %v854
        %v899 = vpop.f32.mrb[0].mxu0
        %v900 = vadd.f32 0.0, %v899
        %v901 = vpop.f32.mrb[0].mxu0
        %v902 = vadd.f32 0.0, %v901
        %v903 = vpop.f32.mrb[0].mxu0
        %v904 = vadd.f32 0.0, %v903
        %v905 = vpop.f32.mrb[0].mxu0
        %v906 = vadd.f32 0.0, %v905
        %907 = vmatprep.mubr.bf16.mxu0 0
        %908 = vmatmul.mubr.bf16.gmra.mrb[0].mxu0 %v857
        %v909 = vpop.f32.mrb[0].mxu0
        %v910 = vadd.f32 0.0, %v909
        %v911 = vpop.f32.mrb[0].mxu0
        %v912 = vadd.f32 0.0, %v911
        %v913 = vpop.f32.mrb[0].mxu0
        %v914 = vadd.f32 0.0, %v913
        %v915 = vpop.f32.mrb[0].mxu0
        %v916 = vadd.f32 0.0, %v915
        %917 = vmatprep.mubr.bf16.mxu0 0
        %918 = vmatmul.mubr.bf16.gmra.mrb[0].mxu0 %v860
        %v919 = vpop.f32.mrb[0].mxu0
        %v920 = vadd.f32 0.0, %v919
        %v921 = vpop.f32.mrb[0].mxu0
        %v922 = vadd.f32 0.0, %v921
        %v923 = vpop.f32.mrb[0].mxu0
        %v924 = vadd.f32 0.0, %v923
        %v925 = vpop.f32.mrb[0].mxu0
        %v926 = vadd.f32 0.0, %v925
        %927 = vmatprep.mubr.bf16.mxu0 0
        %928 = vmatmul.mubr.bf16.gmra.mrb[0].mxu0 %v863
        %v929 = vpop.f32.mrb[0].mxu0
        %v930 = vadd.f32 0.0, %v929
        %v931 = vpop.f32.mrb[0].mxu0
        %v932 = vadd.f32 0.0, %v931
        %v933 = vpop.f32.mrb[0].mxu0
        %v934 = vpop.f32.mrb[0].mxu0
        %935 = vdwg.mxu0
        %v936 = vadd.f32 %v788, %v900
        %v937 = vadd.f32 %v789, %v902
        %v938 = vadd.f32 %v790, %v904
        %v939 = vadd.f32 %v791, %v906
        %v940 = vadd.f32 %v792, %v910
        %v941 = vadd.f32 %v793, %v912
        %v942 = vadd.f32 %v794, %v914
        %v943 = vadd.f32 %v795, %v916
        %v944 = vadd.f32 %v796, %v920
        %v945 = vadd.f32 %v797, %v922
        %v946 = vadd.f32 %v798, %v924
        %v947 = vadd.f32 %v799, %v926
        %v948 = vadd.f32 %v800, %v930
        %v949 = vadd.f32 %v801, %v932
        %v950 = vld [vmem:[%s384 + $0x4] sm:$0xf]
        %v951 = vld [vmem:[%s384 + $0x8] sm:$0xf]
        %v952 = vld [vmem:[%s384 + $0xc] sm:$0xf]
        %v953 = vld [vmem:[%s384 + $0x10] sm:$0xf]
        %v954 = vld [vmem:[%s384 + $0x14] sm:$0xf]
        %v955 = vld [vmem:[%s384 + $0x18] sm:$0xf]
        %v956 = vld [vmem:[%s384 + $0x1c] sm:$0xf]
        %s957 = scalar_lea.vmem %s1, 128
        %v958 = vld [vmem:[%s957] sm:$0xff]
        %v959 = vld [vmem:[%s957 + $0x8] sm:$0xff]
        %v960 = vld [vmem:[%s957 + $0x10] sm:$0xff]
        %v961 = vld [vmem:[%s957 + $0x18] sm:$0xff]
        %v969 = vunpack.c.l.b16 %v950
        %v970 = vunpack.c.l.b16 %v951
        %v971 = vunpack.c.l.b16 %v952
        %v972 = vunpack.c.l.b16 %v953
        %v973 = vunpack.c.l.b16 %v954
        %v974 = vunpack.c.l.b16 %v955
        %v975 = vunpack.c.l.b16 %v956
        %v976 = vpack.c.b16 %v970, %v969
        %v977 = vpack.c.b16 %v972, %v971
        %v978 = vpack.c.b16 %v974, %v973
        %v979 = vpack.c.b16 %v975, %v975
        %v984 = vunpack.c.l.b16 %v958
        %v985 = vunpack.c.h.b16 %v958
        %v986 = vunpack.c.l.b16 %v959
        %v987 = vunpack.c.h.b16 %v959
        %v988 = vunpack.c.l.b16 %v960
        %v989 = vunpack.c.h.b16 %v960
        %v990 = vunpack.c.l.b16 %v961
        %v991 = vunpack.c.h.b16 %v961
        %v992 = vpack.c.b16 %v986, %v984
        %v993 = vpack.c.b16 %v987, %v985
        %v994 = vpack.c.b16 %v990, %v988
        %v995 = vpack.c.b16 %v991, %v989
        %v1001 = vsel %vm449, %v976, 0
        %v1004 = vsel %vm449, %v977, 0
        %v1007 = vsel %vm449, %v978, 0
        %v1010 = vsel %vm449, %v979, 0
        %1012 = vmatprep.subr.bf16.mxu0 %v993
        %1013 = vmatpush1.bf16.msra.mxu0 %v992
        %1014 = vmatprep.subr.bf16.mxu0 %v995
        %1015 = vmatpush1.bf16.msra.mxu0 %v994
        %1016 = vmatprep.subr.bf16.mxu0 0
        %1017 = vmatpush1.bf16.msra.mxu0 0
        %1018 = vmatprep.subr.bf16.mxu0 0
        %1019 = vmatpush1.bf16.msra.mxu0 0
        %1020 = vmatprep.subr.bf16.mxu0 0
        %1021 = vmatpush1.bf16.msra.mxu0 0
        %1022 = vmatprep.subr.bf16.mxu0 0
        %1023 = vmatpush1.bf16.msra.mxu0 0
        %1024 = vmatprep.subr.bf16.mxu0 0
        %1025 = vmatpush1.bf16.msra.mxu0 0
        %1026 = vmatprep.subr.bf16.mxu0 0
        %1027 = vmatpush1.bf16.msra.mxu0 0
        %1028 = vmatprep.subr.bf16.mxu0 0
        %1029 = vmatpush1.bf16.msra.mxu0 0
        %1030 = vmatprep.subr.bf16.mxu0 0
        %1031 = vmatpush1.bf16.msra.mxu0 0
        %1032 = vmatprep.subr.bf16.mxu0 0
        %1033 = vmatpush1.bf16.msra.mxu0 0
        %1034 = vmatprep.subr.bf16.mxu0 0
        %1035 = vmatpush1.bf16.msra.mxu0 0
        %1036 = vmatprep.subr.bf16.mxu0 0
        %1037 = vmatpush1.bf16.msra.mxu0 0
        %1038 = vmatprep.subr.bf16.mxu0 0
        %1039 = vmatpush1.bf16.msra.mxu0 0
        %1040 = vmatprep.subr.bf16.mxu0 0
        %1041 = vmatpush1.bf16.msra.mxu0 0
        %1042 = vmatprep.subr.bf16.mxu0 0
        %1043 = vmatpush1.bf16.msra.mxu0 0
        %1044 = vmatprep.mubr.bf16.mxu0 0
        %1045 = vmatmul.mubr.bf16.gmra.mrb[0].mxu0 %v1001
        %v1046 = vpop.f32.mrb[0].mxu0
        %v1047 = vadd.f32 0.0, %v1046
        %v1048 = vpop.f32.mrb[0].mxu0
        %v1049 = vadd.f32 0.0, %v1048
        %v1050 = vpop.f32.mrb[0].mxu0
        %v1051 = vadd.f32 0.0, %v1050
        %v1052 = vpop.f32.mrb[0].mxu0
        %v1053 = vadd.f32 0.0, %v1052
        %1054 = vmatprep.mubr.bf16.mxu0 0
        %1055 = vmatmul.mubr.bf16.gmra.mrb[0].mxu0 %v1004
        %v1056 = vpop.f32.mrb[0].mxu0
        %v1057 = vadd.f32 0.0, %v1056
        %v1058 = vpop.f32.mrb[0].mxu0
        %v1059 = vadd.f32 0.0, %v1058
        %v1060 = vpop.f32.mrb[0].mxu0
        %v1061 = vadd.f32 0.0, %v1060
        %v1062 = vpop.f32.mrb[0].mxu0
        %v1063 = vadd.f32 0.0, %v1062
        %1064 = vmatprep.mubr.bf16.mxu0 0
        %1065 = vmatmul.mubr.bf16.gmra.mrb[0].mxu0 %v1007
        %v1066 = vpop.f32.mrb[0].mxu0
        %v1067 = vadd.f32 0.0, %v1066
        %v1068 = vpop.f32.mrb[0].mxu0
        %v1069 = vadd.f32 0.0, %v1068
        %v1070 = vpop.f32.mrb[0].mxu0
        %v1071 = vadd.f32 0.0, %v1070
        %v1072 = vpop.f32.mrb[0].mxu0
        %v1073 = vadd.f32 0.0, %v1072
        %1074 = vmatprep.mubr.bf16.mxu0 0
        %1075 = vmatmul.mubr.bf16.gmra.mrb[0].mxu0 %v1010
        %v1076 = vpop.f32.mrb[0].mxu0
        %v1077 = vadd.f32 0.0, %v1076
        %v1078 = vpop.f32.mrb[0].mxu0
        %v1079 = vadd.f32 0.0, %v1078
        %v1080 = vpop.f32.mrb[0].mxu0
        %v1081 = vpop.f32.mrb[0].mxu0
        %1082 = vdwg.mxu0
        %v1083 = vadd.f32 %v936, %v1047
        %v1084 = vadd.f32 %v937, %v1049
        %v1085 = vadd.f32 %v938, %v1051
        %v1086 = vadd.f32 %v939, %v1053
        %v1087 = vadd.f32 %v940, %v1057
        %v1088 = vadd.f32 %v941, %v1059
        %v1089 = vadd.f32 %v942, %v1061
        %v1090 = vadd.f32 %v943, %v1063
        %v1091 = vadd.f32 %v944, %v1067
        %v1092 = vadd.f32 %v945, %v1069
        %v1093 = vadd.f32 %v946, %v1071
        %v1094 = vadd.f32 %v947, %v1073
        %v1095 = vadd.f32 %v948, %v1077
        %v1096 = vadd.f32 %v949, %v1079
        %1097 = vmatprep.subr.bf16.mxu0 %v442
        %1098 = vmatpush1.bf16.msra.mxu0 %v441
        %1099 = vmatprep.subr.bf16.mxu0 %v444
        %1100 = vmatpush1.bf16.msra.mxu0 %v443
        %1101 = vmatprep.subr.bf16.mxu0 0
        %1102 = vmatpush1.bf16.msra.mxu0 0
        %1103 = vmatprep.subr.bf16.mxu0 0
        %1104 = vmatpush1.bf16.msra.mxu0 0
        %1105 = vmatprep.subr.bf16.mxu0 0
        %1106 = vmatpush1.bf16.msra.mxu0 0
        %1107 = vmatprep.subr.bf16.mxu0 0
        %1108 = vmatpush1.bf16.msra.mxu0 0
        %1109 = vmatprep.subr.bf16.mxu0 0
        %1110 = vmatpush1.bf16.msra.mxu0 0
        %1111 = vmatprep.subr.bf16.mxu0 0
        %1112 = vmatpush1.bf16.msra.mxu0 0
        %1113 = vmatprep.subr.bf16.mxu0 0
        %1114 = vmatpush1.bf16.msra.mxu0 0
        %1115 = vmatprep.subr.bf16.mxu0 0
        %1116 = vmatpush1.bf16.msra.mxu0 0
        %1117 = vmatprep.subr.bf16.mxu0 0
        %1118 = vmatpush1.bf16.msra.mxu0 0
        %1119 = vmatprep.subr.bf16.mxu0 0
        %1120 = vmatpush1.bf16.msra.mxu0 0
        %1121 = vmatprep.subr.bf16.mxu0 0
        %1122 = vmatpush1.bf16.msra.mxu0 0
        %1123 = vmatprep.subr.bf16.mxu0 0
        %1124 = vmatpush1.bf16.msra.mxu0 0
        %1125 = vmatprep.subr.bf16.mxu0 0
        %1126 = vmatpush1.bf16.msra.mxu0 0
        %1127 = vmatprep.subr.bf16.mxu0 0
        %1128 = vmatpush1.bf16.msra.mxu0 0
        %1129 = vmatprep.mubr.bf16.mxu0 0
        %1130 = vmatmul.mubr.bf16.gmra.mrb[0].mxu0 %v706
        %v1131 = vpop.f32.mrb[0].mxu0
        %v1132 = vadd.f32 0.0, %v1131
        %v1133 = vpop.f32.mrb[0].mxu0
        %v1134 = vadd.f32 0.0, %v1133
        %v1135 = vpop.f32.mrb[0].mxu0
        %v1136 = vadd.f32 0.0, %v1135
        %v1137 = vpop.f32.mrb[0].mxu0
        %v1138 = vadd.f32 0.0, %v1137
        %1139 = vmatprep.mubr.bf16.mxu0 0
        %1140 = vmatmul.mubr.bf16.gmra.mrb[0].mxu0 %v709
        %v1141 = vpop.f32.mrb[0].mxu0
        %v1142 = vadd.f32 0.0, %v1141
        %v1143 = vpop.f32.mrb[0].mxu0
        %v1144 = vadd.f32 0.0, %v1143
        %v1145 = vpop.f32.mrb[0].mxu0
        %v1146 = vadd.f32 0.0, %v1145
        %v1147 = vpop.f32.mrb[0].mxu0
        %v1148 = vadd.f32 0.0, %v1147
        %1149 = vmatprep.mubr.bf16.mxu0 0
        %1150 = vmatmul.mubr.bf16.gmra.mrb[0].mxu0 %v712
        %v1151 = vpop.f32.mrb[0].mxu0
        %v1152 = vadd.f32 0.0, %v1151
        %v1153 = vpop.f32.mrb[0].mxu0
        %v1154 = vadd.f32 0.0, %v1153
        %v1155 = vpop.f32.mrb[0].mxu0
        %v1156 = vadd.f32 0.0, %v1155
        %v1157 = vpop.f32.mrb[0].mxu0
        %v1158 = vadd.f32 0.0, %v1157
        %1159 = vmatprep.mubr.bf16.mxu0 0
        %1160 = vmatmul.mubr.bf16.gmra.mrb[0].mxu0 %v715
        %v1161 = vpop.f32.mrb[0].mxu0
        %v1162 = vadd.f32 0.0, %v1161
        %v1163 = vpop.f32.mrb[0].mxu0
        %v1164 = vadd.f32 0.0, %v1163
        %v1165 = vpop.f32.mrb[0].mxu0
        %v1166 = vpop.f32.mrb[0].mxu0
        %1167 = vdwg.mxu0
        %1168 = vmatprep.subr.bf16.mxu0 %v564
        %1169 = vmatpush1.bf16.msra.mxu0 %v563
        %1170 = vmatprep.subr.bf16.mxu0 %v566
        %1171 = vmatpush1.bf16.msra.mxu0 %v565
        %1172 = vmatprep.subr.bf16.mxu0 0
        %1173 = vmatpush1.bf16.msra.mxu0 0
        %1174 = vmatprep.subr.bf16.mxu0 0
        %1175 = vmatpush1.bf16.msra.mxu0 0
        %1176 = vmatprep.subr.bf16.mxu0 0
        %1177 = vmatpush1.bf16.msra.mxu0 0
        %1178 = vmatprep.subr.bf16.mxu0 0
        %1179 = vmatpush1.bf16.msra.mxu0 0
        %1180 = vmatprep.subr.bf16.mxu0 0
        %1181 = vmatpush1.bf16.msra.mxu0 0
        %1182 = vmatprep.subr.bf16.mxu0 0
        %1183 = vmatpush1.bf16.msra.mxu0 0
        %1184 = vmatprep.subr.bf16.mxu0 0
        %1185 = vmatpush1.bf16.msra.mxu0 0
        %1186 = vmatprep.subr.bf16.mxu0 0
        %1187 = vmatpush1.bf16.msra.mxu0 0
        %1188 = vmatprep.subr.bf16.mxu0 0
        %1189 = vmatpush1.bf16.msra.mxu0 0
        %1190 = vmatprep.subr.bf16.mxu0 0
        %1191 = vmatpush1.bf16.msra.mxu0 0
        %1192 = vmatprep.subr.bf16.mxu0 0
        %1193 = vmatpush1.bf16.msra.mxu0 0
        %1194 = vmatprep.subr.bf16.mxu0 0
        %1195 = vmatpush1.bf16.msra.mxu0 0
        %1196 = vmatprep.subr.bf16.mxu0 0
        %1197 = vmatpush1.bf16.msra.mxu0 0
        %1198 = vmatprep.subr.bf16.mxu0 0
        %1199 = vmatpush1.bf16.msra.mxu0 0
        %1200 = vmatprep.mubr.bf16.mxu0 0
        %1201 = vmatmul.mubr.bf16.gmra.mrb[0].mxu0 %v451
        %v1202 = vpop.f32.mrb[0].mxu0
        %v1203 = vadd.f32 %v1132, %v1202
        %v1204 = vpop.f32.mrb[0].mxu0
        %v1205 = vadd.f32 %v1134, %v1204
        %v1206 = vpop.f32.mrb[0].mxu0
        %v1207 = vadd.f32 %v1136, %v1206
        %v1208 = vpop.f32.mrb[0].mxu0
        %v1209 = vadd.f32 %v1138, %v1208
        %1210 = vmatprep.mubr.bf16.mxu0 0
        %1211 = vmatmul.mubr.bf16.gmra.mrb[0].mxu0 %v454
        %v1212 = vpop.f32.mrb[0].mxu0
        %v1213 = vadd.f32 %v1142, %v1212
        %v1214 = vpop.f32.mrb[0].mxu0
        %v1215 = vadd.f32 %v1144, %v1214
        %v1216 = vpop.f32.mrb[0].mxu0
        %v1217 = vadd.f32 %v1146, %v1216
        %v1218 = vpop.f32.mrb[0].mxu0
        %v1219 = vadd.f32 %v1148, %v1218
        %1220 = vmatprep.mubr.bf16.mxu0 0
        %1221 = vmatmul.mubr.bf16.gmra.mrb[0].mxu0 %v457
        %v1222 = vpop.f32.mrb[0].mxu0
        %v1223 = vadd.f32 %v1152, %v1222
        %v1224 = vpop.f32.mrb[0].mxu0
        %v1225 = vadd.f32 %v1154, %v1224
        %v1226 = vpop.f32.mrb[0].mxu0
        %v1227 = vadd.f32 %v1156, %v1226
        %v1228 = vpop.f32.mrb[0].mxu0
        %v1229 = vadd.f32 %v1158, %v1228
        %1230 = vmatprep.mubr.bf16.mxu0 0
        %1231 = vmatmul.mubr.bf16.gmra.mrb[0].mxu0 %v460
        %v1232 = vpop.f32.mrb[0].mxu0
        %v1233 = vadd.f32 %v1162, %v1232
        %v1234 = vpop.f32.mrb[0].mxu0
        %v1235 = vadd.f32 %v1164, %v1234
        %v1236 = vpop.f32.mrb[0].mxu0
        %v1237 = vpop.f32.mrb[0].mxu0
        %1238 = vdwg.mxu0
        %1239 = vmatprep.subr.bf16.mxu0 %v698
        %1240 = vmatpush1.bf16.msra.mxu0 %v697
        %1241 = vmatprep.subr.bf16.mxu0 %v700
        %1242 = vmatpush1.bf16.msra.mxu0 %v699
        %1243 = vmatprep.subr.bf16.mxu0 0
        %1244 = vmatpush1.bf16.msra.mxu0 0
        %1245 = vmatprep.subr.bf16.mxu0 0
        %1246 = vmatpush1.bf16.msra.mxu0 0
        %1247 = vmatprep.subr.bf16.mxu0 0
        %1248 = vmatpush1.bf16.msra.mxu0 0
        %1249 = vmatprep.subr.bf16.mxu0 0
        %1250 = vmatpush1.bf16.msra.mxu0 0
        %1251 = vmatprep.subr.bf16.mxu0 0
        %1252 = vmatpush1.bf16.msra.mxu0 0
        %1253 = vmatprep.subr.bf16.mxu0 0
        %1254 = vmatpush1.bf16.msra.mxu0 0
        %1255 = vmatprep.subr.bf16.mxu0 0
        %1256 = vmatpush1.bf16.msra.mxu0 0
        %1257 = vmatprep.subr.bf16.mxu0 0
        %1258 = vmatpush1.bf16.msra.mxu0 0
        %1259 = vmatprep.subr.bf16.mxu0 0
        %1260 = vmatpush1.bf16.msra.mxu0 0
        %1261 = vmatprep.subr.bf16.mxu0 0
        %1262 = vmatpush1.bf16.msra.mxu0 0
        %1263 = vmatprep.subr.bf16.mxu0 0
        %1264 = vmatpush1.bf16.msra.mxu0 0
        %1265 = vmatprep.subr.bf16.mxu0 0
        %1266 = vmatpush1.bf16.msra.mxu0 0
        %1267 = vmatprep.subr.bf16.mxu0 0
        %1268 = vmatpush1.bf16.msra.mxu0 0
        %1269 = vmatprep.subr.bf16.mxu0 0
        %1270 = vmatpush1.bf16.msra.mxu0 0
        %1271 = vmatprep.mubr.bf16.mxu0 0
        %1272 = vmatmul.mubr.bf16.gmra.mrb[0].mxu0 %v854
        %v1273 = vpop.f32.mrb[0].mxu0
        %v1274 = vadd.f32 0.0, %v1273
        %v1275 = vpop.f32.mrb[0].mxu0
        %v1276 = vadd.f32 0.0, %v1275
        %v1277 = vpop.f32.mrb[0].mxu0
        %v1278 = vadd.f32 0.0, %v1277
        %v1279 = vpop.f32.mrb[0].mxu0
        %v1280 = vadd.f32 0.0, %v1279
        %1281 = vmatprep.mubr.bf16.mxu0 0
        %1282 = vmatmul.mubr.bf16.gmra.mrb[0].mxu0 %v857
        %v1283 = vpop.f32.mrb[0].mxu0
        %v1284 = vadd.f32 0.0, %v1283
        %v1285 = vpop.f32.mrb[0].mxu0
        %v1286 = vadd.f32 0.0, %v1285
        %v1287 = vpop.f32.mrb[0].mxu0
        %v1288 = vadd.f32 0.0, %v1287
        %v1289 = vpop.f32.mrb[0].mxu0
        %v1290 = vadd.f32 0.0, %v1289
        %1291 = vmatprep.mubr.bf16.mxu0 0
        %1292 = vmatmul.mubr.bf16.gmra.mrb[0].mxu0 %v860
        %v1293 = vpop.f32.mrb[0].mxu0
        %v1294 = vadd.f32 0.0, %v1293
        %v1295 = vpop.f32.mrb[0].mxu0
        %v1296 = vadd.f32 0.0, %v1295
        %v1297 = vpop.f32.mrb[0].mxu0
        %v1298 = vadd.f32 0.0, %v1297
        %v1299 = vpop.f32.mrb[0].mxu0
        %v1300 = vadd.f32 0.0, %v1299
        %1301 = vmatprep.mubr.bf16.mxu0 0
        %1302 = vmatmul.mubr.bf16.gmra.mrb[0].mxu0 %v863
        %v1303 = vpop.f32.mrb[0].mxu0
        %v1304 = vadd.f32 0.0, %v1303
        %v1305 = vpop.f32.mrb[0].mxu0
        %v1306 = vadd.f32 0.0, %v1305
        %v1307 = vpop.f32.mrb[0].mxu0
        %v1308 = vpop.f32.mrb[0].mxu0
        %1309 = vdwg.mxu0
        %v1310 = vadd.f32 %v1203, %v1274
        %v1311 = vadd.f32 %v1205, %v1276
        %v1312 = vadd.f32 %v1207, %v1278
        %v1313 = vadd.f32 %v1209, %v1280
        %v1314 = vadd.f32 %v1213, %v1284
        %v1315 = vadd.f32 %v1215, %v1286
        %v1316 = vadd.f32 %v1217, %v1288
        %v1317 = vadd.f32 %v1219, %v1290
        %v1318 = vadd.f32 %v1223, %v1294
        %v1319 = vadd.f32 %v1225, %v1296
        %v1320 = vadd.f32 %v1227, %v1298
        %v1321 = vadd.f32 %v1229, %v1300
        %v1322 = vadd.f32 %v1233, %v1304
        %v1323 = vadd.f32 %v1235, %v1306
        %1324 = vmatprep.subr.bf16.mxu0 %v846
        %1325 = vmatpush1.bf16.msra.mxu0 %v845
        %1326 = vmatprep.subr.bf16.mxu0 %v848
        %1327 = vmatpush1.bf16.msra.mxu0 %v847
        %1328 = vmatprep.subr.bf16.mxu0 0
        %1329 = vmatpush1.bf16.msra.mxu0 0
        %1330 = vmatprep.subr.bf16.mxu0 0
        %1331 = vmatpush1.bf16.msra.mxu0 0
        %1332 = vmatprep.subr.bf16.mxu0 0
        %1333 = vmatpush1.bf16.msra.mxu0 0
        %1334 = vmatprep.subr.bf16.mxu0 0
        %1335 = vmatpush1.bf16.msra.mxu0 0
        %1336 = vmatprep.subr.bf16.mxu0 0
        %1337 = vmatpush1.bf16.msra.mxu0 0
        %1338 = vmatprep.subr.bf16.mxu0 0
        %1339 = vmatpush1.bf16.msra.mxu0 0
        %1340 = vmatprep.subr.bf16.mxu0 0
        %1341 = vmatpush1.bf16.msra.mxu0 0
        %1342 = vmatprep.subr.bf16.mxu0 0
        %1343 = vmatpush1.bf16.msra.mxu0 0
        %1344 = vmatprep.subr.bf16.mxu0 0
        %1345 = vmatpush1.bf16.msra.mxu0 0
        %1346 = vmatprep.subr.bf16.mxu0 0
        %1347 = vmatpush1.bf16.msra.mxu0 0
        %1348 = vmatprep.subr.bf16.mxu0 0
        %1349 = vmatpush1.bf16.msra.mxu0 0
        %1350 = vmatprep.subr.bf16.mxu0 0
        %1351 = vmatpush1.bf16.msra.mxu0 0
        %1352 = vmatprep.subr.bf16.mxu0 0
        %1353 = vmatpush1.bf16.msra.mxu0 0
        %1354 = vmatprep.subr.bf16.mxu0 0
        %1355 = vmatpush1.bf16.msra.mxu0 0
        %1356 = vmatprep.mubr.bf16.mxu0 0
        %1357 = vmatmul.mubr.bf16.gmra.mrb[0].mxu0 %v1001
        %v1358 = vpop.f32.mrb[0].mxu0
        %v1359 = vadd.f32 0.0, %v1358
        %v1360 = vpop.f32.mrb[0].mxu0
        %v1361 = vadd.f32 0.0, %v1360
        %v1362 = vpop.f32.mrb[0].mxu0
        %v1363 = vadd.f32 0.0, %v1362
        %v1364 = vpop.f32.mrb[0].mxu0
        %v1365 = vadd.f32 0.0, %v1364
        %1366 = vmatprep.mubr.bf16.mxu0 0
        %1367 = vmatmul.mubr.bf16.gmra.mrb[0].mxu0 %v1004
        %v1368 = vpop.f32.mrb[0].mxu0
        %v1369 = vadd.f32 0.0, %v1368
        %v1370 = vpop.f32.mrb[0].mxu0
        %v1371 = vadd.f32 0.0, %v1370
        %v1372 = vpop.f32.mrb[0].mxu0
        %v1373 = vadd.f32 0.0, %v1372
        %v1374 = vpop.f32.mrb[0].mxu0
        %v1375 = vadd.f32 0.0, %v1374
        %1376 = vmatprep.mubr.bf16.mxu0 0
        %1377 = vmatmul.mubr.bf16.gmra.mrb[0].mxu0 %v1007
        %v1378 = vpop.f32.mrb[0].mxu0
        %v1379 = vadd.f32 0.0, %v1378
        %v1380 = vpop.f32.mrb[0].mxu0
        %v1381 = vadd.f32 0.0, %v1380
        %v1382 = vpop.f32.mrb[0].mxu0
        %v1383 = vadd.f32 0.0, %v1382
        %v1384 = vpop.f32.mrb[0].mxu0
        %v1385 = vadd.f32 0.0, %v1384
        %1386 = vmatprep.mubr.bf16.mxu0 0
        %1387 = vmatmul.mubr.bf16.gmra.mrb[0].mxu0 %v1010
        %v1388 = vpop.f32.mrb[0].mxu0
        %v1389 = vadd.f32 0.0, %v1388
        %v1390 = vpop.f32.mrb[0].mxu0
        %v1391 = vadd.f32 0.0, %v1390
        %v1392 = vpop.f32.mrb[0].mxu0
        %v1393 = vpop.f32.mrb[0].mxu0
        %1394 = vdwg.mxu0
        %v1395 = vadd.f32 %v1310, %v1359
        %v1396 = vadd.f32 %v1311, %v1361
        %v1397 = vadd.f32 %v1312, %v1363
        %v1398 = vadd.f32 %v1313, %v1365
        %v1399 = vadd.f32 %v1314, %v1369
        %v1400 = vadd.f32 %v1315, %v1371
        %v1401 = vadd.f32 %v1316, %v1373
        %v1402 = vadd.f32 %v1317, %v1375
        %v1403 = vadd.f32 %v1318, %v1379
        %v1404 = vadd.f32 %v1319, %v1381
        %v1405 = vadd.f32 %v1320, %v1383
        %v1406 = vadd.f32 %v1321, %v1385
        %v1407 = vadd.f32 %v1322, %v1389
        %v1408 = vadd.f32 %v1323, %v1391
        %v1409 = vld [vmem:[%s398 + $0x4] sm:$0xf]
        %v1410 = vld [vmem:[%s398 + $0x8] sm:$0xf]
        %v1411 = vld [vmem:[%s398 + $0xc] sm:$0xf]
        %v1412 = vld [vmem:[%s398 + $0x10] sm:$0xf]
        %v1413 = vld [vmem:[%s398 + $0x14] sm:$0xf]
        %v1414 = vld [vmem:[%s398 + $0x18] sm:$0xf]
        %v1415 = vld [vmem:[%s398 + $0x1c] sm:$0xf]
        %v1423 = vunpack.c.l.b16 %v1409
        %v1424 = vunpack.c.l.b16 %v1410
        %v1425 = vunpack.c.l.b16 %v1411
        %v1426 = vunpack.c.l.b16 %v1412
        %v1427 = vunpack.c.l.b16 %v1413
        %v1428 = vunpack.c.l.b16 %v1414
        %v1429 = vunpack.c.l.b16 %v1415
        %v1430 = vpack.c.b16 %v1424, %v1423
        %v1431 = vpack.c.b16 %v1426, %v1425
        %v1432 = vpack.c.b16 %v1428, %v1427
        %v1433 = vpack.c.b16 %v1429, %v1429
        %v1435 = vsel %vm449, %v1430, 0
        %v1438 = vsel %vm449, %v1431, 0
        %v1441 = vsel %vm449, %v1432, 0
        %v1444 = vsel %vm449, %v1433, 0
        %1446 = vmatprep.subr.bf16.mxu0 %v993
        %1447 = vmatpush1.bf16.msra.mxu0 %v992
        %1448 = vmatprep.subr.bf16.mxu0 %v995
        %1449 = vmatpush1.bf16.msra.mxu0 %v994
        %1450 = vmatprep.subr.bf16.mxu0 0
        %1451 = vmatpush1.bf16.msra.mxu0 0
        %1452 = vmatprep.subr.bf16.mxu0 0
        %1453 = vmatpush1.bf16.msra.mxu0 0
        %1454 = vmatprep.subr.bf16.mxu0 0
        %1455 = vmatpush1.bf16.msra.mxu0 0
        %1456 = vmatprep.subr.bf16.mxu0 0
        %1457 = vmatpush1.bf16.msra.mxu0 0
        %1458 = vmatprep.subr.bf16.mxu0 0
        %1459 = vmatpush1.bf16.msra.mxu0 0
        %1460 = vmatprep.subr.bf16.mxu0 0
        %1461 = vmatpush1.bf16.msra.mxu0 0
        %1462 = vmatprep.subr.bf16.mxu0 0
        %1463 = vmatpush1.bf16.msra.mxu0 0
        %1464 = vmatprep.subr.bf16.mxu0 0
        %1465 = vmatpush1.bf16.msra.mxu0 0
        %1466 = vmatprep.subr.bf16.mxu0 0
        %1467 = vmatpush1.bf16.msra.mxu0 0
        %1468 = vmatprep.subr.bf16.mxu0 0
        %1469 = vmatpush1.bf16.msra.mxu0 0
        %1470 = vmatprep.subr.bf16.mxu0 0
        %1471 = vmatpush1.bf16.msra.mxu0 0
        %1472 = vmatprep.subr.bf16.mxu0 0
        %1473 = vmatpush1.bf16.msra.mxu0 0
        %1474 = vmatprep.subr.bf16.mxu0 0
        %1475 = vmatpush1.bf16.msra.mxu0 0
        %1476 = vmatprep.subr.bf16.mxu0 0
        %1477 = vmatpush1.bf16.msra.mxu0 0
        %1478 = vmatprep.mubr.bf16.mxu0 0
        %1479 = vmatmul.mubr.bf16.gmra.mrb[0].mxu0 %v1435
        %v1480 = vpop.f32.mrb[0].mxu0
        %v1481 = vadd.f32 0.0, %v1480
        %v1482 = vpop.f32.mrb[0].mxu0
        %v1483 = vadd.f32 0.0, %v1482
        %v1484 = vpop.f32.mrb[0].mxu0
        %v1485 = vadd.f32 0.0, %v1484
        %v1486 = vpop.f32.mrb[0].mxu0
        %v1487 = vadd.f32 0.0, %v1486
        %1488 = vmatprep.mubr.bf16.mxu0 0
        %1489 = vmatmul.mubr.bf16.gmra.mrb[0].mxu0 %v1438
        %v1490 = vpop.f32.mrb[0].mxu0
        %v1491 = vadd.f32 0.0, %v1490
        %v1492 = vpop.f32.mrb[0].mxu0
        %v1493 = vadd.f32 0.0, %v1492
        %v1494 = vpop.f32.mrb[0].mxu0
        %v1495 = vadd.f32 0.0, %v1494
        %v1496 = vpop.f32.mrb[0].mxu0
        %v1497 = vadd.f32 0.0, %v1496
        %1498 = vmatprep.mubr.bf16.mxu0 0
        %1499 = vmatmul.mubr.bf16.gmra.mrb[0].mxu0 %v1441
        %v1500 = vpop.f32.mrb[0].mxu0
        %v1501 = vadd.f32 0.0, %v1500
        %v1502 = vpop.f32.mrb[0].mxu0
        %v1503 = vadd.f32 0.0, %v1502
        %v1504 = vpop.f32.mrb[0].mxu0
        %v1505 = vadd.f32 0.0, %v1504
        %v1506 = vpop.f32.mrb[0].mxu0
        %v1507 = vadd.f32 0.0, %v1506
        %1508 = vmatprep.mubr.bf16.mxu0 0
        %1509 = vmatmul.mubr.bf16.gmra.mrb[0].mxu0 %v1444
        %v1510 = vpop.f32.mrb[0].mxu0
        %v1511 = vadd.f32 0.0, %v1510
        %v1512 = vpop.f32.mrb[0].mxu0
        %v1513 = vadd.f32 0.0, %v1512
        %v1514 = vpop.f32.mrb[0].mxu0
        %v1515 = vpop.f32.mrb[0].mxu0
        %1516 = vdwg.mxu0
        %v1517 = vadd.f32 %v1395, %v1481
        %v1518 = vadd.f32 %v1396, %v1483
        %v1519 = vadd.f32 %v1397, %v1485
        %v1520 = vadd.f32 %v1398, %v1487
        %v1521 = vadd.f32 %v1399, %v1491
        %v1522 = vadd.f32 %v1400, %v1493
        %v1523 = vadd.f32 %v1401, %v1495
        %v1524 = vadd.f32 %v1402, %v1497
        %v1525 = vadd.f32 %v1403, %v1501
        %v1526 = vadd.f32 %v1404, %v1503
        %v1527 = vadd.f32 %v1405, %v1505
        %v1528 = vadd.f32 %v1406, %v1507
        %v1529 = vadd.f32 %v1407, %v1511
        %v1530 = vadd.f32 %v1408, %v1513
        %v1531 = vmax.f32 %v1083, %v1517
        %v1532 = vmax.f32 %v1084, %v1518
        %v1533 = vmax.f32 %v1085, %v1519
        %v1534 = vmax.f32 %v1086, %v1520
        %v1535 = vmax.f32 %v1087, %v1521
        %v1536 = vmax.f32 %v1088, %v1522
        %v1537 = vmax.f32 %v1089, %v1523
        %v1538 = vmax.f32 %v1090, %v1524
        %v1539 = vmax.f32 %v1091, %v1525
        %v1540 = vmax.f32 %v1092, %v1526
        %v1541 = vmax.f32 %v1093, %v1527
        %v1542 = vmax.f32 %v1094, %v1528
        %v1543 = vmax.f32 %v1095, %v1529
        %v1544 = vmax.f32 %v1096, %v1530
        %v1545 = vmax.f32 %v1531, %v1532
        %v1546 = vmax.f32 %v1533, %v1534
        %v1547 = vmax.f32 %v1535, %v1536
        %v1548 = vmax.f32 %v1537, %v1538
        %v1549 = vmax.f32 %v1539, %v1540
        %v1550 = vmax.f32 %v1541, %v1542
        %v1551 = vmax.f32 %v1543, %v1544
        %v1553 = vlaneseq
        %v1554 = vshrl.u32 %v1553, 7
        %v1555 = vsub.s32 0, %v1554
        %v1556 = vrot.slane %v386, %v1555
        %v1558 = vadd.f32 %v1545, %v1556
        %v1559 = vadd.f32 %v1546, %v1556
        %v1560 = vadd.f32 %v1547, %v1556
        %v1561 = vadd.f32 %v1548, %v1556
        %v1562 = vadd.f32 %v1549, %v1556
        %v1563 = vadd.f32 %v1550, %v1556
        %v1564 = vadd.f32 %v1551, %v1556
        %v1565 = vmax.f32 %v1558, 0.0
        %v1566 = vmax.f32 %v1559, 0.0
        %v1567 = vmax.f32 %v1560, 0.0
        %v1568 = vmax.f32 %v1561, 0.0
        %v1569 = vmax.f32 %v1562, 0.0
        %v1570 = vmax.f32 %v1563, 0.0
        %v1571 = vmax.f32 %v1564, 0.0
        %v1572 = vpack.c.bf16 %v1566, %v1565
        %v1573 = vpack.c.bf16 %v1568, %v1567
        %v1574 = vpack.c.bf16 %v1570, %v1569
        %v1575 = vpack.c.bf16 %v1571, %v1571
        %1576 = vmatprep.subr.bf16.mxu0 %v442
        %1577 = vmatpush1.bf16.msra.mxu0 %v441
        %1578 = vmatprep.subr.bf16.mxu0 %v444
        %1579 = vmatpush1.bf16.msra.mxu0 %v443
        %1580 = vmatprep.subr.bf16.mxu0 0
        %1581 = vmatpush1.bf16.msra.mxu0 0
        %1582 = vmatprep.subr.bf16.mxu0 0
        %1583 = vmatpush1.bf16.msra.mxu0 0
        %1584 = vmatprep.subr.bf16.mxu0 0
        %1585 = vmatpush1.bf16.msra.mxu0 0
        %1586 = vmatprep.subr.bf16.mxu0 0
        %1587 = vmatpush1.bf16.msra.mxu0 0
        %1588 = vmatprep.subr.bf16.mxu0 0
        %1589 = vmatpush1.bf16.msra.mxu0 0
        %1590 = vmatprep.subr.bf16.mxu0 0
        %1591 = vmatpush1.bf16.msra.mxu0 0
        %1592 = vmatprep.subr.bf16.mxu0 0
        %1593 = vmatpush1.bf16.msra.mxu0 0
        %1594 = vmatprep.subr.bf16.mxu0 0
        %1595 = vmatpush1.bf16.msra.mxu0 0
        %1596 = vmatprep.subr.bf16.mxu0 0
        %1597 = vmatpush1.bf16.msra.mxu0 0
        %1598 = vmatprep.subr.bf16.mxu0 0
        %1599 = vmatpush1.bf16.msra.mxu0 0
        %1600 = vmatprep.subr.bf16.mxu0 0
        %1601 = vmatpush1.bf16.msra.mxu0 0
        %1602 = vmatprep.subr.bf16.mxu0 0
        %1603 = vmatpush1.bf16.msra.mxu0 0
        %1604 = vmatprep.subr.bf16.mxu0 0
        %1605 = vmatpush1.bf16.msra.mxu0 0
        %1606 = vmatprep.subr.bf16.mxu0 0
        %1607 = vmatpush1.bf16.msra.mxu0 0
        %1608 = vmatprep.mubr.bf16.mxu0 0
        %1609 = vmatmul.mubr.bf16.gmra.mrb[0].mxu0 %v854
        %v1610 = vpop.f32.mrb[0].mxu0
        %v1611 = vadd.f32 0.0, %v1610
        %v1612 = vpop.f32.mrb[0].mxu0
        %v1613 = vadd.f32 0.0, %v1612
        %v1614 = vpop.f32.mrb[0].mxu0
        %v1615 = vadd.f32 0.0, %v1614
        %v1616 = vpop.f32.mrb[0].mxu0
        %v1617 = vadd.f32 0.0, %v1616
        %1618 = vmatprep.mubr.bf16.mxu0 0
        %1619 = vmatmul.mubr.bf16.gmra.mrb[0].mxu0 %v857
        %v1620 = vpop.f32.mrb[0].mxu0
        %v1621 = vadd.f32 0.0, %v1620
        %v1622 = vpop.f32.mrb[0].mxu0
        %v1623 = vadd.f32 0.0, %v1622
        %v1624 = vpop.f32.mrb[0].mxu0
        %v1625 = vadd.f32 0.0, %v1624
        %v1626 = vpop.f32.mrb[0].mxu0
        %v1627 = vadd.f32 0.0, %v1626
        %1628 = vmatprep.mubr.bf16.mxu0 0
        %1629 = vmatmul.mubr.bf16.gmra.mrb[0].mxu0 %v860
        %v1630 = vpop.f32.mrb[0].mxu0
        %v1631 = vadd.f32 0.0, %v1630
        %v1632 = vpop.f32.mrb[0].mxu0
        %v1633 = vadd.f32 0.0, %v1632
        %v1634 = vpop.f32.mrb[0].mxu0
        %v1635 = vadd.f32 0.0, %v1634
        %v1636 = vpop.f32.mrb[0].mxu0
        %v1637 = vadd.f32 0.0, %v1636
        %1638 = vmatprep.mubr.bf16.mxu0 0
        %1639 = vmatmul.mubr.bf16.gmra.mrb[0].mxu0 %v863
        %v1640 = vpop.f32.mrb[0].mxu0
        %v1641 = vadd.f32 0.0, %v1640
        %v1642 = vpop.f32.mrb[0].mxu0
        %v1643 = vadd.f32 0.0, %v1642
        %v1644 = vpop.f32.mrb[0].mxu0
        %v1645 = vpop.f32.mrb[0].mxu0
        %1646 = vdwg.mxu0
        %1647 = vmatprep.subr.bf16.mxu0 %v564
        %1648 = vmatpush1.bf16.msra.mxu0 %v563
        %1649 = vmatprep.subr.bf16.mxu0 %v566
        %1650 = vmatpush1.bf16.msra.mxu0 %v565
        %1651 = vmatprep.subr.bf16.mxu0 0
        %1652 = vmatpush1.bf16.msra.mxu0 0
        %1653 = vmatprep.subr.bf16.mxu0 0
        %1654 = vmatpush1.bf16.msra.mxu0 0
        %1655 = vmatprep.subr.bf16.mxu0 0
        %1656 = vmatpush1.bf16.msra.mxu0 0
        %1657 = vmatprep.subr.bf16.mxu0 0
        %1658 = vmatpush1.bf16.msra.mxu0 0
        %1659 = vmatprep.subr.bf16.mxu0 0
        %1660 = vmatpush1.bf16.msra.mxu0 0
        %1661 = vmatprep.subr.bf16.mxu0 0
        %1662 = vmatpush1.bf16.msra.mxu0 0
        %1663 = vmatprep.subr.bf16.mxu0 0
        %1664 = vmatpush1.bf16.msra.mxu0 0
        %1665 = vmatprep.subr.bf16.mxu0 0
        %1666 = vmatpush1.bf16.msra.mxu0 0
        %1667 = vmatprep.subr.bf16.mxu0 0
        %1668 = vmatpush1.bf16.msra.mxu0 0
        %1669 = vmatprep.subr.bf16.mxu0 0
        %1670 = vmatpush1.bf16.msra.mxu0 0
        %1671 = vmatprep.subr.bf16.mxu0 0
        %1672 = vmatpush1.bf16.msra.mxu0 0
        %1673 = vmatprep.subr.bf16.mxu0 0
        %1674 = vmatpush1.bf16.msra.mxu0 0
        %1675 = vmatprep.subr.bf16.mxu0 0
        %1676 = vmatpush1.bf16.msra.mxu0 0
        %1677 = vmatprep.subr.bf16.mxu0 0
        %1678 = vmatpush1.bf16.msra.mxu0 0
        %1679 = vmatprep.mubr.bf16.mxu0 0
        %1680 = vmatmul.mubr.bf16.gmra.mrb[0].mxu0 %v706
        %v1681 = vpop.f32.mrb[0].mxu0
        %v1682 = vadd.f32 %v1611, %v1681
        %v1683 = vpop.f32.mrb[0].mxu0
        %v1684 = vadd.f32 %v1613, %v1683
        %v1685 = vpop.f32.mrb[0].mxu0
        %v1686 = vadd.f32 %v1615, %v1685
        %v1687 = vpop.f32.mrb[0].mxu0
        %v1688 = vadd.f32 %v1617, %v1687
        %1689 = vmatprep.mubr.bf16.mxu0 0
        %1690 = vmatmul.mubr.bf16.gmra.mrb[0].mxu0 %v709
        %v1691 = vpop.f32.mrb[0].mxu0
        %v1692 = vadd.f32 %v1621, %v1691
        %v1693 = vpop.f32.mrb[0].mxu0
        %v1694 = vadd.f32 %v1623, %v1693
        %v1695 = vpop.f32.mrb[0].mxu0
        %v1696 = vadd.f32 %v1625, %v1695
        %v1697 = vpop.f32.mrb[0].mxu0
        %v1698 = vadd.f32 %v1627, %v1697
        %1699 = vmatprep.mubr.bf16.mxu0 0
        %1700 = vmatmul.mubr.bf16.gmra.mrb[0].mxu0 %v712
        %v1701 = vpop.f32.mrb[0].mxu0
        %v1702 = vadd.f32 %v1631, %v1701
        %v1703 = vpop.f32.mrb[0].mxu0
        %v1704 = vadd.f32 %v1633, %v1703
        %v1705 = vpop.f32.mrb[0].mxu0
        %v1706 = vadd.f32 %v1635, %v1705
        %v1707 = vpop.f32.mrb[0].mxu0
        %v1708 = vadd.f32 %v1637, %v1707
        %1709 = vmatprep.mubr.bf16.mxu0 0
        %1710 = vmatmul.mubr.bf16.gmra.mrb[0].mxu0 %v715
        %v1711 = vpop.f32.mrb[0].mxu0
        %v1712 = vadd.f32 %v1641, %v1711
        %v1713 = vpop.f32.mrb[0].mxu0
        %v1714 = vadd.f32 %v1643, %v1713
        %v1715 = vpop.f32.mrb[0].mxu0
        %v1716 = vpop.f32.mrb[0].mxu0
        %1717 = vdwg.mxu0
        %1718 = vmatprep.subr.bf16.mxu0 %v698
        %1719 = vmatpush1.bf16.msra.mxu0 %v697
        %1720 = vmatprep.subr.bf16.mxu0 %v700
        %1721 = vmatpush1.bf16.msra.mxu0 %v699
        %1722 = vmatprep.subr.bf16.mxu0 0
        %1723 = vmatpush1.bf16.msra.mxu0 0
        %1724 = vmatprep.subr.bf16.mxu0 0
        %1725 = vmatpush1.bf16.msra.mxu0 0
        %1726 = vmatprep.subr.bf16.mxu0 0
        %1727 = vmatpush1.bf16.msra.mxu0 0
        %1728 = vmatprep.subr.bf16.mxu0 0
        %1729 = vmatpush1.bf16.msra.mxu0 0
        %1730 = vmatprep.subr.bf16.mxu0 0
        %1731 = vmatpush1.bf16.msra.mxu0 0
        %1732 = vmatprep.subr.bf16.mxu0 0
        %1733 = vmatpush1.bf16.msra.mxu0 0
        %1734 = vmatprep.subr.bf16.mxu0 0
        %1735 = vmatpush1.bf16.msra.mxu0 0
        %1736 = vmatprep.subr.bf16.mxu0 0
        %1737 = vmatpush1.bf16.msra.mxu0 0
        %1738 = vmatprep.subr.bf16.mxu0 0
        %1739 = vmatpush1.bf16.msra.mxu0 0
        %1740 = vmatprep.subr.bf16.mxu0 0
        %1741 = vmatpush1.bf16.msra.mxu0 0
        %1742 = vmatprep.subr.bf16.mxu0 0
        %1743 = vmatpush1.bf16.msra.mxu0 0
        %1744 = vmatprep.subr.bf16.mxu0 0
        %1745 = vmatpush1.bf16.msra.mxu0 0
        %1746 = vmatprep.subr.bf16.mxu0 0
        %1747 = vmatpush1.bf16.msra.mxu0 0
        %1748 = vmatprep.subr.bf16.mxu0 0
        %1749 = vmatpush1.bf16.msra.mxu0 0
        %1750 = vmatprep.mubr.bf16.mxu0 0
        %1751 = vmatmul.mubr.bf16.gmra.mrb[0].mxu0 %v1001
        %v1752 = vpop.f32.mrb[0].mxu0
        %v1753 = vadd.f32 0.0, %v1752
        %v1754 = vpop.f32.mrb[0].mxu0
        %v1755 = vadd.f32 0.0, %v1754
        %v1756 = vpop.f32.mrb[0].mxu0
        %v1757 = vadd.f32 0.0, %v1756
        %v1758 = vpop.f32.mrb[0].mxu0
        %v1759 = vadd.f32 0.0, %v1758
        %1760 = vmatprep.mubr.bf16.mxu0 0
        %1761 = vmatmul.mubr.bf16.gmra.mrb[0].mxu0 %v1004
        %v1762 = vpop.f32.mrb[0].mxu0
        %v1763 = vadd.f32 0.0, %v1762
        %v1764 = vpop.f32.mrb[0].mxu0
        %v1765 = vadd.f32 0.0, %v1764
        %v1766 = vpop.f32.mrb[0].mxu0
        %v1767 = vadd.f32 0.0, %v1766
        %v1768 = vpop.f32.mrb[0].mxu0
        %v1769 = vadd.f32 0.0, %v1768
        %1770 = vmatprep.mubr.bf16.mxu0 0
        %1771 = vmatmul.mubr.bf16.gmra.mrb[0].mxu0 %v1007
        %v1772 = vpop.f32.mrb[0].mxu0
        %v1773 = vadd.f32 0.0, %v1772
        %v1774 = vpop.f32.mrb[0].mxu0
        %v1775 = vadd.f32 0.0, %v1774
        %v1776 = vpop.f32.mrb[0].mxu0
        %v1777 = vadd.f32 0.0, %v1776
        %v1778 = vpop.f32.mrb[0].mxu0
        %v1779 = vadd.f32 0.0, %v1778
        %1780 = vmatprep.mubr.bf16.mxu0 0
        %1781 = vmatmul.mubr.bf16.gmra.mrb[0].mxu0 %v1010
        %v1782 = vpop.f32.mrb[0].mxu0
        %v1783 = vadd.f32 0.0, %v1782
        %v1784 = vpop.f32.mrb[0].mxu0
        %v1785 = vadd.f32 0.0, %v1784
        %v1786 = vpop.f32.mrb[0].mxu0
        %v1787 = vpop.f32.mrb[0].mxu0
        %1788 = vdwg.mxu0
        %v1789 = vadd.f32 %v1682, %v1753
        %v1790 = vadd.f32 %v1684, %v1755
        %v1791 = vadd.f32 %v1686, %v1757
        %v1792 = vadd.f32 %v1688, %v1759
        %v1793 = vadd.f32 %v1692, %v1763
        %v1794 = vadd.f32 %v1694, %v1765
        %v1795 = vadd.f32 %v1696, %v1767
        %v1796 = vadd.f32 %v1698, %v1769
        %v1797 = vadd.f32 %v1702, %v1773
        %v1798 = vadd.f32 %v1704, %v1775
        %v1799 = vadd.f32 %v1706, %v1777
        %v1800 = vadd.f32 %v1708, %v1779
        %v1801 = vadd.f32 %v1712, %v1783
        %v1802 = vadd.f32 %v1714, %v1785
        %1803 = vmatprep.subr.bf16.mxu0 %v846
        %1804 = vmatpush1.bf16.msra.mxu0 %v845
        %1805 = vmatprep.subr.bf16.mxu0 %v848
        %1806 = vmatpush1.bf16.msra.mxu0 %v847
        %1807 = vmatprep.subr.bf16.mxu0 0
        %1808 = vmatpush1.bf16.msra.mxu0 0
        %1809 = vmatprep.subr.bf16.mxu0 0
        %1810 = vmatpush1.bf16.msra.mxu0 0
        %1811 = vmatprep.subr.bf16.mxu0 0
        %1812 = vmatpush1.bf16.msra.mxu0 0
        %1813 = vmatprep.subr.bf16.mxu0 0
        %1814 = vmatpush1.bf16.msra.mxu0 0
        %1815 = vmatprep.subr.bf16.mxu0 0
        %1816 = vmatpush1.bf16.msra.mxu0 0
        %1817 = vmatprep.subr.bf16.mxu0 0
        %1818 = vmatpush1.bf16.msra.mxu0 0
        %1819 = vmatprep.subr.bf16.mxu0 0
        %1820 = vmatpush1.bf16.msra.mxu0 0
        %1821 = vmatprep.subr.bf16.mxu0 0
        %1822 = vmatpush1.bf16.msra.mxu0 0
        %1823 = vmatprep.subr.bf16.mxu0 0
        %1824 = vmatpush1.bf16.msra.mxu0 0
        %1825 = vmatprep.subr.bf16.mxu0 0
        %1826 = vmatpush1.bf16.msra.mxu0 0
        %1827 = vmatprep.subr.bf16.mxu0 0
        %1828 = vmatpush1.bf16.msra.mxu0 0
        %1829 = vmatprep.subr.bf16.mxu0 0
        %1830 = vmatpush1.bf16.msra.mxu0 0
        %1831 = vmatprep.subr.bf16.mxu0 0
        %1832 = vmatpush1.bf16.msra.mxu0 0
        %1833 = vmatprep.subr.bf16.mxu0 0
        %1834 = vmatpush1.bf16.msra.mxu0 0
        %1835 = vmatprep.mubr.bf16.mxu0 0
        %1836 = vmatmul.mubr.bf16.gmra.mrb[0].mxu0 %v1435
        %v1837 = vpop.f32.mrb[0].mxu0
        %v1838 = vadd.f32 0.0, %v1837
        %v1839 = vpop.f32.mrb[0].mxu0
        %v1840 = vadd.f32 0.0, %v1839
        %v1841 = vpop.f32.mrb[0].mxu0
        %v1842 = vadd.f32 0.0, %v1841
        %v1843 = vpop.f32.mrb[0].mxu0
        %v1844 = vadd.f32 0.0, %v1843
        %1845 = vmatprep.mubr.bf16.mxu0 0
        %1846 = vmatmul.mubr.bf16.gmra.mrb[0].mxu0 %v1438
        %v1847 = vpop.f32.mrb[0].mxu0
        %v1848 = vadd.f32 0.0, %v1847
        %v1849 = vpop.f32.mrb[0].mxu0
        %v1850 = vadd.f32 0.0, %v1849
        %v1851 = vpop.f32.mrb[0].mxu0
        %v1852 = vadd.f32 0.0, %v1851
        %v1853 = vpop.f32.mrb[0].mxu0
        %v1854 = vadd.f32 0.0, %v1853
        %1855 = vmatprep.mubr.bf16.mxu0 0
        %1856 = vmatmul.mubr.bf16.gmra.mrb[0].mxu0 %v1441
        %v1857 = vpop.f32.mrb[0].mxu0
        %v1858 = vadd.f32 0.0, %v1857
        %v1859 = vpop.f32.mrb[0].mxu0
        %v1860 = vadd.f32 0.0, %v1859
        %v1861 = vpop.f32.mrb[0].mxu0
        %v1862 = vadd.f32 0.0, %v1861
        %v1863 = vpop.f32.mrb[0].mxu0
        %v1864 = vadd.f32 0.0, %v1863
        %1865 = vmatprep.mubr.bf16.mxu0 0
        %1866 = vmatmul.mubr.bf16.gmra.mrb[0].mxu0 %v1444
        %v1867 = vpop.f32.mrb[0].mxu0
        %v1868 = vadd.f32 0.0, %v1867
        %v1869 = vpop.f32.mrb[0].mxu0
        %v1870 = vadd.f32 0.0, %v1869
        %v1871 = vpop.f32.mrb[0].mxu0
        %v1872 = vpop.f32.mrb[0].mxu0
        %1873 = vdwg.mxu0
        %v1874 = vadd.f32 %v1789, %v1838
        %v1875 = vadd.f32 %v1790, %v1840
        %v1876 = vadd.f32 %v1791, %v1842
        %v1877 = vadd.f32 %v1792, %v1844
        %v1878 = vadd.f32 %v1793, %v1848
        %v1879 = vadd.f32 %v1794, %v1850
        %v1880 = vadd.f32 %v1795, %v1852
        %v1881 = vadd.f32 %v1796, %v1854
        %v1882 = vadd.f32 %v1797, %v1858
        %v1883 = vadd.f32 %v1798, %v1860
        %v1884 = vadd.f32 %v1799, %v1862
        %v1885 = vadd.f32 %v1800, %v1864
        %v1886 = vadd.f32 %v1801, %v1868
        %v1887 = vadd.f32 %v1802, %v1870
        %v1888 = vld [vmem:[%s654 + $0x4] sm:$0xf]
        %v1889 = vld [vmem:[%s654 + $0x8] sm:$0xf]
        %v1890 = vld [vmem:[%s654 + $0xc] sm:$0xf]
        %v1891 = vld [vmem:[%s654 + $0x10] sm:$0xf]
        %v1892 = vld [vmem:[%s654 + $0x14] sm:$0xf]
        %v1893 = vld [vmem:[%s654 + $0x18] sm:$0xf]
        %v1894 = vld [vmem:[%s654 + $0x1c] sm:$0xf]
        %v1902 = vunpack.c.l.b16 %v1888
        %v1903 = vunpack.c.l.b16 %v1889
        %v1904 = vunpack.c.l.b16 %v1890
        %v1905 = vunpack.c.l.b16 %v1891
        %v1906 = vunpack.c.l.b16 %v1892
        %v1907 = vunpack.c.l.b16 %v1893
        %v1908 = vunpack.c.l.b16 %v1894
        %v1909 = vpack.c.b16 %v1903, %v1902
        %v1910 = vpack.c.b16 %v1905, %v1904
        %v1911 = vpack.c.b16 %v1907, %v1906
        %v1912 = vpack.c.b16 %v1908, %v1908
        %v1914 = vsel %vm449, %v1909, 0
        %v1917 = vsel %vm449, %v1910, 0
        %v1920 = vsel %vm449, %v1911, 0
        %v1923 = vsel %vm449, %v1912, 0
        %1925 = vmatprep.subr.bf16.mxu0 %v993
        %1926 = vmatpush1.bf16.msra.mxu0 %v992
        %1927 = vmatprep.subr.bf16.mxu0 %v995
        %1928 = vmatpush1.bf16.msra.mxu0 %v994
        %1929 = vmatprep.subr.bf16.mxu0 0
        %1930 = vmatpush1.bf16.msra.mxu0 0
        %1931 = vmatprep.subr.bf16.mxu0 0
        %1932 = vmatpush1.bf16.msra.mxu0 0
        %1933 = vmatprep.subr.bf16.mxu0 0
        %1934 = vmatpush1.bf16.msra.mxu0 0
        %1935 = vmatprep.subr.bf16.mxu0 0
        %1936 = vmatpush1.bf16.msra.mxu0 0
        %1937 = vmatprep.subr.bf16.mxu0 0
        %1938 = vmatpush1.bf16.msra.mxu0 0
        %1939 = vmatprep.subr.bf16.mxu0 0
        %1940 = vmatpush1.bf16.msra.mxu0 0
        %1941 = vmatprep.subr.bf16.mxu0 0
        %1942 = vmatpush1.bf16.msra.mxu0 0
        %1943 = vmatprep.subr.bf16.mxu0 0
        %1944 = vmatpush1.bf16.msra.mxu0 0
        %1945 = vmatprep.subr.bf16.mxu0 0
        %1946 = vmatpush1.bf16.msra.mxu0 0
        %1947 = vmatprep.subr.bf16.mxu0 0
        %1948 = vmatpush1.bf16.msra.mxu0 0
        %1949 = vmatprep.subr.bf16.mxu0 0
        %1950 = vmatpush1.bf16.msra.mxu0 0
        %1951 = vmatprep.subr.bf16.mxu0 0
        %1952 = vmatpush1.bf16.msra.mxu0 0
        %1953 = vmatprep.subr.bf16.mxu0 0
        %1954 = vmatpush1.bf16.msra.mxu0 0
        %1955 = vmatprep.subr.bf16.mxu0 0
        %1956 = vmatpush1.bf16.msra.mxu0 0
        %1957 = vmatprep.mubr.bf16.mxu0 0
        %1958 = vmatmul.mubr.bf16.gmra.mrb[0].mxu0 %v1914
        %v1959 = vpop.f32.mrb[0].mxu0
        %v1960 = vadd.f32 0.0, %v1959
        %v1961 = vpop.f32.mrb[0].mxu0
        %v1962 = vadd.f32 0.0, %v1961
        %v1963 = vpop.f32.mrb[0].mxu0
        %v1964 = vadd.f32 0.0, %v1963
        %v1965 = vpop.f32.mrb[0].mxu0
        %v1966 = vadd.f32 0.0, %v1965
        %1967 = vmatprep.mubr.bf16.mxu0 0
        %1968 = vmatmul.mubr.bf16.gmra.mrb[0].mxu0 %v1917
        %v1969 = vpop.f32.mrb[0].mxu0
        %v1970 = vadd.f32 0.0, %v1969
        %v1971 = vpop.f32.mrb[0].mxu0
        %v1972 = vadd.f32 0.0, %v1971
        %v1973 = vpop.f32.mrb[0].mxu0
        %v1974 = vadd.f32 0.0, %v1973
        %v1975 = vpop.f32.mrb[0].mxu0
        %v1976 = vadd.f32 0.0, %v1975
        %1977 = vmatprep.mubr.bf16.mxu0 0
        %1978 = vmatmul.mubr.bf16.gmra.mrb[0].mxu0 %v1920
        %v1979 = vpop.f32.mrb[0].mxu0
        %v1980 = vadd.f32 0.0, %v1979
        %v1981 = vpop.f32.mrb[0].mxu0
        %v1982 = vadd.f32 0.0, %v1981
        %v1983 = vpop.f32.mrb[0].mxu0
        %v1984 = vadd.f32 0.0, %v1983
        %v1985 = vpop.f32.mrb[0].mxu0
        %v1986 = vadd.f32 0.0, %v1985
        %1987 = vmatprep.mubr.bf16.mxu0 0
        %1988 = vmatmul.mubr.bf16.gmra.mrb[0].mxu0 %v1923
        %v1989 = vpop.f32.mrb[0].mxu0
        %v1990 = vadd.f32 0.0, %v1989
        %v1991 = vpop.f32.mrb[0].mxu0
        %v1992 = vadd.f32 0.0, %v1991
        %v1993 = vpop.f32.mrb[0].mxu0
        %v1994 = vpop.f32.mrb[0].mxu0
        %1995 = vdwg.mxu0
        %v1996 = vadd.f32 %v1874, %v1960
        %v1997 = vadd.f32 %v1875, %v1962
        %v1998 = vadd.f32 %v1876, %v1964
        %v1999 = vadd.f32 %v1877, %v1966
        %v2000 = vadd.f32 %v1878, %v1970
        %v2001 = vadd.f32 %v1879, %v1972
        %v2002 = vadd.f32 %v1880, %v1974
        %v2003 = vadd.f32 %v1881, %v1976
        %v2004 = vadd.f32 %v1882, %v1980
        %v2005 = vadd.f32 %v1883, %v1982
        %v2006 = vadd.f32 %v1884, %v1984
        %v2007 = vadd.f32 %v1885, %v1986
        %v2008 = vadd.f32 %v1886, %v1990
        %v2009 = vadd.f32 %v1887, %v1992
        %2010 = vmatprep.subr.bf16.mxu0 %v442
        %2011 = vmatpush1.bf16.msra.mxu0 %v441
        %2012 = vmatprep.subr.bf16.mxu0 %v444
        %2013 = vmatpush1.bf16.msra.mxu0 %v443
        %2014 = vmatprep.subr.bf16.mxu0 0
        %2015 = vmatpush1.bf16.msra.mxu0 0
        %2016 = vmatprep.subr.bf16.mxu0 0
        %2017 = vmatpush1.bf16.msra.mxu0 0
        %2018 = vmatprep.subr.bf16.mxu0 0
        %2019 = vmatpush1.bf16.msra.mxu0 0
        %2020 = vmatprep.subr.bf16.mxu0 0
        %2021 = vmatpush1.bf16.msra.mxu0 0
        %2022 = vmatprep.subr.bf16.mxu0 0
        %2023 = vmatpush1.bf16.msra.mxu0 0
        %2024 = vmatprep.subr.bf16.mxu0 0
        %2025 = vmatpush1.bf16.msra.mxu0 0
        %2026 = vmatprep.subr.bf16.mxu0 0
        %2027 = vmatpush1.bf16.msra.mxu0 0
        %2028 = vmatprep.subr.bf16.mxu0 0
        %2029 = vmatpush1.bf16.msra.mxu0 0
        %2030 = vmatprep.subr.bf16.mxu0 0
        %2031 = vmatpush1.bf16.msra.mxu0 0
        %2032 = vmatprep.subr.bf16.mxu0 0
        %2033 = vmatpush1.bf16.msra.mxu0 0
        %2034 = vmatprep.subr.bf16.mxu0 0
        %2035 = vmatpush1.bf16.msra.mxu0 0
        %2036 = vmatprep.subr.bf16.mxu0 0
        %2037 = vmatpush1.bf16.msra.mxu0 0
        %2038 = vmatprep.subr.bf16.mxu0 0
        %2039 = vmatpush1.bf16.msra.mxu0 0
        %2040 = vmatprep.subr.bf16.mxu0 0
        %2041 = vmatpush1.bf16.msra.mxu0 0
        %2042 = vmatprep.mubr.bf16.mxu0 0
        %2043 = vmatmul.mubr.bf16.gmra.mrb[0].mxu0 %v1001
        %v2044 = vpop.f32.mrb[0].mxu0
        %v2045 = vadd.f32 0.0, %v2044
        %v2046 = vpop.f32.mrb[0].mxu0
        %v2047 = vadd.f32 0.0, %v2046
        %v2048 = vpop.f32.mrb[0].mxu0
        %v2049 = vadd.f32 0.0, %v2048
        %v2050 = vpop.f32.mrb[0].mxu0
        %v2051 = vadd.f32 0.0, %v2050
        %2052 = vmatprep.mubr.bf16.mxu0 0
        %2053 = vmatmul.mubr.bf16.gmra.mrb[0].mxu0 %v1004
        %v2054 = vpop.f32.mrb[0].mxu0
        %v2055 = vadd.f32 0.0, %v2054
        %v2056 = vpop.f32.mrb[0].mxu0
        %v2057 = vadd.f32 0.0, %v2056
        %v2058 = vpop.f32.mrb[0].mxu0
        %v2059 = vadd.f32 0.0, %v2058
        %v2060 = vpop.f32.mrb[0].mxu0
        %v2061 = vadd.f32 0.0, %v2060
        %2062 = vmatprep.mubr.bf16.mxu0 0
        %2063 = vmatmul.mubr.bf16.gmra.mrb[0].mxu0 %v1007
        %v2064 = vpop.f32.mrb[0].mxu0
        %v2065 = vadd.f32 0.0, %v2064
        %v2066 = vpop.f32.mrb[0].mxu0
        %v2067 = vadd.f32 0.0, %v2066
        %v2068 = vpop.f32.mrb[0].mxu0
        %v2069 = vadd.f32 0.0, %v2068
        %v2070 = vpop.f32.mrb[0].mxu0
        %v2071 = vadd.f32 0.0, %v2070
        %2072 = vmatprep.mubr.bf16.mxu0 0
        %2073 = vmatmul.mubr.bf16.gmra.mrb[0].mxu0 %v1010
        %v2074 = vpop.f32.mrb[0].mxu0
        %v2075 = vadd.f32 0.0, %v2074
        %v2076 = vpop.f32.mrb[0].mxu0
        %v2077 = vadd.f32 0.0, %v2076
        %v2078 = vpop.f32.mrb[0].mxu0
        %v2079 = vpop.f32.mrb[0].mxu0
        %2080 = vdwg.mxu0
        %2081 = vmatprep.subr.bf16.mxu0 %v564
        %2082 = vmatpush1.bf16.msra.mxu0 %v563
        %2083 = vmatprep.subr.bf16.mxu0 %v566
        %2084 = vmatpush1.bf16.msra.mxu0 %v565
        %2085 = vmatprep.subr.bf16.mxu0 0
        %2086 = vmatpush1.bf16.msra.mxu0 0
        %2087 = vmatprep.subr.bf16.mxu0 0
        %2088 = vmatpush1.bf16.msra.mxu0 0
        %2089 = vmatprep.subr.bf16.mxu0 0
        %2090 = vmatpush1.bf16.msra.mxu0 0
        %2091 = vmatprep.subr.bf16.mxu0 0
        %2092 = vmatpush1.bf16.msra.mxu0 0
        %2093 = vmatprep.subr.bf16.mxu0 0
        %2094 = vmatpush1.bf16.msra.mxu0 0
        %2095 = vmatprep.subr.bf16.mxu0 0
        %2096 = vmatpush1.bf16.msra.mxu0 0
        %2097 = vmatprep.subr.bf16.mxu0 0
        %2098 = vmatpush1.bf16.msra.mxu0 0
        %2099 = vmatprep.subr.bf16.mxu0 0
        %2100 = vmatpush1.bf16.msra.mxu0 0
        %2101 = vmatprep.subr.bf16.mxu0 0
        %2102 = vmatpush1.bf16.msra.mxu0 0
        %2103 = vmatprep.subr.bf16.mxu0 0
        %2104 = vmatpush1.bf16.msra.mxu0 0
        %2105 = vmatprep.subr.bf16.mxu0 0
        %2106 = vmatpush1.bf16.msra.mxu0 0
        %2107 = vmatprep.subr.bf16.mxu0 0
        %2108 = vmatpush1.bf16.msra.mxu0 0
        %2109 = vmatprep.subr.bf16.mxu0 0
        %2110 = vmatpush1.bf16.msra.mxu0 0
        %2111 = vmatprep.subr.bf16.mxu0 0
        %2112 = vmatpush1.bf16.msra.mxu0 0
        %2113 = vmatprep.mubr.bf16.mxu0 0
        %2114 = vmatmul.mubr.bf16.gmra.mrb[0].mxu0 %v854
        %v2115 = vpop.f32.mrb[0].mxu0
        %v2116 = vadd.f32 %v2045, %v2115
        %v2117 = vpop.f32.mrb[0].mxu0
        %v2118 = vadd.f32 %v2047, %v2117
        %v2119 = vpop.f32.mrb[0].mxu0
        %v2120 = vadd.f32 %v2049, %v2119
        %v2121 = vpop.f32.mrb[0].mxu0
        %v2122 = vadd.f32 %v2051, %v2121
        %2123 = vmatprep.mubr.bf16.mxu0 0
        %2124 = vmatmul.mubr.bf16.gmra.mrb[0].mxu0 %v857
        %v2125 = vpop.f32.mrb[0].mxu0
        %v2126 = vadd.f32 %v2055, %v2125
        %v2127 = vpop.f32.mrb[0].mxu0
        %v2128 = vadd.f32 %v2057, %v2127
        %v2129 = vpop.f32.mrb[0].mxu0
        %v2130 = vadd.f32 %v2059, %v2129
        %v2131 = vpop.f32.mrb[0].mxu0
        %v2132 = vadd.f32 %v2061, %v2131
        %2133 = vmatprep.mubr.bf16.mxu0 0
        %2134 = vmatmul.mubr.bf16.gmra.mrb[0].mxu0 %v860
        %v2135 = vpop.f32.mrb[0].mxu0
        %v2136 = vadd.f32 %v2065, %v2135
        %v2137 = vpop.f32.mrb[0].mxu0
        %v2138 = vadd.f32 %v2067, %v2137
        %v2139 = vpop.f32.mrb[0].mxu0
        %v2140 = vadd.f32 %v2069, %v2139
        %v2141 = vpop.f32.mrb[0].mxu0
        %v2142 = vadd.f32 %v2071, %v2141
        %2143 = vmatprep.mubr.bf16.mxu0 0
        %2144 = vmatmul.mubr.bf16.gmra.mrb[0].mxu0 %v863
        %v2145 = vpop.f32.mrb[0].mxu0
        %v2146 = vadd.f32 %v2075, %v2145
        %v2147 = vpop.f32.mrb[0].mxu0
        %v2148 = vadd.f32 %v2077, %v2147
        %v2149 = vpop.f32.mrb[0].mxu0
        %v2150 = vpop.f32.mrb[0].mxu0
        %2151 = vdwg.mxu0
        %2152 = vmatprep.subr.bf16.mxu0 %v698
        %2153 = vmatpush1.bf16.msra.mxu0 %v697
        %2154 = vmatprep.subr.bf16.mxu0 %v700
        %2155 = vmatpush1.bf16.msra.mxu0 %v699
        %2156 = vmatprep.subr.bf16.mxu0 0
        %2157 = vmatpush1.bf16.msra.mxu0 0
        %2158 = vmatprep.subr.bf16.mxu0 0
        %2159 = vmatpush1.bf16.msra.mxu0 0
        %2160 = vmatprep.subr.bf16.mxu0 0
        %2161 = vmatpush1.bf16.msra.mxu0 0
        %2162 = vmatprep.subr.bf16.mxu0 0
        %2163 = vmatpush1.bf16.msra.mxu0 0
        %2164 = vmatprep.subr.bf16.mxu0 0
        %2165 = vmatpush1.bf16.msra.mxu0 0
        %2166 = vmatprep.subr.bf16.mxu0 0
        %2167 = vmatpush1.bf16.msra.mxu0 0
        %2168 = vmatprep.subr.bf16.mxu0 0
        %2169 = vmatpush1.bf16.msra.mxu0 0
        %2170 = vmatprep.subr.bf16.mxu0 0
        %2171 = vmatpush1.bf16.msra.mxu0 0
        %2172 = vmatprep.subr.bf16.mxu0 0
        %2173 = vmatpush1.bf16.msra.mxu0 0
        %2174 = vmatprep.subr.bf16.mxu0 0
        %2175 = vmatpush1.bf16.msra.mxu0 0
        %2176 = vmatprep.subr.bf16.mxu0 0
        %2177 = vmatpush1.bf16.msra.mxu0 0
        %2178 = vmatprep.subr.bf16.mxu0 0
        %2179 = vmatpush1.bf16.msra.mxu0 0
        %2180 = vmatprep.subr.bf16.mxu0 0
        %2181 = vmatpush1.bf16.msra.mxu0 0
        %2182 = vmatprep.subr.bf16.mxu0 0
        %2183 = vmatpush1.bf16.msra.mxu0 0
        %2184 = vmatprep.mubr.bf16.mxu0 0
        %2185 = vmatmul.mubr.bf16.gmra.mrb[0].mxu0 %v1435
        %v2186 = vpop.f32.mrb[0].mxu0
        %v2187 = vadd.f32 0.0, %v2186
        %v2188 = vpop.f32.mrb[0].mxu0
        %v2189 = vadd.f32 0.0, %v2188
        %v2190 = vpop.f32.mrb[0].mxu0
        %v2191 = vadd.f32 0.0, %v2190
        %v2192 = vpop.f32.mrb[0].mxu0
        %v2193 = vadd.f32 0.0, %v2192
        %2194 = vmatprep.mubr.bf16.mxu0 0
        %2195 = vmatmul.mubr.bf16.gmra.mrb[0].mxu0 %v1438
        %v2196 = vpop.f32.mrb[0].mxu0
        %v2197 = vadd.f32 0.0, %v2196
        %v2198 = vpop.f32.mrb[0].mxu0
        %v2199 = vadd.f32 0.0, %v2198
        %v2200 = vpop.f32.mrb[0].mxu0
        %v2201 = vadd.f32 0.0, %v2200
        %v2202 = vpop.f32.mrb[0].mxu0
        %v2203 = vadd.f32 0.0, %v2202
        %2204 = vmatprep.mubr.bf16.mxu0 0
        %2205 = vmatmul.mubr.bf16.gmra.mrb[0].mxu0 %v1441
        %v2206 = vpop.f32.mrb[0].mxu0
        %v2207 = vadd.f32 0.0, %v2206
        %v2208 = vpop.f32.mrb[0].mxu0
        %v2209 = vadd.f32 0.0, %v2208
        %v2210 = vpop.f32.mrb[0].mxu0
        %v2211 = vadd.f32 0.0, %v2210
        %v2212 = vpop.f32.mrb[0].mxu0
        %v2213 = vadd.f32 0.0, %v2212
        %2214 = vmatprep.mubr.bf16.mxu0 0
        %2215 = vmatmul.mubr.bf16.gmra.mrb[0].mxu0 %v1444
        %v2216 = vpop.f32.mrb[0].mxu0
        %v2217 = vadd.f32 0.0, %v2216
        %v2218 = vpop.f32.mrb[0].mxu0
        %v2219 = vadd.f32 0.0, %v2218
        %v2220 = vpop.f32.mrb[0].mxu0
        %v2221 = vpop.f32.mrb[0].mxu0
        %2222 = vdwg.mxu0
        %v2223 = vadd.f32 %v2116, %v2187
        %v2224 = vadd.f32 %v2118, %v2189
        %v2225 = vadd.f32 %v2120, %v2191
        %v2226 = vadd.f32 %v2122, %v2193
        %v2227 = vadd.f32 %v2126, %v2197
        %v2228 = vadd.f32 %v2128, %v2199
        %v2229 = vadd.f32 %v2130, %v2201
        %v2230 = vadd.f32 %v2132, %v2203
        %v2231 = vadd.f32 %v2136, %v2207
        %v2232 = vadd.f32 %v2138, %v2209
        %v2233 = vadd.f32 %v2140, %v2211
        %v2234 = vadd.f32 %v2142, %v2213
        %v2235 = vadd.f32 %v2146, %v2217
        %v2236 = vadd.f32 %v2148, %v2219
        %2237 = vmatprep.subr.bf16.mxu0 %v846
        %2238 = vmatpush1.bf16.msra.mxu0 %v845
        %2239 = vmatprep.subr.bf16.mxu0 %v848
        %2240 = vmatpush1.bf16.msra.mxu0 %v847
        %2241 = vmatprep.subr.bf16.mxu0 0
        %2242 = vmatpush1.bf16.msra.mxu0 0
        %2243 = vmatprep.subr.bf16.mxu0 0
        %2244 = vmatpush1.bf16.msra.mxu0 0
        %2245 = vmatprep.subr.bf16.mxu0 0
        %2246 = vmatpush1.bf16.msra.mxu0 0
        %2247 = vmatprep.subr.bf16.mxu0 0
        %2248 = vmatpush1.bf16.msra.mxu0 0
        %2249 = vmatprep.subr.bf16.mxu0 0
        %2250 = vmatpush1.bf16.msra.mxu0 0
        %2251 = vmatprep.subr.bf16.mxu0 0
        %2252 = vmatpush1.bf16.msra.mxu0 0
        %2253 = vmatprep.subr.bf16.mxu0 0
        %2254 = vmatpush1.bf16.msra.mxu0 0
        %2255 = vmatprep.subr.bf16.mxu0 0
        %2256 = vmatpush1.bf16.msra.mxu0 0
        %2257 = vmatprep.subr.bf16.mxu0 0
        %2258 = vmatpush1.bf16.msra.mxu0 0
        %2259 = vmatprep.subr.bf16.mxu0 0
        %2260 = vmatpush1.bf16.msra.mxu0 0
        %2261 = vmatprep.subr.bf16.mxu0 0
        %2262 = vmatpush1.bf16.msra.mxu0 0
        %2263 = vmatprep.subr.bf16.mxu0 0
        %2264 = vmatpush1.bf16.msra.mxu0 0
        %2265 = vmatprep.subr.bf16.mxu0 0
        %2266 = vmatpush1.bf16.msra.mxu0 0
        %2267 = vmatprep.subr.bf16.mxu0 0
        %2268 = vmatpush1.bf16.msra.mxu0 0
        %2269 = vmatprep.mubr.bf16.mxu0 0
        %2270 = vmatmul.mubr.bf16.gmra.mrb[0].mxu0 %v1914
        %v2271 = vpop.f32.mrb[0].mxu0
        %v2272 = vadd.f32 0.0, %v2271
        %v2273 = vpop.f32.mrb[0].mxu0
        %v2274 = vadd.f32 0.0, %v2273
        %v2275 = vpop.f32.mrb[0].mxu0
        %v2276 = vadd.f32 0.0, %v2275
        %v2277 = vpop.f32.mrb[0].mxu0
        %v2278 = vadd.f32 0.0, %v2277
        %2279 = vmatprep.mubr.bf16.mxu0 0
        %2280 = vmatmul.mubr.bf16.gmra.mrb[0].mxu0 %v1917
        %v2281 = vpop.f32.mrb[0].mxu0
        %v2282 = vadd.f32 0.0, %v2281
        %v2283 = vpop.f32.mrb[0].mxu0
        %v2284 = vadd.f32 0.0, %v2283
        %v2285 = vpop.f32.mrb[0].mxu0
        %v2286 = vadd.f32 0.0, %v2285
        %v2287 = vpop.f32.mrb[0].mxu0
        %v2288 = vadd.f32 0.0, %v2287
        %2289 = vmatprep.mubr.bf16.mxu0 0
        %2290 = vmatmul.mubr.bf16.gmra.mrb[0].mxu0 %v1920
        %v2291 = vpop.f32.mrb[0].mxu0
        %v2292 = vadd.f32 0.0, %v2291
        %v2293 = vpop.f32.mrb[0].mxu0
        %v2294 = vadd.f32 0.0, %v2293
        %v2295 = vpop.f32.mrb[0].mxu0
        %v2296 = vadd.f32 0.0, %v2295
        %v2297 = vpop.f32.mrb[0].mxu0
        %v2298 = vadd.f32 0.0, %v2297
        %2299 = vmatprep.mubr.bf16.mxu0 0
        %2300 = vmatmul.mubr.bf16.gmra.mrb[0].mxu0 %v1923
        %v2301 = vpop.f32.mrb[0].mxu0
        %v2302 = vadd.f32 0.0, %v2301
        %v2303 = vpop.f32.mrb[0].mxu0
        %v2304 = vadd.f32 0.0, %v2303
        %v2305 = vpop.f32.mrb[0].mxu0
        %v2306 = vpop.f32.mrb[0].mxu0
        %2307 = vdwg.mxu0
        %v2308 = vadd.f32 %v2223, %v2272
        %v2309 = vadd.f32 %v2224, %v2274
        %v2310 = vadd.f32 %v2225, %v2276
        %v2311 = vadd.f32 %v2226, %v2278
        %v2312 = vadd.f32 %v2227, %v2282
        %v2313 = vadd.f32 %v2228, %v2284
        %v2314 = vadd.f32 %v2229, %v2286
        %v2315 = vadd.f32 %v2230, %v2288
        %v2316 = vadd.f32 %v2231, %v2292
        %v2317 = vadd.f32 %v2232, %v2294
        %v2318 = vadd.f32 %v2233, %v2296
        %v2319 = vadd.f32 %v2234, %v2298
        %v2320 = vadd.f32 %v2235, %v2302
        %v2321 = vadd.f32 %v2236, %v2304
        %v2322 = vld [vmem:[%s802 + $0x4] sm:$0xf]
        %v2323 = vld [vmem:[%s802 + $0x8] sm:$0xf]
        %v2324 = vld [vmem:[%s802 + $0xc] sm:$0xf]
        %v2325 = vld [vmem:[%s802 + $0x10] sm:$0xf]
        %v2326 = vld [vmem:[%s802 + $0x14] sm:$0xf]
        %v2327 = vld [vmem:[%s802 + $0x18] sm:$0xf]
        %v2328 = vld [vmem:[%s802 + $0x1c] sm:$0xf]
        %v2336 = vunpack.c.l.b16 %v2322
        %v2337 = vunpack.c.l.b16 %v2323
        %v2338 = vunpack.c.l.b16 %v2324
        %v2339 = vunpack.c.l.b16 %v2325
        %v2340 = vunpack.c.l.b16 %v2326
        %v2341 = vunpack.c.l.b16 %v2327
        %v2342 = vunpack.c.l.b16 %v2328
        %v2343 = vpack.c.b16 %v2337, %v2336
        %v2344 = vpack.c.b16 %v2339, %v2338
        %v2345 = vpack.c.b16 %v2341, %v2340
        %v2346 = vpack.c.b16 %v2342, %v2342
        %v2348 = vsel %vm449, %v2343, 0
        %v2351 = vsel %vm449, %v2344, 0
        %v2354 = vsel %vm449, %v2345, 0
        %v2357 = vsel %vm449, %v2346, 0
        %2359 = vmatprep.subr.bf16.mxu0 %v993
        %2360 = vmatpush1.bf16.msra.mxu0 %v992
        %2361 = vmatprep.subr.bf16.mxu0 %v995
        %2362 = vmatpush1.bf16.msra.mxu0 %v994
        %2363 = vmatprep.subr.bf16.mxu0 0
        %2364 = vmatpush1.bf16.msra.mxu0 0
        %2365 = vmatprep.subr.bf16.mxu0 0
        %2366 = vmatpush1.bf16.msra.mxu0 0
        %2367 = vmatprep.subr.bf16.mxu0 0
        %2368 = vmatpush1.bf16.msra.mxu0 0
        %2369 = vmatprep.subr.bf16.mxu0 0
        %2370 = vmatpush1.bf16.msra.mxu0 0
        %2371 = vmatprep.subr.bf16.mxu0 0
        %2372 = vmatpush1.bf16.msra.mxu0 0
        %2373 = vmatprep.subr.bf16.mxu0 0
        %2374 = vmatpush1.bf16.msra.mxu0 0
        %2375 = vmatprep.subr.bf16.mxu0 0
        %2376 = vmatpush1.bf16.msra.mxu0 0
        %2377 = vmatprep.subr.bf16.mxu0 0
        %2378 = vmatpush1.bf16.msra.mxu0 0
        %2379 = vmatprep.subr.bf16.mxu0 0
        %2380 = vmatpush1.bf16.msra.mxu0 0
        %2381 = vmatprep.subr.bf16.mxu0 0
        %2382 = vmatpush1.bf16.msra.mxu0 0
        %2383 = vmatprep.subr.bf16.mxu0 0
        %2384 = vmatpush1.bf16.msra.mxu0 0
        %2385 = vmatprep.subr.bf16.mxu0 0
        %2386 = vmatpush1.bf16.msra.mxu0 0
        %2387 = vmatprep.subr.bf16.mxu0 0
        %2388 = vmatpush1.bf16.msra.mxu0 0
        %2389 = vmatprep.subr.bf16.mxu0 0
        %2390 = vmatpush1.bf16.msra.mxu0 0
        %2391 = vmatprep.mubr.bf16.mxu0 0
        %2392 = vmatmul.mubr.bf16.gmra.mrb[0].mxu0 %v2348
        %v2393 = vpop.f32.mrb[0].mxu0
        %v2394 = vadd.f32 0.0, %v2393
        %v2395 = vpop.f32.mrb[0].mxu0
        %v2396 = vadd.f32 0.0, %v2395
        %v2397 = vpop.f32.mrb[0].mxu0
        %v2398 = vadd.f32 0.0, %v2397
        %v2399 = vpop.f32.mrb[0].mxu0
        %v2400 = vadd.f32 0.0, %v2399
        %2401 = vmatprep.mubr.bf16.mxu0 0
        %2402 = vmatmul.mubr.bf16.gmra.mrb[0].mxu0 %v2351
        %v2403 = vpop.f32.mrb[0].mxu0
        %v2404 = vadd.f32 0.0, %v2403
        %v2405 = vpop.f32.mrb[0].mxu0
        %v2406 = vadd.f32 0.0, %v2405
        %v2407 = vpop.f32.mrb[0].mxu0
        %v2408 = vadd.f32 0.0, %v2407
        %v2409 = vpop.f32.mrb[0].mxu0
        %v2410 = vadd.f32 0.0, %v2409
        %2411 = vmatprep.mubr.bf16.mxu0 0
        %2412 = vmatmul.mubr.bf16.gmra.mrb[0].mxu0 %v2354
        %v2413 = vpop.f32.mrb[0].mxu0
        %v2414 = vadd.f32 0.0, %v2413
        %v2415 = vpop.f32.mrb[0].mxu0
        %v2416 = vadd.f32 0.0, %v2415
        %v2417 = vpop.f32.mrb[0].mxu0
        %v2418 = vadd.f32 0.0, %v2417
        %v2419 = vpop.f32.mrb[0].mxu0
        %v2420 = vadd.f32 0.0, %v2419
        %2421 = vmatprep.mubr.bf16.mxu0 0
        %2422 = vmatmul.mubr.bf16.gmra.mrb[0].mxu0 %v2357
        %v2423 = vpop.f32.mrb[0].mxu0
        %v2424 = vadd.f32 0.0, %v2423
        %v2425 = vpop.f32.mrb[0].mxu0
        %v2426 = vadd.f32 0.0, %v2425
        %v2427 = vpop.f32.mrb[0].mxu0
        %v2428 = vpop.f32.mrb[0].mxu0
        %2429 = vdwg.mxu0
        %v2430 = vadd.f32 %v2308, %v2394
        %v2431 = vadd.f32 %v2309, %v2396
        %v2432 = vadd.f32 %v2310, %v2398
        %v2433 = vadd.f32 %v2311, %v2400
        %v2434 = vadd.f32 %v2312, %v2404
        %v2435 = vadd.f32 %v2313, %v2406
        %v2436 = vadd.f32 %v2314, %v2408
        %v2437 = vadd.f32 %v2315, %v2410
        %v2438 = vadd.f32 %v2316, %v2414
        %v2439 = vadd.f32 %v2317, %v2416
        %v2440 = vadd.f32 %v2318, %v2418
        %v2441 = vadd.f32 %v2319, %v2420
        %v2442 = vadd.f32 %v2320, %v2424
        %v2443 = vadd.f32 %v2321, %v2426
        %v2444 = vmax.f32 %v1996, %v2430
        %v2445 = vmax.f32 %v1997, %v2431
        %v2446 = vmax.f32 %v1998, %v2432
        %v2447 = vmax.f32 %v1999, %v2433
        %v2448 = vmax.f32 %v2000, %v2434
        %v2449 = vmax.f32 %v2001, %v2435
        %v2450 = vmax.f32 %v2002, %v2436
        %v2451 = vmax.f32 %v2003, %v2437
        %v2452 = vmax.f32 %v2004, %v2438
        %v2453 = vmax.f32 %v2005, %v2439
        %v2454 = vmax.f32 %v2006, %v2440
        %v2455 = vmax.f32 %v2007, %v2441
        %v2456 = vmax.f32 %v2008, %v2442
        %v2457 = vmax.f32 %v2009, %v2443
        %v2458 = vmax.f32 %v2444, %v2445
        %v2459 = vmax.f32 %v2446, %v2447
        %v2460 = vmax.f32 %v2448, %v2449
        %v2461 = vmax.f32 %v2450, %v2451
        %v2462 = vmax.f32 %v2452, %v2453
        %v2463 = vmax.f32 %v2454, %v2455
        %v2464 = vmax.f32 %v2456, %v2457
        %v2465 = vadd.f32 %v2458, %v1556
        %v2466 = vadd.f32 %v2459, %v1556
        %v2467 = vadd.f32 %v2460, %v1556
        %v2468 = vadd.f32 %v2461, %v1556
        %v2469 = vadd.f32 %v2462, %v1556
        %v2470 = vadd.f32 %v2463, %v1556
        %v2471 = vadd.f32 %v2464, %v1556
        %v2472 = vmax.f32 %v2465, 0.0
        %v2473 = vmax.f32 %v2466, 0.0
        %v2474 = vmax.f32 %v2467, 0.0
        %v2475 = vmax.f32 %v2468, 0.0
        %v2476 = vmax.f32 %v2469, 0.0
        %v2477 = vmax.f32 %v2470, 0.0
        %v2478 = vmax.f32 %v2471, 0.0
        %v2479 = vpack.c.bf16 %v2473, %v2472
        %v2480 = vpack.c.bf16 %v2475, %v2474
        %v2481 = vpack.c.bf16 %v2477, %v2476
        %v2482 = vpack.c.bf16 %v2478, %v2478
        %v2483 = vld [vmem:[%s3] sm:$0xff]
        %v2484 = vld [vmem:[%s3 + $0x8] sm:$0xff]
        %v2485 = vld [vmem:[%s3 + $0x10] sm:$0xff]
        %v2486 = vld [vmem:[%s3 + $0x18] sm:$0xff]
        %v2487 = vld [vmem:[%s3 + $0x20] sm:$0xff]
        %v2488 = vld [vmem:[%s3 + $0x28] sm:$0xff]
        %v2489 = vld [vmem:[%s3 + $0x30] sm:$0xff]
        %v2490 = vld [vmem:[%s3 + $0x38] sm:$0xff]
        %v2491 = vld [vmem:[%s3 + $0x40] sm:$0xff]
        %v2492 = vld [vmem:[%s3 + $0x48] sm:$0xff]
        %v2493 = vld [vmem:[%s3 + $0x50] sm:$0xff]
        %v2494 = vld [vmem:[%s3 + $0x58] sm:$0xff]
        %v2495 = vld [vmem:[%s3 + $0x60] sm:$0xff]
        %v2496 = vld [vmem:[%s3 + $0x68] sm:$0xff]
        %v2497 = vld [vmem:[%s3 + $0x70] sm:$0xff]
        %v2498 = vld [vmem:[%s3 + $0x78] sm:$0xff]
        %s2499 = scalar_lea.vmem %s3, 128
        %v2500 = vld [vmem:[%s2499] sm:$0xff]
        %v2501 = vld [vmem:[%s2499 + $0x8] sm:$0xff]
        %v2502 = vld [vmem:[%s2499 + $0x10] sm:$0xff]
        %v2503 = vld [vmem:[%s2499 + $0x18] sm:$0xff]
        %v2504 = vld [vmem:[%s2499 + $0x20] sm:$0xff]
        %v2505 = vld [vmem:[%s2499 + $0x28] sm:$0xff]
        %v2506 = vld [vmem:[%s2499 + $0x30] sm:$0xff]
        %v2507 = vld [vmem:[%s2499 + $0x38] sm:$0xff]
        %v2508 = vld [vmem:[%s2499 + $0x40] sm:$0xff]
        %v2509 = vld [vmem:[%s2499 + $0x48] sm:$0xff]
        %v2510 = vld [vmem:[%s2499 + $0x50] sm:$0xff]
        %v2511 = vld [vmem:[%s2499 + $0x58] sm:$0xff]
        %v2512 = vld [vmem:[%s2499 + $0x60] sm:$0xff]
        %v2513 = vld [vmem:[%s2499 + $0x68] sm:$0xff]
        %v2514 = vld [vmem:[%s2499 + $0x70] sm:$0xff]
        %v2515 = vld [vmem:[%s2499 + $0x78] sm:$0xff]
        %v2532 = vunpack.c.l.b16 %v2500
        %v2533 = vunpack.c.h.b16 %v2500
        %v2534 = vunpack.c.l.b16 %v2501
        %v2535 = vunpack.c.h.b16 %v2501
        %v2536 = vunpack.c.l.b16 %v2502
        %v2537 = vunpack.c.h.b16 %v2502
        %v2538 = vunpack.c.l.b16 %v2503
        %v2539 = vunpack.c.h.b16 %v2503
        %v2540 = vunpack.c.l.b16 %v2504
        %v2541 = vunpack.c.h.b16 %v2504
        %v2542 = vunpack.c.l.b16 %v2505
        %v2543 = vunpack.c.h.b16 %v2505
        %v2544 = vunpack.c.l.b16 %v2506
        %v2545 = vunpack.c.h.b16 %v2506
        %v2546 = vunpack.c.l.b16 %v2507
        %v2547 = vunpack.c.h.b16 %v2507
        %v2548 = vunpack.c.l.b16 %v2508
        %v2549 = vunpack.c.h.b16 %v2508
        %v2550 = vunpack.c.l.b16 %v2509
        %v2551 = vunpack.c.h.b16 %v2509
        %v2552 = vunpack.c.l.b16 %v2510
        %v2553 = vunpack.c.h.b16 %v2510
        %v2554 = vunpack.c.l.b16 %v2511
        %v2555 = vunpack.c.h.b16 %v2511
        %v2556 = vunpack.c.l.b16 %v2512
        %v2557 = vunpack.c.h.b16 %v2512
        %v2558 = vunpack.c.l.b16 %v2513
        %v2559 = vunpack.c.h.b16 %v2513
        %v2560 = vunpack.c.l.b16 %v2514
        %v2561 = vunpack.c.h.b16 %v2514
        %v2562 = vunpack.c.l.b16 %v2515
        %v2563 = vunpack.c.h.b16 %v2515
        %v2564 = vpack.c.b16 %v2534, %v2532
        %v2565 = vpack.c.b16 %v2535, %v2533
        %v2566 = vpack.c.b16 %v2538, %v2536
        %v2567 = vpack.c.b16 %v2539, %v2537
        %v2568 = vpack.c.b16 %v2542, %v2540
        %v2569 = vpack.c.b16 %v2543, %v2541
        %v2570 = vpack.c.b16 %v2546, %v2544
        %v2571 = vpack.c.b16 %v2547, %v2545
        %v2572 = vpack.c.b16 %v2550, %v2548
        %v2573 = vpack.c.b16 %v2551, %v2549
        %v2574 = vpack.c.b16 %v2554, %v2552
        %v2575 = vpack.c.b16 %v2555, %v2553
        %v2576 = vpack.c.b16 %v2558, %v2556
        %v2577 = vpack.c.b16 %v2559, %v2557
        %v2578 = vpack.c.b16 %v2562, %v2560
        %v2579 = vpack.c.b16 %v2563, %v2561
        %2596 = vmatprep.subr.bf16.mxu0 %v2565
        %2597 = vmatpush1.bf16.msra.mxu0 %v2564
        %2598 = vmatprep.subr.bf16.mxu0 %v2567
        %2599 = vmatpush1.bf16.msra.mxu0 %v2566
        %2600 = vmatprep.subr.bf16.mxu0 %v2569
        %2601 = vmatpush1.bf16.msra.mxu0 %v2568
        %2602 = vmatprep.subr.bf16.mxu0 %v2571
        %2603 = vmatpush1.bf16.msra.mxu0 %v2570
        %2604 = vmatprep.subr.bf16.mxu0 %v2573
        %2605 = vmatpush1.bf16.msra.mxu0 %v2572
        %2606 = vmatprep.subr.bf16.mxu0 %v2575
        %2607 = vmatpush1.bf16.msra.mxu0 %v2574
        %2608 = vmatprep.subr.bf16.mxu0 %v2577
        %2609 = vmatpush1.bf16.msra.mxu0 %v2576
        %2610 = vmatprep.subr.bf16.mxu0 %v2579
        %2611 = vmatpush1.bf16.msra.mxu0 %v2578
        %2612 = vmatprep.subr.bf16.mxu0 0
        %2613 = vmatpush1.bf16.msra.mxu0 0
        %2614 = vmatprep.subr.bf16.mxu0 0
        %2615 = vmatpush1.bf16.msra.mxu0 0
        %2616 = vmatprep.subr.bf16.mxu0 0
        %2617 = vmatpush1.bf16.msra.mxu0 0
        %2618 = vmatprep.subr.bf16.mxu0 0
        %2619 = vmatpush1.bf16.msra.mxu0 0
        %2620 = vmatprep.subr.bf16.mxu0 0
        %2621 = vmatpush1.bf16.msra.mxu0 0
        %2622 = vmatprep.subr.bf16.mxu0 0
        %2623 = vmatpush1.bf16.msra.mxu0 0
        %2624 = vmatprep.subr.bf16.mxu0 0
        %2625 = vmatpush1.bf16.msra.mxu0 0
        %2626 = vmatprep.subr.bf16.mxu0 0
        %2627 = vmatpush1.bf16.msra.mxu0 0
        %2628 = vmatprep.mubr.bf16.mxu0 0
        %2629 = vmatmul.mubr.bf16.gmra.mrb[0].mxu0 %v2479
        %v2630 = vpop.f32.mrb[0].mxu0
        %v2631 = vadd.f32 0.0, %v2630
        %v2632 = vpop.f32.mrb[0].mxu0
        %v2633 = vadd.f32 0.0, %v2632
        %v2634 = vpop.f32.mrb[0].mxu0
        %v2635 = vadd.f32 0.0, %v2634
        %v2636 = vpop.f32.mrb[0].mxu0
        %v2637 = vadd.f32 0.0, %v2636
        %2638 = vmatprep.mubr.bf16.mxu0 0
        %2639 = vmatmul.mubr.bf16.gmra.mrb[0].mxu0 %v2480
        %v2640 = vpop.f32.mrb[0].mxu0
        %v2641 = vadd.f32 0.0, %v2640
        %v2642 = vpop.f32.mrb[0].mxu0
        %v2643 = vadd.f32 0.0, %v2642
        %v2644 = vpop.f32.mrb[0].mxu0
        %v2645 = vadd.f32 0.0, %v2644
        %v2646 = vpop.f32.mrb[0].mxu0
        %v2647 = vadd.f32 0.0, %v2646
        %2648 = vmatprep.mubr.bf16.mxu0 0
        %2649 = vmatmul.mubr.bf16.gmra.mrb[0].mxu0 %v2481
        %v2650 = vpop.f32.mrb[0].mxu0
        %v2651 = vadd.f32 0.0, %v2650
        %v2652 = vpop.f32.mrb[0].mxu0
        %v2653 = vadd.f32 0.0, %v2652
        %v2654 = vpop.f32.mrb[0].mxu0
        %v2655 = vpop.f32.mrb[0].mxu0
        %2656 = vdwg.mxu0
        %v2673 = vunpack.c.l.b16 %v2483
        %v2674 = vunpack.c.h.b16 %v2483
        %v2675 = vunpack.c.l.b16 %v2484
        %v2676 = vunpack.c.h.b16 %v2484
        %v2677 = vunpack.c.l.b16 %v2485
        %v2678 = vunpack.c.h.b16 %v2485
        %v2679 = vunpack.c.l.b16 %v2486
        %v2680 = vunpack.c.h.b16 %v2486
        %v2681 = vunpack.c.l.b16 %v2487
        %v2682 = vunpack.c.h.b16 %v2487
        %v2683 = vunpack.c.l.b16 %v2488
        %v2684 = vunpack.c.h.b16 %v2488
        %v2685 = vunpack.c.l.b16 %v2489
        %v2686 = vunpack.c.h.b16 %v2489
        %v2687 = vunpack.c.l.b16 %v2490
        %v2688 = vunpack.c.h.b16 %v2490
        %v2689 = vunpack.c.l.b16 %v2491
        %v2690 = vunpack.c.h.b16 %v2491
        %v2691 = vunpack.c.l.b16 %v2492
        %v2692 = vunpack.c.h.b16 %v2492
        %v2693 = vunpack.c.l.b16 %v2493
        %v2694 = vunpack.c.h.b16 %v2493
        %v2695 = vunpack.c.l.b16 %v2494
        %v2696 = vunpack.c.h.b16 %v2494
        %v2697 = vunpack.c.l.b16 %v2495
        %v2698 = vunpack.c.h.b16 %v2495
        %v2699 = vunpack.c.l.b16 %v2496
        %v2700 = vunpack.c.h.b16 %v2496
        %v2701 = vunpack.c.l.b16 %v2497
        %v2702 = vunpack.c.h.b16 %v2497
        %v2703 = vunpack.c.l.b16 %v2498
        %v2704 = vunpack.c.h.b16 %v2498
        %v2705 = vpack.c.b16 %v2675, %v2673
        %v2706 = vpack.c.b16 %v2676, %v2674
        %v2707 = vpack.c.b16 %v2679, %v2677
        %v2708 = vpack.c.b16 %v2680, %v2678
        %v2709 = vpack.c.b16 %v2683, %v2681
        %v2710 = vpack.c.b16 %v2684, %v2682
        %v2711 = vpack.c.b16 %v2687, %v2685
        %v2712 = vpack.c.b16 %v2688, %v2686
        %v2713 = vpack.c.b16 %v2691, %v2689
        %v2714 = vpack.c.b16 %v2692, %v2690
        %v2715 = vpack.c.b16 %v2695, %v2693
        %v2716 = vpack.c.b16 %v2696, %v2694
        %v2717 = vpack.c.b16 %v2699, %v2697
        %v2718 = vpack.c.b16 %v2700, %v2698
        %v2719 = vpack.c.b16 %v2703, %v2701
        %v2720 = vpack.c.b16 %v2704, %v2702
        %2737 = vmatprep.subr.bf16.mxu0 %v2706
        %2738 = vmatpush1.bf16.msra.mxu0 %v2705
        %2739 = vmatprep.subr.bf16.mxu0 %v2708
        %2740 = vmatpush1.bf16.msra.mxu0 %v2707
        %2741 = vmatprep.subr.bf16.mxu0 %v2710
        %2742 = vmatpush1.bf16.msra.mxu0 %v2709
        %2743 = vmatprep.subr.bf16.mxu0 %v2712
        %2744 = vmatpush1.bf16.msra.mxu0 %v2711
        %2745 = vmatprep.subr.bf16.mxu0 %v2714
        %2746 = vmatpush1.bf16.msra.mxu0 %v2713
        %2747 = vmatprep.subr.bf16.mxu0 %v2716
        %2748 = vmatpush1.bf16.msra.mxu0 %v2715
        %2749 = vmatprep.subr.bf16.mxu0 %v2718
        %2750 = vmatpush1.bf16.msra.mxu0 %v2717
        %2751 = vmatprep.subr.bf16.mxu0 %v2720
        %2752 = vmatpush1.bf16.msra.mxu0 %v2719
        %2753 = vmatprep.subr.bf16.mxu0 0
        %2754 = vmatpush1.bf16.msra.mxu0 0
        %2755 = vmatprep.subr.bf16.mxu0 0
        %2756 = vmatpush1.bf16.msra.mxu0 0
        %2757 = vmatprep.subr.bf16.mxu0 0
        %2758 = vmatpush1.bf16.msra.mxu0 0
        %2759 = vmatprep.subr.bf16.mxu0 0
        %2760 = vmatpush1.bf16.msra.mxu0 0
        %2761 = vmatprep.subr.bf16.mxu0 0
        %2762 = vmatpush1.bf16.msra.mxu0 0
        %2763 = vmatprep.subr.bf16.mxu0 0
        %2764 = vmatpush1.bf16.msra.mxu0 0
        %2765 = vmatprep.subr.bf16.mxu0 0
        %2766 = vmatpush1.bf16.msra.mxu0 0
        %2767 = vmatprep.subr.bf16.mxu0 0
        %2768 = vmatpush1.bf16.msra.mxu0 0
        %2769 = vmatprep.mubr.bf16.mxu0 0
        %2770 = vmatmul.mubr.bf16.gmra.mrb[0].mxu0 %v1572
        %v2771 = vpop.f32.mrb[0].mxu0
        %v2772 = vadd.f32 %v2631, %v2771
        %v2773 = vpop.f32.mrb[0].mxu0
        %v2774 = vadd.f32 %v2633, %v2773
        %v2775 = vpop.f32.mrb[0].mxu0
        %v2776 = vadd.f32 %v2635, %v2775
        %v2777 = vpop.f32.mrb[0].mxu0
        %v2778 = vadd.f32 %v2637, %v2777
        %2779 = vmatprep.mubr.bf16.mxu0 0
        %2780 = vmatmul.mubr.bf16.gmra.mrb[0].mxu0 %v1573
        %v2781 = vpop.f32.mrb[0].mxu0
        %v2782 = vadd.f32 %v2641, %v2781
        %v2783 = vpop.f32.mrb[0].mxu0
        %v2784 = vadd.f32 %v2643, %v2783
        %v2785 = vpop.f32.mrb[0].mxu0
        %v2786 = vadd.f32 %v2645, %v2785
        %v2787 = vpop.f32.mrb[0].mxu0
        %v2788 = vadd.f32 %v2647, %v2787
        %2789 = vmatprep.mubr.bf16.mxu0 0
        %2790 = vmatmul.mubr.bf16.gmra.mrb[0].mxu0 %v1574
        %v2791 = vpop.f32.mrb[0].mxu0
        %v2792 = vadd.f32 %v2651, %v2791
        %v2793 = vpop.f32.mrb[0].mxu0
        %v2794 = vadd.f32 %v2653, %v2793
        %v2795 = vpop.f32.mrb[0].mxu0
        %v2796 = vpop.f32.mrb[0].mxu0
        %2797 = vdwg.mxu0
        %s2798 = scalar_lea.vmem %s3, 256
        %v2799 = vld [vmem:[%s2798] sm:$0xff]
        %v2800 = vld [vmem:[%s2798 + $0x8] sm:$0xff]
        %v2801 = vld [vmem:[%s2798 + $0x10] sm:$0xff]
        %v2802 = vld [vmem:[%s2798 + $0x18] sm:$0xff]
        %v2803 = vld [vmem:[%s2798 + $0x20] sm:$0xff]
        %v2804 = vld [vmem:[%s2798 + $0x28] sm:$0xff]
        %v2805 = vld [vmem:[%s2798 + $0x30] sm:$0xff]
        %v2806 = vld [vmem:[%s2798 + $0x38] sm:$0xff]
        %v2807 = vld [vmem:[%s2798 + $0x40] sm:$0xff]
        %v2808 = vld [vmem:[%s2798 + $0x48] sm:$0xff]
        %v2809 = vld [vmem:[%s2798 + $0x50] sm:$0xff]
        %v2810 = vld [vmem:[%s2798 + $0x58] sm:$0xff]
        %v2811 = vld [vmem:[%s2798 + $0x60] sm:$0xff]
        %v2812 = vld [vmem:[%s2798 + $0x68] sm:$0xff]
        %v2813 = vld [vmem:[%s2798 + $0x70] sm:$0xff]
        %v2814 = vld [vmem:[%s2798 + $0x78] sm:$0xff]
        %vm2818 = vcmask 1043456
        %v2819 = vrot.slane %v1572, 4
        %v2820 = vrot.slane %v1573, 4
        %v2821 = vsel %vm2818, %v2819, %v2820
        %v2822 = vrot.slane %v1574, 4
        %v2823 = vsel %vm2818, %v2820, %v2822
        %v2843 = vunpack.c.l.b16 %v2799
        %v2844 = vunpack.c.h.b16 %v2799
        %v2845 = vunpack.c.l.b16 %v2800
        %v2846 = vunpack.c.h.b16 %v2800
        %v2847 = vunpack.c.l.b16 %v2801
        %v2848 = vunpack.c.h.b16 %v2801
        %v2849 = vunpack.c.l.b16 %v2802
        %v2850 = vunpack.c.h.b16 %v2802
        %v2851 = vunpack.c.l.b16 %v2803
        %v2852 = vunpack.c.h.b16 %v2803
        %v2853 = vunpack.c.l.b16 %v2804
        %v2854 = vunpack.c.h.b16 %v2804
        %v2855 = vunpack.c.l.b16 %v2805
        %v2856 = vunpack.c.h.b16 %v2805
        %v2857 = vunpack.c.l.b16 %v2806
        %v2858 = vunpack.c.h.b16 %v2806
        %v2859 = vunpack.c.l.b16 %v2807
        %v2860 = vunpack.c.h.b16 %v2807
        %v2861 = vunpack.c.l.b16 %v2808
        %v2862 = vunpack.c.h.b16 %v2808
        %v2863 = vunpack.c.l.b16 %v2809
        %v2864 = vunpack.c.h.b16 %v2809
        %v2865 = vunpack.c.l.b16 %v2810
        %v2866 = vunpack.c.h.b16 %v2810
        %v2867 = vunpack.c.l.b16 %v2811
        %v2868 = vunpack.c.h.b16 %v2811
        %v2869 = vunpack.c.l.b16 %v2812
        %v2870 = vunpack.c.h.b16 %v2812
        %v2871 = vunpack.c.l.b16 %v2813
        %v2872 = vunpack.c.h.b16 %v2813
        %v2873 = vunpack.c.l.b16 %v2814
        %v2874 = vunpack.c.h.b16 %v2814
        %v2875 = vpack.c.b16 %v2845, %v2843
        %v2876 = vpack.c.b16 %v2846, %v2844
        %v2877 = vpack.c.b16 %v2849, %v2847
        %v2878 = vpack.c.b16 %v2850, %v2848
        %v2879 = vpack.c.b16 %v2853, %v2851
        %v2880 = vpack.c.b16 %v2854, %v2852
        %v2881 = vpack.c.b16 %v2857, %v2855
        %v2882 = vpack.c.b16 %v2858, %v2856
        %v2883 = vpack.c.b16 %v2861, %v2859
        %v2884 = vpack.c.b16 %v2862, %v2860
        %v2885 = vpack.c.b16 %v2865, %v2863
        %v2886 = vpack.c.b16 %v2866, %v2864
        %v2887 = vpack.c.b16 %v2869, %v2867
        %v2888 = vpack.c.b16 %v2870, %v2868
        %v2889 = vpack.c.b16 %v2873, %v2871
        %v2890 = vpack.c.b16 %v2874, %v2872
        %2907 = vmatprep.subr.bf16.mxu0 %v2876
        %2908 = vmatpush1.bf16.msra.mxu0 %v2875
        %2909 = vmatprep.subr.bf16.mxu0 %v2878
        %2910 = vmatpush1.bf16.msra.mxu0 %v2877
        %2911 = vmatprep.subr.bf16.mxu0 %v2880
        %2912 = vmatpush1.bf16.msra.mxu0 %v2879
        %2913 = vmatprep.subr.bf16.mxu0 %v2882
        %2914 = vmatpush1.bf16.msra.mxu0 %v2881
        %2915 = vmatprep.subr.bf16.mxu0 %v2884
        %2916 = vmatpush1.bf16.msra.mxu0 %v2883
        %2917 = vmatprep.subr.bf16.mxu0 %v2886
        %2918 = vmatpush1.bf16.msra.mxu0 %v2885
        %2919 = vmatprep.subr.bf16.mxu0 %v2888
        %2920 = vmatpush1.bf16.msra.mxu0 %v2887
        %2921 = vmatprep.subr.bf16.mxu0 %v2890
        %2922 = vmatpush1.bf16.msra.mxu0 %v2889
        %2923 = vmatprep.subr.bf16.mxu0 0
        %2924 = vmatpush1.bf16.msra.mxu0 0
        %2925 = vmatprep.subr.bf16.mxu0 0
        %2926 = vmatpush1.bf16.msra.mxu0 0
        %2927 = vmatprep.subr.bf16.mxu0 0
        %2928 = vmatpush1.bf16.msra.mxu0 0
        %2929 = vmatprep.subr.bf16.mxu0 0
        %2930 = vmatpush1.bf16.msra.mxu0 0
        %2931 = vmatprep.subr.bf16.mxu0 0
        %2932 = vmatpush1.bf16.msra.mxu0 0
        %2933 = vmatprep.subr.bf16.mxu0 0
        %2934 = vmatpush1.bf16.msra.mxu0 0
        %2935 = vmatprep.subr.bf16.mxu0 0
        %2936 = vmatpush1.bf16.msra.mxu0 0
        %2937 = vmatprep.subr.bf16.mxu0 0
        %2938 = vmatpush1.bf16.msra.mxu0 0
        %2939 = vmatprep.mubr.bf16.mxu0 0
        %2940 = vmatmul.mubr.bf16.gmra.mrb[0].mxu0 %v2821
        %v2941 = vpop.f32.mrb[0].mxu0
        %v2942 = vadd.f32 0.0, %v2941
        %v2943 = vpop.f32.mrb[0].mxu0
        %v2944 = vadd.f32 0.0, %v2943
        %v2945 = vpop.f32.mrb[0].mxu0
        %v2946 = vadd.f32 0.0, %v2945
        %v2947 = vpop.f32.mrb[0].mxu0
        %v2948 = vadd.f32 0.0, %v2947
        %2949 = vmatprep.mubr.bf16.mxu0 0
        %2950 = vmatmul.mubr.bf16.gmra.mrb[0].mxu0 %v2823
        %v2951 = vpop.f32.mrb[0].mxu0
        %v2952 = vadd.f32 0.0, %v2951
        %v2953 = vpop.f32.mrb[0].mxu0
        %v2954 = vadd.f32 0.0, %v2953
        %v2955 = vpop.f32.mrb[0].mxu0
        %v2956 = vadd.f32 0.0, %v2955
        %v2957 = vpop.f32.mrb[0].mxu0
        %v2958 = vadd.f32 0.0, %v2957
        %2959 = vmatprep.mubr.bf16.mxu0 0
        %2960 = vmatmul.mubr.bf16.gmra.mrb[0].mxu0 %v2822
        %v2961 = vpop.f32.mrb[0].mxu0
        %v2962 = vadd.f32 0.0, %v2961
        %v2963 = vpop.f32.mrb[0].mxu0
        %v2964 = vadd.f32 0.0, %v2963
        %v2965 = vpop.f32.mrb[0].mxu0
        %v2966 = vpop.f32.mrb[0].mxu0
        %2967 = vdwg.mxu0
        %v2968 = vadd.f32 %v2772, %v2942
        %v2969 = vadd.f32 %v2774, %v2944
        %v2970 = vadd.f32 %v2776, %v2946
        %v2971 = vadd.f32 %v2778, %v2948
        %v2972 = vadd.f32 %v2782, %v2952
        %v2973 = vadd.f32 %v2784, %v2954
        %v2974 = vadd.f32 %v2786, %v2956
        %v2975 = vadd.f32 %v2788, %v2958
        %v2976 = vadd.f32 %v2792, %v2962
        %v2977 = vadd.f32 %v2794, %v2964
        %s2978 = scalar_lea.vmem %s3, 384
        %v2979 = vld [vmem:[%s2978] sm:$0xff]
        %v2980 = vld [vmem:[%s2978 + $0x8] sm:$0xff]
        %v2981 = vld [vmem:[%s2978 + $0x10] sm:$0xff]
        %v2982 = vld [vmem:[%s2978 + $0x18] sm:$0xff]
        %v2983 = vld [vmem:[%s2978 + $0x20] sm:$0xff]
        %v2984 = vld [vmem:[%s2978 + $0x28] sm:$0xff]
        %v2985 = vld [vmem:[%s2978 + $0x30] sm:$0xff]
        %v2986 = vld [vmem:[%s2978 + $0x38] sm:$0xff]
        %v2987 = vld [vmem:[%s2978 + $0x40] sm:$0xff]
        %v2988 = vld [vmem:[%s2978 + $0x48] sm:$0xff]
        %v2989 = vld [vmem:[%s2978 + $0x50] sm:$0xff]
        %v2990 = vld [vmem:[%s2978 + $0x58] sm:$0xff]
        %v2991 = vld [vmem:[%s2978 + $0x60] sm:$0xff]
        %v2992 = vld [vmem:[%s2978 + $0x68] sm:$0xff]
        %v2993 = vld [vmem:[%s2978 + $0x70] sm:$0xff]
        %v2994 = vld [vmem:[%s2978 + $0x78] sm:$0xff]
        %v2998 = vrot.slane %v2479, 4
        %v2999 = vrot.slane %v2480, 4
        %v3000 = vsel %vm2818, %v2998, %v2999
        %v3001 = vrot.slane %v2481, 4
        %v3002 = vsel %vm2818, %v2999, %v3001
        %v3022 = vunpack.c.l.b16 %v2979
        %v3023 = vunpack.c.h.b16 %v2979
        %v3024 = vunpack.c.l.b16 %v2980
        %v3025 = vunpack.c.h.b16 %v2980
        %v3026 = vunpack.c.l.b16 %v2981
        %v3027 = vunpack.c.h.b16 %v2981
        %v3028 = vunpack.c.l.b16 %v2982
        %v3029 = vunpack.c.h.b16 %v2982
        %v3030 = vunpack.c.l.b16 %v2983
        %v3031 = vunpack.c.h.b16 %v2983
        %v3032 = vunpack.c.l.b16 %v2984
        %v3033 = vunpack.c.h.b16 %v2984
        %v3034 = vunpack.c.l.b16 %v2985
        %v3035 = vunpack.c.h.b16 %v2985
        %v3036 = vunpack.c.l.b16 %v2986
        %v3037 = vunpack.c.h.b16 %v2986
        %v3038 = vunpack.c.l.b16 %v2987
        %v3039 = vunpack.c.h.b16 %v2987
        %v3040 = vunpack.c.l.b16 %v2988
        %v3041 = vunpack.c.h.b16 %v2988
        %v3042 = vunpack.c.l.b16 %v2989
        %v3043 = vunpack.c.h.b16 %v2989
        %v3044 = vunpack.c.l.b16 %v2990
        %v3045 = vunpack.c.h.b16 %v2990
        %v3046 = vunpack.c.l.b16 %v2991
        %v3047 = vunpack.c.h.b16 %v2991
        %v3048 = vunpack.c.l.b16 %v2992
        %v3049 = vunpack.c.h.b16 %v2992
        %v3050 = vunpack.c.l.b16 %v2993
        %v3051 = vunpack.c.h.b16 %v2993
        %v3052 = vunpack.c.l.b16 %v2994
        %v3053 = vunpack.c.h.b16 %v2994
        %v3054 = vpack.c.b16 %v3024, %v3022
        %v3055 = vpack.c.b16 %v3025, %v3023
        %v3056 = vpack.c.b16 %v3028, %v3026
        %v3057 = vpack.c.b16 %v3029, %v3027
        %v3058 = vpack.c.b16 %v3032, %v3030
        %v3059 = vpack.c.b16 %v3033, %v3031
        %v3060 = vpack.c.b16 %v3036, %v3034
        %v3061 = vpack.c.b16 %v3037, %v3035
        %v3062 = vpack.c.b16 %v3040, %v3038
        %v3063 = vpack.c.b16 %v3041, %v3039
        %v3064 = vpack.c.b16 %v3044, %v3042
        %v3065 = vpack.c.b16 %v3045, %v3043
        %v3066 = vpack.c.b16 %v3048, %v3046
        %v3067 = vpack.c.b16 %v3049, %v3047
        %v3068 = vpack.c.b16 %v3052, %v3050
        %v3069 = vpack.c.b16 %v3053, %v3051
        %3086 = vmatprep.subr.bf16.mxu0 %v3055
        %3087 = vmatpush1.bf16.msra.mxu0 %v3054
        %3088 = vmatprep.subr.bf16.mxu0 %v3057
        %3089 = vmatpush1.bf16.msra.mxu0 %v3056
        %3090 = vmatprep.subr.bf16.mxu0 %v3059
        %3091 = vmatpush1.bf16.msra.mxu0 %v3058
        %3092 = vmatprep.subr.bf16.mxu0 %v3061
        %3093 = vmatpush1.bf16.msra.mxu0 %v3060
        %3094 = vmatprep.subr.bf16.mxu0 %v3063
        %3095 = vmatpush1.bf16.msra.mxu0 %v3062
        %3096 = vmatprep.subr.bf16.mxu0 %v3065
        %3097 = vmatpush1.bf16.msra.mxu0 %v3064
        %3098 = vmatprep.subr.bf16.mxu0 %v3067
        %3099 = vmatpush1.bf16.msra.mxu0 %v3066
        %3100 = vmatprep.subr.bf16.mxu0 %v3069
        %3101 = vmatpush1.bf16.msra.mxu0 %v3068
        %3102 = vmatprep.subr.bf16.mxu0 0
        %3103 = vmatpush1.bf16.msra.mxu0 0
        %3104 = vmatprep.subr.bf16.mxu0 0
        %3105 = vmatpush1.bf16.msra.mxu0 0
        %3106 = vmatprep.subr.bf16.mxu0 0
        %3107 = vmatpush1.bf16.msra.mxu0 0
        %3108 = vmatprep.subr.bf16.mxu0 0
        %3109 = vmatpush1.bf16.msra.mxu0 0
        %3110 = vmatprep.subr.bf16.mxu0 0
        %3111 = vmatpush1.bf16.msra.mxu0 0
        %3112 = vmatprep.subr.bf16.mxu0 0
        %3113 = vmatpush1.bf16.msra.mxu0 0
        %3114 = vmatprep.subr.bf16.mxu0 0
        %3115 = vmatpush1.bf16.msra.mxu0 0
        %3116 = vmatprep.subr.bf16.mxu0 0
        %3117 = vmatpush1.bf16.msra.mxu0 0
        %3118 = vmatprep.mubr.bf16.mxu0 0
        %3119 = vmatmul.mubr.bf16.gmra.mrb[0].mxu0 %v3000
        %v3120 = vpop.f32.mrb[0].mxu0
        %v3121 = vadd.f32 0.0, %v3120
        %v3122 = vpop.f32.mrb[0].mxu0
        %v3123 = vadd.f32 0.0, %v3122
        %v3124 = vpop.f32.mrb[0].mxu0
        %v3125 = vadd.f32 0.0, %v3124
        %v3126 = vpop.f32.mrb[0].mxu0
        %v3127 = vadd.f32 0.0, %v3126
        %3128 = vmatprep.mubr.bf16.mxu0 0
        %3129 = vmatmul.mubr.bf16.gmra.mrb[0].mxu0 %v3002
        %v3130 = vpop.f32.mrb[0].mxu0
        %v3131 = vadd.f32 0.0, %v3130
        %v3132 = vpop.f32.mrb[0].mxu0
        %v3133 = vadd.f32 0.0, %v3132
        %v3134 = vpop.f32.mrb[0].mxu0
        %v3135 = vadd.f32 0.0, %v3134
        %v3136 = vpop.f32.mrb[0].mxu0
        %v3137 = vadd.f32 0.0, %v3136
        %3138 = vmatprep.mubr.bf16.mxu0 0
        %3139 = vmatmul.mubr.bf16.gmra.mrb[0].mxu0 %v3001
        %v3140 = vpop.f32.mrb[0].mxu0
        %v3141 = vadd.f32 0.0, %v3140
        %v3142 = vpop.f32.mrb[0].mxu0
        %v3143 = vadd.f32 0.0, %v3142
        %v3144 = vpop.f32.mrb[0].mxu0
        %v3145 = vpop.f32.mrb[0].mxu0
        %3146 = vdwg.mxu0
        %v3147 = vadd.f32 %v2968, %v3121
        %v3148 = vadd.f32 %v2969, %v3123
        %v3149 = vadd.f32 %v2970, %v3125
        %v3150 = vadd.f32 %v2971, %v3127
        %v3151 = vadd.f32 %v2972, %v3131
        %v3152 = vadd.f32 %v2973, %v3133
        %v3153 = vadd.f32 %v2974, %v3135
        %v3154 = vadd.f32 %v2975, %v3137
        %v3155 = vadd.f32 %v2976, %v3141
        %v3156 = vadd.f32 %v2977, %v3143
        %s3157 = scalar_lea.vmem %s3, 512
        %v3158 = vld [vmem:[%s3157] sm:$0xff]
        %v3159 = vld [vmem:[%s3157 + $0x8] sm:$0xff]
        %v3160 = vld [vmem:[%s3157 + $0x10] sm:$0xff]
        %v3161 = vld [vmem:[%s3157 + $0x18] sm:$0xff]
        %v3162 = vld [vmem:[%s3157 + $0x20] sm:$0xff]
        %v3163 = vld [vmem:[%s3157 + $0x28] sm:$0xff]
        %v3164 = vld [vmem:[%s3157 + $0x30] sm:$0xff]
        %v3165 = vld [vmem:[%s3157 + $0x38] sm:$0xff]
        %v3166 = vld [vmem:[%s3157 + $0x40] sm:$0xff]
        %v3167 = vld [vmem:[%s3157 + $0x48] sm:$0xff]
        %v3168 = vld [vmem:[%s3157 + $0x50] sm:$0xff]
        %v3169 = vld [vmem:[%s3157 + $0x58] sm:$0xff]
        %v3170 = vld [vmem:[%s3157 + $0x60] sm:$0xff]
        %v3171 = vld [vmem:[%s3157 + $0x68] sm:$0xff]
        %v3172 = vld [vmem:[%s3157 + $0x70] sm:$0xff]
        %v3173 = vld [vmem:[%s3157 + $0x78] sm:$0xff]
        %v3190 = vunpack.c.l.b16 %v3158
        %v3191 = vunpack.c.h.b16 %v3158
        %v3192 = vunpack.c.l.b16 %v3159
        %v3193 = vunpack.c.h.b16 %v3159
        %v3194 = vunpack.c.l.b16 %v3160
        %v3195 = vunpack.c.h.b16 %v3160
        %v3196 = vunpack.c.l.b16 %v3161
        %v3197 = vunpack.c.h.b16 %v3161
        %v3198 = vunpack.c.l.b16 %v3162
        %v3199 = vunpack.c.h.b16 %v3162
        %v3200 = vunpack.c.l.b16 %v3163
        %v3201 = vunpack.c.h.b16 %v3163
        %v3202 = vunpack.c.l.b16 %v3164
        %v3203 = vunpack.c.h.b16 %v3164
        %v3204 = vunpack.c.l.b16 %v3165
        %v3205 = vunpack.c.h.b16 %v3165
        %v3206 = vunpack.c.l.b16 %v3166
        %v3207 = vunpack.c.h.b16 %v3166
        %v3208 = vunpack.c.l.b16 %v3167
        %v3209 = vunpack.c.h.b16 %v3167
        %v3210 = vunpack.c.l.b16 %v3168
        %v3211 = vunpack.c.h.b16 %v3168
        %v3212 = vunpack.c.l.b16 %v3169
        %v3213 = vunpack.c.h.b16 %v3169
        %v3214 = vunpack.c.l.b16 %v3170
        %v3215 = vunpack.c.h.b16 %v3170
        %v3216 = vunpack.c.l.b16 %v3171
        %v3217 = vunpack.c.h.b16 %v3171
        %v3218 = vunpack.c.l.b16 %v3172
        %v3219 = vunpack.c.h.b16 %v3172
        %v3220 = vunpack.c.l.b16 %v3173
        %v3221 = vunpack.c.h.b16 %v3173
        %v3222 = vpack.c.b16 %v3192, %v3190
        %v3223 = vpack.c.b16 %v3193, %v3191
        %v3224 = vpack.c.b16 %v3196, %v3194
        %v3225 = vpack.c.b16 %v3197, %v3195
        %v3226 = vpack.c.b16 %v3200, %v3198
        %v3227 = vpack.c.b16 %v3201, %v3199
        %v3228 = vpack.c.b16 %v3204, %v3202
        %v3229 = vpack.c.b16 %v3205, %v3203
        %v3230 = vpack.c.b16 %v3208, %v3206
        %v3231 = vpack.c.b16 %v3209, %v3207
        %v3232 = vpack.c.b16 %v3212, %v3210
        %v3233 = vpack.c.b16 %v3213, %v3211
        %v3234 = vpack.c.b16 %v3216, %v3214
        %v3235 = vpack.c.b16 %v3217, %v3215
        %v3236 = vpack.c.b16 %v3220, %v3218
        %v3237 = vpack.c.b16 %v3221, %v3219
        %3254 = vmatprep.subr.bf16.mxu0 %v3223
        %3255 = vmatpush1.bf16.msra.mxu0 %v3222
        %3256 = vmatprep.subr.bf16.mxu0 %v3225
        %3257 = vmatpush1.bf16.msra.mxu0 %v3224
        %3258 = vmatprep.subr.bf16.mxu0 %v3227
        %3259 = vmatpush1.bf16.msra.mxu0 %v3226
        %3260 = vmatprep.subr.bf16.mxu0 %v3229
        %3261 = vmatpush1.bf16.msra.mxu0 %v3228
        %3262 = vmatprep.subr.bf16.mxu0 %v3231
        %3263 = vmatpush1.bf16.msra.mxu0 %v3230
        %3264 = vmatprep.subr.bf16.mxu0 %v3233
        %3265 = vmatpush1.bf16.msra.mxu0 %v3232
        %3266 = vmatprep.subr.bf16.mxu0 %v3235
        %3267 = vmatpush1.bf16.msra.mxu0 %v3234
        %3268 = vmatprep.subr.bf16.mxu0 %v3237
        %3269 = vmatpush1.bf16.msra.mxu0 %v3236
        %3270 = vmatprep.subr.bf16.mxu0 0
        %3271 = vmatpush1.bf16.msra.mxu0 0
        %3272 = vmatprep.subr.bf16.mxu0 0
        %3273 = vmatpush1.bf16.msra.mxu0 0
        %3274 = vmatprep.subr.bf16.mxu0 0
        %3275 = vmatpush1.bf16.msra.mxu0 0
        %3276 = vmatprep.subr.bf16.mxu0 0
        %3277 = vmatpush1.bf16.msra.mxu0 0
        %3278 = vmatprep.subr.bf16.mxu0 0
        %3279 = vmatpush1.bf16.msra.mxu0 0
        %3280 = vmatprep.subr.bf16.mxu0 0
        %3281 = vmatpush1.bf16.msra.mxu0 0
        %3282 = vmatprep.subr.bf16.mxu0 0
        %3283 = vmatpush1.bf16.msra.mxu0 0
        %3284 = vmatprep.subr.bf16.mxu0 0
        %3285 = vmatpush1.bf16.msra.mxu0 0
        %3286 = vmatprep.mubr.bf16.mxu0 0
        %3287 = vmatmul.mubr.bf16.gmra.mrb[0].mxu0 %v1573
        %v3288 = vpop.f32.mrb[0].mxu0
        %v3289 = vadd.f32 0.0, %v3288
        %v3290 = vpop.f32.mrb[0].mxu0
        %v3291 = vadd.f32 0.0, %v3290
        %v3292 = vpop.f32.mrb[0].mxu0
        %v3293 = vadd.f32 0.0, %v3292
        %v3294 = vpop.f32.mrb[0].mxu0
        %v3295 = vadd.f32 0.0, %v3294
        %3296 = vmatprep.mubr.bf16.mxu0 0
        %3297 = vmatmul.mubr.bf16.gmra.mrb[0].mxu0 %v1574
        %v3298 = vpop.f32.mrb[0].mxu0
        %v3299 = vadd.f32 0.0, %v3298
        %v3300 = vpop.f32.mrb[0].mxu0
        %v3301 = vadd.f32 0.0, %v3300
        %v3302 = vpop.f32.mrb[0].mxu0
        %v3303 = vadd.f32 0.0, %v3302
        %v3304 = vpop.f32.mrb[0].mxu0
        %v3305 = vadd.f32 0.0, %v3304
        %3306 = vmatprep.mubr.bf16.mxu0 0
        %3307 = vmatmul.mubr.bf16.gmra.mrb[0].mxu0 %v1575
        %v3308 = vpop.f32.mrb[0].mxu0
        %v3309 = vadd.f32 0.0, %v3308
        %v3310 = vpop.f32.mrb[0].mxu0
        %v3311 = vadd.f32 0.0, %v3310
        %v3312 = vpop.f32.mrb[0].mxu0
        %v3313 = vpop.f32.mrb[0].mxu0
        %3314 = vdwg.mxu0
        %v3315 = vadd.f32 %v3147, %v3289
        %v3316 = vadd.f32 %v3148, %v3291
        %v3317 = vadd.f32 %v3149, %v3293
        %v3318 = vadd.f32 %v3150, %v3295
        %v3319 = vadd.f32 %v3151, %v3299
        %v3320 = vadd.f32 %v3152, %v3301
        %v3321 = vadd.f32 %v3153, %v3303
        %v3322 = vadd.f32 %v3154, %v3305
        %v3323 = vadd.f32 %v3155, %v3309
        %v3324 = vadd.f32 %v3156, %v3311
        %3325 = vmatprep.subr.bf16.mxu0 %v2565
        %3326 = vmatpush1.bf16.msra.mxu0 %v2564
        %3327 = vmatprep.subr.bf16.mxu0 %v2567
        %3328 = vmatpush1.bf16.msra.mxu0 %v2566
        %3329 = vmatprep.subr.bf16.mxu0 %v2569
        %3330 = vmatpush1.bf16.msra.mxu0 %v2568
        %3331 = vmatprep.subr.bf16.mxu0 %v2571
        %3332 = vmatpush1.bf16.msra.mxu0 %v2570
        %3333 = vmatprep.subr.bf16.mxu0 %v2573
        %3334 = vmatpush1.bf16.msra.mxu0 %v2572
        %3335 = vmatprep.subr.bf16.mxu0 %v2575
        %3336 = vmatpush1.bf16.msra.mxu0 %v2574
        %3337 = vmatprep.subr.bf16.mxu0 %v2577
        %3338 = vmatpush1.bf16.msra.mxu0 %v2576
        %3339 = vmatprep.subr.bf16.mxu0 %v2579
        %3340 = vmatpush1.bf16.msra.mxu0 %v2578
        %3341 = vmatprep.subr.bf16.mxu0 0
        %3342 = vmatpush1.bf16.msra.mxu0 0
        %3343 = vmatprep.subr.bf16.mxu0 0
        %3344 = vmatpush1.bf16.msra.mxu0 0
        %3345 = vmatprep.subr.bf16.mxu0 0
        %3346 = vmatpush1.bf16.msra.mxu0 0
        %3347 = vmatprep.subr.bf16.mxu0 0
        %3348 = vmatpush1.bf16.msra.mxu0 0
        %3349 = vmatprep.subr.bf16.mxu0 0
        %3350 = vmatpush1.bf16.msra.mxu0 0
        %3351 = vmatprep.subr.bf16.mxu0 0
        %3352 = vmatpush1.bf16.msra.mxu0 0
        %3353 = vmatprep.subr.bf16.mxu0 0
        %3354 = vmatpush1.bf16.msra.mxu0 0
        %3355 = vmatprep.subr.bf16.mxu0 0
        %3356 = vmatpush1.bf16.msra.mxu0 0
        %3357 = vmatprep.mubr.bf16.mxu0 0
        %3358 = vmatmul.mubr.bf16.gmra.mrb[0].mxu0 %v2821
        %v3359 = vpop.f32.mrb[0].mxu0
        %v3360 = vadd.f32 0.0, %v3359
        %v3361 = vpop.f32.mrb[0].mxu0
        %v3362 = vadd.f32 0.0, %v3361
        %v3363 = vpop.f32.mrb[0].mxu0
        %v3364 = vadd.f32 0.0, %v3363
        %v3365 = vpop.f32.mrb[0].mxu0
        %v3366 = vadd.f32 0.0, %v3365
        %3367 = vmatprep.mubr.bf16.mxu0 0
        %3368 = vmatmul.mubr.bf16.gmra.mrb[0].mxu0 %v2823
        %v3369 = vpop.f32.mrb[0].mxu0
        %v3370 = vadd.f32 0.0, %v3369
        %v3371 = vpop.f32.mrb[0].mxu0
        %v3372 = vadd.f32 0.0, %v3371
        %v3373 = vpop.f32.mrb[0].mxu0
        %v3374 = vadd.f32 0.0, %v3373
        %v3375 = vpop.f32.mrb[0].mxu0
        %v3376 = vadd.f32 0.0, %v3375
        %3377 = vmatprep.mubr.bf16.mxu0 0
        %3378 = vmatmul.mubr.bf16.gmra.mrb[0].mxu0 %v2822
        %v3379 = vpop.f32.mrb[0].mxu0
        %v3380 = vadd.f32 0.0, %v3379
        %v3381 = vpop.f32.mrb[0].mxu0
        %v3382 = vadd.f32 0.0, %v3381
        %v3383 = vpop.f32.mrb[0].mxu0
        %v3384 = vpop.f32.mrb[0].mxu0
        %3385 = vdwg.mxu0
        %3386 = vmatprep.subr.bf16.mxu0 %v2706
        %3387 = vmatpush1.bf16.msra.mxu0 %v2705
        %3388 = vmatprep.subr.bf16.mxu0 %v2708
        %3389 = vmatpush1.bf16.msra.mxu0 %v2707
        %3390 = vmatprep.subr.bf16.mxu0 %v2710
        %3391 = vmatpush1.bf16.msra.mxu0 %v2709
        %3392 = vmatprep.subr.bf16.mxu0 %v2712
        %3393 = vmatpush1.bf16.msra.mxu0 %v2711
        %3394 = vmatprep.subr.bf16.mxu0 %v2714
        %3395 = vmatpush1.bf16.msra.mxu0 %v2713
        %3396 = vmatprep.subr.bf16.mxu0 %v2716
        %3397 = vmatpush1.bf16.msra.mxu0 %v2715
        %3398 = vmatprep.subr.bf16.mxu0 %v2718
        %3399 = vmatpush1.bf16.msra.mxu0 %v2717
        %3400 = vmatprep.subr.bf16.mxu0 %v2720
        %3401 = vmatpush1.bf16.msra.mxu0 %v2719
        %3402 = vmatprep.subr.bf16.mxu0 0
        %3403 = vmatpush1.bf16.msra.mxu0 0
        %3404 = vmatprep.subr.bf16.mxu0 0
        %3405 = vmatpush1.bf16.msra.mxu0 0
        %3406 = vmatprep.subr.bf16.mxu0 0
        %3407 = vmatpush1.bf16.msra.mxu0 0
        %3408 = vmatprep.subr.bf16.mxu0 0
        %3409 = vmatpush1.bf16.msra.mxu0 0
        %3410 = vmatprep.subr.bf16.mxu0 0
        %3411 = vmatpush1.bf16.msra.mxu0 0
        %3412 = vmatprep.subr.bf16.mxu0 0
        %3413 = vmatpush1.bf16.msra.mxu0 0
        %3414 = vmatprep.subr.bf16.mxu0 0
        %3415 = vmatpush1.bf16.msra.mxu0 0
        %3416 = vmatprep.subr.bf16.mxu0 0
        %3417 = vmatpush1.bf16.msra.mxu0 0
        %3418 = vmatprep.mubr.bf16.mxu0 0
        %3419 = vmatmul.mubr.bf16.gmra.mrb[0].mxu0 %v2479
        %v3420 = vpop.f32.mrb[0].mxu0
        %v3421 = vadd.f32 %v3360, %v3420
        %v3422 = vpop.f32.mrb[0].mxu0
        %v3423 = vadd.f32 %v3362, %v3422
        %v3424 = vpop.f32.mrb[0].mxu0
        %v3425 = vadd.f32 %v3364, %v3424
        %v3426 = vpop.f32.mrb[0].mxu0
        %v3427 = vadd.f32 %v3366, %v3426
        %3428 = vmatprep.mubr.bf16.mxu0 0
        %3429 = vmatmul.mubr.bf16.gmra.mrb[0].mxu0 %v2480
        %v3430 = vpop.f32.mrb[0].mxu0
        %v3431 = vadd.f32 %v3370, %v3430
        %v3432 = vpop.f32.mrb[0].mxu0
        %v3433 = vadd.f32 %v3372, %v3432
        %v3434 = vpop.f32.mrb[0].mxu0
        %v3435 = vadd.f32 %v3374, %v3434
        %v3436 = vpop.f32.mrb[0].mxu0
        %v3437 = vadd.f32 %v3376, %v3436
        %3438 = vmatprep.mubr.bf16.mxu0 0
        %3439 = vmatmul.mubr.bf16.gmra.mrb[0].mxu0 %v2481
        %v3440 = vpop.f32.mrb[0].mxu0
        %v3441 = vadd.f32 %v3380, %v3440
        %v3442 = vpop.f32.mrb[0].mxu0
        %v3443 = vadd.f32 %v3382, %v3442
        %v3444 = vpop.f32.mrb[0].mxu0
        %v3445 = vpop.f32.mrb[0].mxu0
        %3446 = vdwg.mxu0
        %3447 = vmatprep.subr.bf16.mxu0 %v2876
        %3448 = vmatpush1.bf16.msra.mxu0 %v2875
        %3449 = vmatprep.subr.bf16.mxu0 %v2878
        %3450 = vmatpush1.bf16.msra.mxu0 %v2877
        %3451 = vmatprep.subr.bf16.mxu0 %v2880
        %3452 = vmatpush1.bf16.msra.mxu0 %v2879
        %3453 = vmatprep.subr.bf16.mxu0 %v2882
        %3454 = vmatpush1.bf16.msra.mxu0 %v2881
        %3455 = vmatprep.subr.bf16.mxu0 %v2884
        %3456 = vmatpush1.bf16.msra.mxu0 %v2883
        %3457 = vmatprep.subr.bf16.mxu0 %v2886
        %3458 = vmatpush1.bf16.msra.mxu0 %v2885
        %3459 = vmatprep.subr.bf16.mxu0 %v2888
        %3460 = vmatpush1.bf16.msra.mxu0 %v2887
        %3461 = vmatprep.subr.bf16.mxu0 %v2890
        %3462 = vmatpush1.bf16.msra.mxu0 %v2889
        %3463 = vmatprep.subr.bf16.mxu0 0
        %3464 = vmatpush1.bf16.msra.mxu0 0
        %3465 = vmatprep.subr.bf16.mxu0 0
        %3466 = vmatpush1.bf16.msra.mxu0 0
        %3467 = vmatprep.subr.bf16.mxu0 0
        %3468 = vmatpush1.bf16.msra.mxu0 0
        %3469 = vmatprep.subr.bf16.mxu0 0
        %3470 = vmatpush1.bf16.msra.mxu0 0
        %3471 = vmatprep.subr.bf16.mxu0 0
        %3472 = vmatpush1.bf16.msra.mxu0 0
        %3473 = vmatprep.subr.bf16.mxu0 0
        %3474 = vmatpush1.bf16.msra.mxu0 0
        %3475 = vmatprep.subr.bf16.mxu0 0
        %3476 = vmatpush1.bf16.msra.mxu0 0
        %3477 = vmatprep.subr.bf16.mxu0 0
        %3478 = vmatpush1.bf16.msra.mxu0 0
        %3479 = vmatprep.mubr.bf16.mxu0 0
        %3480 = vmatmul.mubr.bf16.gmra.mrb[0].mxu0 %v3000
        %v3481 = vpop.f32.mrb[0].mxu0
        %v3482 = vadd.f32 0.0, %v3481
        %v3483 = vpop.f32.mrb[0].mxu0
        %v3484 = vadd.f32 0.0, %v3483
        %v3485 = vpop.f32.mrb[0].mxu0
        %v3486 = vadd.f32 0.0, %v3485
        %v3487 = vpop.f32.mrb[0].mxu0
        %v3488 = vadd.f32 0.0, %v3487
        %3489 = vmatprep.mubr.bf16.mxu0 0
        %3490 = vmatmul.mubr.bf16.gmra.mrb[0].mxu0 %v3002
        %v3491 = vpop.f32.mrb[0].mxu0
        %v3492 = vadd.f32 0.0, %v3491
        %v3493 = vpop.f32.mrb[0].mxu0
        %v3494 = vadd.f32 0.0, %v3493
        %v3495 = vpop.f32.mrb[0].mxu0
        %v3496 = vadd.f32 0.0, %v3495
        %v3497 = vpop.f32.mrb[0].mxu0
        %v3498 = vadd.f32 0.0, %v3497
        %3499 = vmatprep.mubr.bf16.mxu0 0
        %3500 = vmatmul.mubr.bf16.gmra.mrb[0].mxu0 %v3001
        %v3501 = vpop.f32.mrb[0].mxu0
        %v3502 = vadd.f32 0.0, %v3501
        %v3503 = vpop.f32.mrb[0].mxu0
        %v3504 = vadd.f32 0.0, %v3503
        %v3505 = vpop.f32.mrb[0].mxu0
        %v3506 = vpop.f32.mrb[0].mxu0
        %3507 = vdwg.mxu0
        %v3508 = vadd.f32 %v3421, %v3482
        %v3509 = vadd.f32 %v3423, %v3484
        %v3510 = vadd.f32 %v3425, %v3486
        %v3511 = vadd.f32 %v3427, %v3488
        %v3512 = vadd.f32 %v3431, %v3492
        %v3513 = vadd.f32 %v3433, %v3494
        %v3514 = vadd.f32 %v3435, %v3496
        %v3515 = vadd.f32 %v3437, %v3498
        %v3516 = vadd.f32 %v3441, %v3502
        %v3517 = vadd.f32 %v3443, %v3504
        %3518 = vmatprep.subr.bf16.mxu0 %v3055
        %3519 = vmatpush1.bf16.msra.mxu0 %v3054
        %3520 = vmatprep.subr.bf16.mxu0 %v3057
        %3521 = vmatpush1.bf16.msra.mxu0 %v3056
        %3522 = vmatprep.subr.bf16.mxu0 %v3059
        %3523 = vmatpush1.bf16.msra.mxu0 %v3058
        %3524 = vmatprep.subr.bf16.mxu0 %v3061
        %3525 = vmatpush1.bf16.msra.mxu0 %v3060
        %3526 = vmatprep.subr.bf16.mxu0 %v3063
        %3527 = vmatpush1.bf16.msra.mxu0 %v3062
        %3528 = vmatprep.subr.bf16.mxu0 %v3065
        %3529 = vmatpush1.bf16.msra.mxu0 %v3064
        %3530 = vmatprep.subr.bf16.mxu0 %v3067
        %3531 = vmatpush1.bf16.msra.mxu0 %v3066
        %3532 = vmatprep.subr.bf16.mxu0 %v3069
        %3533 = vmatpush1.bf16.msra.mxu0 %v3068
        %3534 = vmatprep.subr.bf16.mxu0 0
        %3535 = vmatpush1.bf16.msra.mxu0 0
        %3536 = vmatprep.subr.bf16.mxu0 0
        %3537 = vmatpush1.bf16.msra.mxu0 0
        %3538 = vmatprep.subr.bf16.mxu0 0
        %3539 = vmatpush1.bf16.msra.mxu0 0
        %3540 = vmatprep.subr.bf16.mxu0 0
        %3541 = vmatpush1.bf16.msra.mxu0 0
        %3542 = vmatprep.subr.bf16.mxu0 0
        %3543 = vmatpush1.bf16.msra.mxu0 0
        %3544 = vmatprep.subr.bf16.mxu0 0
        %3545 = vmatpush1.bf16.msra.mxu0 0
        %3546 = vmatprep.subr.bf16.mxu0 0
        %3547 = vmatpush1.bf16.msra.mxu0 0
        %3548 = vmatprep.subr.bf16.mxu0 0
        %3549 = vmatpush1.bf16.msra.mxu0 0
        %3550 = vmatprep.mubr.bf16.mxu0 0
        %3551 = vmatmul.mubr.bf16.gmra.mrb[0].mxu0 %v1573
        %v3552 = vpop.f32.mrb[0].mxu0
        %v3553 = vadd.f32 0.0, %v3552
        %v3554 = vpop.f32.mrb[0].mxu0
        %v3555 = vadd.f32 0.0, %v3554
        %v3556 = vpop.f32.mrb[0].mxu0
        %v3557 = vadd.f32 0.0, %v3556
        %v3558 = vpop.f32.mrb[0].mxu0
        %v3559 = vadd.f32 0.0, %v3558
        %3560 = vmatprep.mubr.bf16.mxu0 0
        %3561 = vmatmul.mubr.bf16.gmra.mrb[0].mxu0 %v1574
        %v3562 = vpop.f32.mrb[0].mxu0
        %v3563 = vadd.f32 0.0, %v3562
        %v3564 = vpop.f32.mrb[0].mxu0
        %v3565 = vadd.f32 0.0, %v3564
        %v3566 = vpop.f32.mrb[0].mxu0
        %v3567 = vadd.f32 0.0, %v3566
        %v3568 = vpop.f32.mrb[0].mxu0
        %v3569 = vadd.f32 0.0, %v3568
        %3570 = vmatprep.mubr.bf16.mxu0 0
        %3571 = vmatmul.mubr.bf16.gmra.mrb[0].mxu0 %v1575
        %v3572 = vpop.f32.mrb[0].mxu0
        %v3573 = vadd.f32 0.0, %v3572
        %v3574 = vpop.f32.mrb[0].mxu0
        %v3575 = vadd.f32 0.0, %v3574
        %v3576 = vpop.f32.mrb[0].mxu0
        %v3577 = vpop.f32.mrb[0].mxu0
        %3578 = vdwg.mxu0
        %v3579 = vadd.f32 %v3508, %v3553
        %v3580 = vadd.f32 %v3509, %v3555
        %v3581 = vadd.f32 %v3510, %v3557
        %v3582 = vadd.f32 %v3511, %v3559
        %v3583 = vadd.f32 %v3512, %v3563
        %v3584 = vadd.f32 %v3513, %v3565
        %v3585 = vadd.f32 %v3514, %v3567
        %v3586 = vadd.f32 %v3515, %v3569
        %v3587 = vadd.f32 %v3516, %v3573
        %v3588 = vadd.f32 %v3517, %v3575
        %3589 = vmatprep.subr.bf16.mxu0 %v3223
        %3590 = vmatpush1.bf16.msra.mxu0 %v3222
        %3591 = vmatprep.subr.bf16.mxu0 %v3225
        %3592 = vmatpush1.bf16.msra.mxu0 %v3224
        %3593 = vmatprep.subr.bf16.mxu0 %v3227
        %3594 = vmatpush1.bf16.msra.mxu0 %v3226
        %3595 = vmatprep.subr.bf16.mxu0 %v3229
        %3596 = vmatpush1.bf16.msra.mxu0 %v3228
        %3597 = vmatprep.subr.bf16.mxu0 %v3231
        %3598 = vmatpush1.bf16.msra.mxu0 %v3230
        %3599 = vmatprep.subr.bf16.mxu0 %v3233
        %3600 = vmatpush1.bf16.msra.mxu0 %v3232
        %3601 = vmatprep.subr.bf16.mxu0 %v3235
        %3602 = vmatpush1.bf16.msra.mxu0 %v3234
        %3603 = vmatprep.subr.bf16.mxu0 %v3237
        %3604 = vmatpush1.bf16.msra.mxu0 %v3236
        %3605 = vmatprep.subr.bf16.mxu0 0
        %3606 = vmatpush1.bf16.msra.mxu0 0
        %3607 = vmatprep.subr.bf16.mxu0 0
        %3608 = vmatpush1.bf16.msra.mxu0 0
        %3609 = vmatprep.subr.bf16.mxu0 0
        %3610 = vmatpush1.bf16.msra.mxu0 0
        %3611 = vmatprep.subr.bf16.mxu0 0
        %3612 = vmatpush1.bf16.msra.mxu0 0
        %3613 = vmatprep.subr.bf16.mxu0 0
        %3614 = vmatpush1.bf16.msra.mxu0 0
        %3615 = vmatprep.subr.bf16.mxu0 0
        %3616 = vmatpush1.bf16.msra.mxu0 0
        %3617 = vmatprep.subr.bf16.mxu0 0
        %3618 = vmatpush1.bf16.msra.mxu0 0
        %3619 = vmatprep.subr.bf16.mxu0 0
        %3620 = vmatpush1.bf16.msra.mxu0 0
        %3621 = vmatprep.mubr.bf16.mxu0 0
        %3622 = vmatmul.mubr.bf16.gmra.mrb[0].mxu0 %v2480
        %v3623 = vpop.f32.mrb[0].mxu0
        %v3624 = vadd.f32 0.0, %v3623
        %v3625 = vpop.f32.mrb[0].mxu0
        %v3626 = vadd.f32 0.0, %v3625
        %v3627 = vpop.f32.mrb[0].mxu0
        %v3628 = vadd.f32 0.0, %v3627
        %v3629 = vpop.f32.mrb[0].mxu0
        %v3630 = vadd.f32 0.0, %v3629
        %3631 = vmatprep.mubr.bf16.mxu0 0
        %3632 = vmatmul.mubr.bf16.gmra.mrb[0].mxu0 %v2481
        %v3633 = vpop.f32.mrb[0].mxu0
        %v3634 = vadd.f32 0.0, %v3633
        %v3635 = vpop.f32.mrb[0].mxu0
        %v3636 = vadd.f32 0.0, %v3635
        %v3637 = vpop.f32.mrb[0].mxu0
        %v3638 = vadd.f32 0.0, %v3637
        %v3639 = vpop.f32.mrb[0].mxu0
        %v3640 = vadd.f32 0.0, %v3639
        %3641 = vmatprep.mubr.bf16.mxu0 0
        %3642 = vmatmul.mubr.bf16.gmra.mrb[0].mxu0 %v2482
        %v3643 = vpop.f32.mrb[0].mxu0
        %v3644 = vadd.f32 0.0, %v3643
        %v3645 = vpop.f32.mrb[0].mxu0
        %v3646 = vadd.f32 0.0, %v3645
        %v3647 = vpop.f32.mrb[0].mxu0
        %v3648 = vpop.f32.mrb[0].mxu0
        %3649 = vdwg.mxu0
        %v3650 = vadd.f32 %v3579, %v3624
        %v3651 = vadd.f32 %v3580, %v3626
        %v3652 = vadd.f32 %v3581, %v3628
        %v3653 = vadd.f32 %v3582, %v3630
        %v3654 = vadd.f32 %v3583, %v3634
        %v3655 = vadd.f32 %v3584, %v3636
        %v3656 = vadd.f32 %v3585, %v3638
        %v3657 = vadd.f32 %v3586, %v3640
        %v3658 = vadd.f32 %v3587, %v3644
        %v3659 = vadd.f32 %v3588, %v3646
        %v3660 = vmax.f32 %v3315, %v3650
        %v3661 = vmax.f32 %v3316, %v3651
        %v3662 = vmax.f32 %v3317, %v3652
        %v3663 = vmax.f32 %v3318, %v3653
        %v3664 = vmax.f32 %v3319, %v3654
        %v3665 = vmax.f32 %v3320, %v3655
        %v3666 = vmax.f32 %v3321, %v3656
        %v3667 = vmax.f32 %v3322, %v3657
        %v3668 = vmax.f32 %v3323, %v3658
        %v3669 = vmax.f32 %v3324, %v3659
        %v3670 = vld [vmem:[%s4] sm:$0x1]
        %v3671 = vmax.f32 %v3660, %v3661
        %v3672 = vmax.f32 %v3662, %v3663
        %v3673 = vmax.f32 %v3664, %v3665
        %v3674 = vmax.f32 %v3666, %v3667
        %v3675 = vmax.f32 %v3668, %v3669
        %v3677 = vlaneseq
        %v3678 = vshrl.u32 %v3677, 7
        %v3679 = vsub.s32 0, %v3678
        %v3680 = vrot.slane %v3670, %v3679
        %v3682 = vadd.f32 %v3671, %v3680
        %v3683 = vadd.f32 %v3672, %v3680
        %v3684 = vadd.f32 %v3673, %v3680
        %v3685 = vadd.f32 %v3674, %v3680
        %v3686 = vadd.f32 %v3675, %v3680
        %v3687 = vmax.f32 %v3682, 0.0
        %v3688 = vmax.f32 %v3683, 0.0
        %v3689 = vmax.f32 %v3684, 0.0
        %v3690 = vmax.f32 %v3685, 0.0
        %v3691 = vmax.f32 %v3686, 0.0
        %v3692 = vpack.c.bf16 %v3688, %v3687
        %v3693 = vpack.c.bf16 %v3690, %v3689
        %v3694 = vpack.c.bf16 %v3691, %v3691
        %v3695 = vld [vmem:[%s6] sm:$0x1]
        %v3696 = vld [vmem:[%s5] sm:$0xf]
        %v3697 = vld [vmem:[%s5 + $0x4] sm:$0xf]
        %v3698 = vld [vmem:[%s5 + $0x8] sm:$0xf]
        %v3699 = vld [vmem:[%s5 + $0xc] sm:$0xf]
        %v3700 = vld [vmem:[%s5 + $0x10] sm:$0xf]
        %v3701 = vld [vmem:[%s5 + $0x14] sm:$0xf]
        %v3702 = vld [vmem:[%s5 + $0x18] sm:$0xf]
        %v3703 = vld [vmem:[%s5 + $0x1c] sm:$0xf]
        %v3704 = vld [vmem:[%s5 + $0x20] sm:$0xf]
        %v3705 = vld [vmem:[%s5 + $0x24] sm:$0xf]
        %v3706 = vld [vmem:[%s5 + $0x28] sm:$0xf]
        %v3707 = vld [vmem:[%s5 + $0x2c] sm:$0xf]
        %v3708 = vld [vmem:[%s5 + $0x30] sm:$0xf]
        %v3709 = vld [vmem:[%s5 + $0x34] sm:$0xf]
        %v3710 = vld [vmem:[%s5 + $0x38] sm:$0xf]
        %v3711 = vld [vmem:[%s5 + $0x3c] sm:$0xf]
        %v3728 = vunpack.c.l.b16 %v3696
        %v3729 = vunpack.c.l.b16 %v3697
        %v3730 = vunpack.c.l.b16 %v3698
        %v3731 = vunpack.c.l.b16 %v3699
        %v3732 = vunpack.c.l.b16 %v3700
        %v3733 = vunpack.c.l.b16 %v3701
        %v3734 = vunpack.c.l.b16 %v3702
        %v3735 = vunpack.c.l.b16 %v3703
        %v3736 = vunpack.c.l.b16 %v3704
        %v3737 = vunpack.c.l.b16 %v3705
        %v3738 = vunpack.c.l.b16 %v3706
        %v3739 = vunpack.c.l.b16 %v3707
        %v3740 = vunpack.c.l.b16 %v3708
        %v3741 = vunpack.c.l.b16 %v3709
        %v3742 = vunpack.c.l.b16 %v3710
        %v3743 = vunpack.c.l.b16 %v3711
        %v3744 = vpack.c.b16 %v3729, %v3728
        %v3745 = vpack.c.b16 %v3731, %v3730
        %v3746 = vpack.c.b16 %v3733, %v3732
        %v3747 = vpack.c.b16 %v3735, %v3734
        %v3748 = vpack.c.b16 %v3737, %v3736
        %v3749 = vpack.c.b16 %v3739, %v3738
        %v3750 = vpack.c.b16 %v3741, %v3740
        %v3751 = vpack.c.b16 %v3743, %v3742
        %3760 = vmatprep.subr.bf16.mxu0 0
        %3761 = vmatpush1.bf16.msra.mxu0 %v3744
        %3762 = vmatprep.subr.bf16.mxu0 0
        %3763 = vmatpush1.bf16.msra.mxu0 %v3745
        %3764 = vmatprep.subr.bf16.mxu0 0
        %3765 = vmatpush1.bf16.msra.mxu0 %v3746
        %3766 = vmatprep.subr.bf16.mxu0 0
        %3767 = vmatpush1.bf16.msra.mxu0 %v3747
        %3768 = vmatprep.subr.bf16.mxu0 0
        %3769 = vmatpush1.bf16.msra.mxu0 %v3748
        %3770 = vmatprep.subr.bf16.mxu0 0
        %3771 = vmatpush1.bf16.msra.mxu0 %v3749
        %3772 = vmatprep.subr.bf16.mxu0 0
        %3773 = vmatpush1.bf16.msra.mxu0 %v3750
        %3774 = vmatprep.subr.bf16.mxu0 0
        %3775 = vmatpush1.bf16.msra.mxu0 %v3751
        %3776 = vmatprep.subr.bf16.mxu0 0
        %3777 = vmatpush1.bf16.msra.mxu0 0
        %3778 = vmatprep.subr.bf16.mxu0 0
        %3779 = vmatpush1.bf16.msra.mxu0 0
        %3780 = vmatprep.subr.bf16.mxu0 0
        %3781 = vmatpush1.bf16.msra.mxu0 0
        %3782 = vmatprep.subr.bf16.mxu0 0
        %3783 = vmatpush1.bf16.msra.mxu0 0
        %3784 = vmatprep.subr.bf16.mxu0 0
        %3785 = vmatpush1.bf16.msra.mxu0 0
        %3786 = vmatprep.subr.bf16.mxu0 0
        %3787 = vmatpush1.bf16.msra.mxu0 0
        %3788 = vmatprep.subr.bf16.mxu0 0
        %3789 = vmatpush1.bf16.msra.mxu0 0
        %3790 = vmatprep.subr.bf16.mxu0 0
        %3791 = vmatpush1.bf16.msra.mxu0 0
        %3792 = vmatprep.mubr.bf16.mxu0 0
        %3793 = vmatmul.mubr.bf16.gmra.mrb[0].mxu0 %v3692
        %v3794 = vpop.f32.mrb[0].mxu0
        %v3795 = vadd.f32 0.0, %v3794
        %v3796 = vpop.f32.mrb[0].mxu0
        %v3797 = vpop.f32.mrb[0].mxu0
        %v3798 = vpop.f32.mrb[0].mxu0
        %3799 = vdwg.mxu0
        %v3801 = vlaneseq
        %v3802 = vshrl.u32 %v3801, 7
        %v3803 = vsub.s32 0, %v3802
        %v3804 = vrot.slane %v3695, %v3803
        %v3806 = vadd.f32 %v3804, %v3795
        %s3807 = scalar_lea.vmem %s5, 64
        %v3808 = vld [vmem:[%s3807] sm:$0xf]
        %v3809 = vld [vmem:[%s3807 + $0x4] sm:$0xf]
        %v3810 = vld [vmem:[%s3807 + $0x8] sm:$0xf]
        %v3811 = vld [vmem:[%s3807 + $0xc] sm:$0xf]
        %v3812 = vld [vmem:[%s3807 + $0x10] sm:$0xf]
        %v3813 = vld [vmem:[%s3807 + $0x14] sm:$0xf]
        %v3814 = vld [vmem:[%s3807 + $0x18] sm:$0xf]
        %v3815 = vld [vmem:[%s3807 + $0x1c] sm:$0xf]
        %v3816 = vld [vmem:[%s3807 + $0x20] sm:$0xf]
        %v3817 = vld [vmem:[%s3807 + $0x24] sm:$0xf]
        %v3818 = vld [vmem:[%s3807 + $0x28] sm:$0xf]
        %v3819 = vld [vmem:[%s3807 + $0x2c] sm:$0xf]
        %v3820 = vld [vmem:[%s3807 + $0x30] sm:$0xf]
        %v3821 = vld [vmem:[%s3807 + $0x34] sm:$0xf]
        %v3822 = vld [vmem:[%s3807 + $0x38] sm:$0xf]
        %v3823 = vld [vmem:[%s3807 + $0x3c] sm:$0xf]
        %v3825 = vrot.slane %v3692, 4
        %v3843 = vunpack.c.l.b16 %v3808
        %v3844 = vunpack.c.l.b16 %v3809
        %v3845 = vunpack.c.l.b16 %v3810
        %v3846 = vunpack.c.l.b16 %v3811
        %v3847 = vunpack.c.l.b16 %v3812
        %v3848 = vunpack.c.l.b16 %v3813
        %v3849 = vunpack.c.l.b16 %v3814
        %v3850 = vunpack.c.l.b16 %v3815
        %v3851 = vunpack.c.l.b16 %v3816
        %v3852 = vunpack.c.l.b16 %v3817
        %v3853 = vunpack.c.l.b16 %v3818
        %v3854 = vunpack.c.l.b16 %v3819
        %v3855 = vunpack.c.l.b16 %v3820
        %v3856 = vunpack.c.l.b16 %v3821
        %v3857 = vunpack.c.l.b16 %v3822
        %v3858 = vunpack.c.l.b16 %v3823
        %v3859 = vpack.c.b16 %v3844, %v3843
        %v3860 = vpack.c.b16 %v3846, %v3845
        %v3861 = vpack.c.b16 %v3848, %v3847
        %v3862 = vpack.c.b16 %v3850, %v3849
        %v3863 = vpack.c.b16 %v3852, %v3851
        %v3864 = vpack.c.b16 %v3854, %v3853
        %v3865 = vpack.c.b16 %v3856, %v3855
        %v3866 = vpack.c.b16 %v3858, %v3857
        %3875 = vmatprep.subr.bf16.mxu0 0
        %3876 = vmatpush1.bf16.msra.mxu0 %v3859
        %3877 = vmatprep.subr.bf16.mxu0 0
        %3878 = vmatpush1.bf16.msra.mxu0 %v3860
        %3879 = vmatprep.subr.bf16.mxu0 0
        %3880 = vmatpush1.bf16.msra.mxu0 %v3861
        %3881 = vmatprep.subr.bf16.mxu0 0
        %3882 = vmatpush1.bf16.msra.mxu0 %v3862
        %3883 = vmatprep.subr.bf16.mxu0 0
        %3884 = vmatpush1.bf16.msra.mxu0 %v3863
        %3885 = vmatprep.subr.bf16.mxu0 0
        %3886 = vmatpush1.bf16.msra.mxu0 %v3864
        %3887 = vmatprep.subr.bf16.mxu0 0
        %3888 = vmatpush1.bf16.msra.mxu0 %v3865
        %3889 = vmatprep.subr.bf16.mxu0 0
        %3890 = vmatpush1.bf16.msra.mxu0 %v3866
        %3891 = vmatprep.subr.bf16.mxu0 0
        %3892 = vmatpush1.bf16.msra.mxu0 0
        %3893 = vmatprep.subr.bf16.mxu0 0
        %3894 = vmatpush1.bf16.msra.mxu0 0
        %3895 = vmatprep.subr.bf16.mxu0 0
        %3896 = vmatpush1.bf16.msra.mxu0 0
        %3897 = vmatprep.subr.bf16.mxu0 0
        %3898 = vmatpush1.bf16.msra.mxu0 0
        %3899 = vmatprep.subr.bf16.mxu0 0
        %3900 = vmatpush1.bf16.msra.mxu0 0
        %3901 = vmatprep.subr.bf16.mxu0 0
        %3902 = vmatpush1.bf16.msra.mxu0 0
        %3903 = vmatprep.subr.bf16.mxu0 0
        %3904 = vmatpush1.bf16.msra.mxu0 0
        %3905 = vmatprep.subr.bf16.mxu0 0
        %3906 = vmatpush1.bf16.msra.mxu0 0
        %3907 = vmatprep.mubr.bf16.mxu0 0
        %3908 = vmatmul.mubr.bf16.gmra.mrb[0].mxu0 %v3825
        %v3909 = vpop.f32.mrb[0].mxu0
        %v3910 = vadd.f32 0.0, %v3909
        %v3911 = vpop.f32.mrb[0].mxu0
        %v3912 = vpop.f32.mrb[0].mxu0
        %v3913 = vpop.f32.mrb[0].mxu0
        %3914 = vdwg.mxu0
        %v3915 = vadd.f32 %v3806, %v3910
        %s3916 = scalar_lea.vmem %s5, 128
        %v3917 = vld [vmem:[%s3916] sm:$0xf]
        %v3918 = vld [vmem:[%s3916 + $0x4] sm:$0xf]
        %v3919 = vld [vmem:[%s3916 + $0x8] sm:$0xf]
        %v3920 = vld [vmem:[%s3916 + $0xc] sm:$0xf]
        %v3921 = vld [vmem:[%s3916 + $0x10] sm:$0xf]
        %v3922 = vld [vmem:[%s3916 + $0x14] sm:$0xf]
        %v3923 = vld [vmem:[%s3916 + $0x18] sm:$0xf]
        %v3924 = vld [vmem:[%s3916 + $0x1c] sm:$0xf]
        %v3925 = vld [vmem:[%s3916 + $0x20] sm:$0xf]
        %v3926 = vld [vmem:[%s3916 + $0x24] sm:$0xf]
        %v3927 = vld [vmem:[%s3916 + $0x28] sm:$0xf]
        %v3928 = vld [vmem:[%s3916 + $0x2c] sm:$0xf]
        %v3929 = vld [vmem:[%s3916 + $0x30] sm:$0xf]
        %v3930 = vld [vmem:[%s3916 + $0x34] sm:$0xf]
        %v3931 = vld [vmem:[%s3916 + $0x38] sm:$0xf]
        %v3932 = vld [vmem:[%s3916 + $0x3c] sm:$0xf]
        %v3949 = vunpack.c.l.b16 %v3917
        %v3950 = vunpack.c.l.b16 %v3918
        %v3951 = vunpack.c.l.b16 %v3919
        %v3952 = vunpack.c.l.b16 %v3920
        %v3953 = vunpack.c.l.b16 %v3921
        %v3954 = vunpack.c.l.b16 %v3922
        %v3955 = vunpack.c.l.b16 %v3923
        %v3956 = vunpack.c.l.b16 %v3924
        %v3957 = vunpack.c.l.b16 %v3925
        %v3958 = vunpack.c.l.b16 %v3926
        %v3959 = vunpack.c.l.b16 %v3927
        %v3960 = vunpack.c.l.b16 %v3928
        %v3961 = vunpack.c.l.b16 %v3929
        %v3962 = vunpack.c.l.b16 %v3930
        %v3963 = vunpack.c.l.b16 %v3931
        %v3964 = vunpack.c.l.b16 %v3932
        %v3965 = vpack.c.b16 %v3950, %v3949
        %v3966 = vpack.c.b16 %v3952, %v3951
        %v3967 = vpack.c.b16 %v3954, %v3953
        %v3968 = vpack.c.b16 %v3956, %v3955
        %v3969 = vpack.c.b16 %v3958, %v3957
        %v3970 = vpack.c.b16 %v3960, %v3959
        %v3971 = vpack.c.b16 %v3962, %v3961
        %v3972 = vpack.c.b16 %v3964, %v3963
        %3981 = vmatprep.subr.bf16.mxu0 0
        %3982 = vmatpush1.bf16.msra.mxu0 %v3965
        %3983 = vmatprep.subr.bf16.mxu0 0
        %3984 = vmatpush1.bf16.msra.mxu0 %v3966
        %3985 = vmatprep.subr.bf16.mxu0 0
        %3986 = vmatpush1.bf16.msra.mxu0 %v3967
        %3987 = vmatprep.subr.bf16.mxu0 0
        %3988 = vmatpush1.bf16.msra.mxu0 %v3968
        %3989 = vmatprep.subr.bf16.mxu0 0
        %3990 = vmatpush1.bf16.msra.mxu0 %v3969
        %3991 = vmatprep.subr.bf16.mxu0 0
        %3992 = vmatpush1.bf16.msra.mxu0 %v3970
        %3993 = vmatprep.subr.bf16.mxu0 0
        %3994 = vmatpush1.bf16.msra.mxu0 %v3971
        %3995 = vmatprep.subr.bf16.mxu0 0
        %3996 = vmatpush1.bf16.msra.mxu0 %v3972
        %3997 = vmatprep.subr.bf16.mxu0 0
        %3998 = vmatpush1.bf16.msra.mxu0 0
        %3999 = vmatprep.subr.bf16.mxu0 0
        %4000 = vmatpush1.bf16.msra.mxu0 0
        %4001 = vmatprep.subr.bf16.mxu0 0
        %4002 = vmatpush1.bf16.msra.mxu0 0
        %4003 = vmatprep.subr.bf16.mxu0 0
        %4004 = vmatpush1.bf16.msra.mxu0 0
        %4005 = vmatprep.subr.bf16.mxu0 0
        %4006 = vmatpush1.bf16.msra.mxu0 0
        %4007 = vmatprep.subr.bf16.mxu0 0
        %4008 = vmatpush1.bf16.msra.mxu0 0
        %4009 = vmatprep.subr.bf16.mxu0 0
        %4010 = vmatpush1.bf16.msra.mxu0 0
        %4011 = vmatprep.subr.bf16.mxu0 0
        %4012 = vmatpush1.bf16.msra.mxu0 0
        %4013 = vmatprep.mubr.bf16.mxu0 0
        %4014 = vmatmul.mubr.bf16.gmra.mrb[0].mxu0 %v3693
        %v4015 = vpop.f32.mrb[0].mxu0
        %v4016 = vadd.f32 0.0, %v4015
        %v4017 = vpop.f32.mrb[0].mxu0
        %v4018 = vpop.f32.mrb[0].mxu0
        %v4019 = vpop.f32.mrb[0].mxu0
        %4020 = vdwg.mxu0
        %v4021 = vadd.f32 %v3915, %v4016
        %s4022 = scalar_lea.vmem %s5, 192
        %v4023 = vld [vmem:[%s4022] sm:$0xf]
        %v4024 = vld [vmem:[%s4022 + $0x4] sm:$0xf]
        %v4025 = vld [vmem:[%s4022 + $0x8] sm:$0xf]
        %v4026 = vld [vmem:[%s4022 + $0xc] sm:$0xf]
        %v4027 = vld [vmem:[%s4022 + $0x10] sm:$0xf]
        %v4028 = vld [vmem:[%s4022 + $0x14] sm:$0xf]
        %v4029 = vld [vmem:[%s4022 + $0x18] sm:$0xf]
        %v4030 = vld [vmem:[%s4022 + $0x1c] sm:$0xf]
        %v4031 = vld [vmem:[%s4022 + $0x20] sm:$0xf]
        %v4032 = vld [vmem:[%s4022 + $0x24] sm:$0xf]
        %v4033 = vld [vmem:[%s4022 + $0x28] sm:$0xf]
        %v4034 = vld [vmem:[%s4022 + $0x2c] sm:$0xf]
        %v4035 = vld [vmem:[%s4022 + $0x30] sm:$0xf]
        %v4036 = vld [vmem:[%s4022 + $0x34] sm:$0xf]
        %v4037 = vld [vmem:[%s4022 + $0x38] sm:$0xf]
        %v4038 = vld [vmem:[%s4022 + $0x3c] sm:$0xf]
        %v4040 = vrot.slane %v3693, 4
        %v4058 = vunpack.c.l.b16 %v4023
        %v4059 = vunpack.c.l.b16 %v4024
        %v4060 = vunpack.c.l.b16 %v4025
        %v4061 = vunpack.c.l.b16 %v4026
        %v4062 = vunpack.c.l.b16 %v4027
        %v4063 = vunpack.c.l.b16 %v4028
        %v4064 = vunpack.c.l.b16 %v4029
        %v4065 = vunpack.c.l.b16 %v4030
        %v4066 = vunpack.c.l.b16 %v4031
        %v4067 = vunpack.c.l.b16 %v4032
        %v4068 = vunpack.c.l.b16 %v4033
        %v4069 = vunpack.c.l.b16 %v4034
        %v4070 = vunpack.c.l.b16 %v4035
        %v4071 = vunpack.c.l.b16 %v4036
        %v4072 = vunpack.c.l.b16 %v4037
        %v4073 = vunpack.c.l.b16 %v4038
        %v4074 = vpack.c.b16 %v4059, %v4058
        %v4075 = vpack.c.b16 %v4061, %v4060
        %v4076 = vpack.c.b16 %v4063, %v4062
        %v4077 = vpack.c.b16 %v4065, %v4064
        %v4078 = vpack.c.b16 %v4067, %v4066
        %v4079 = vpack.c.b16 %v4069, %v4068
        %v4080 = vpack.c.b16 %v4071, %v4070
        %v4081 = vpack.c.b16 %v4073, %v4072
        %4090 = vmatprep.subr.bf16.mxu0 0
        %4091 = vmatpush1.bf16.msra.mxu0 %v4074
        %4092 = vmatprep.subr.bf16.mxu0 0
        %4093 = vmatpush1.bf16.msra.mxu0 %v4075
        %4094 = vmatprep.subr.bf16.mxu0 0
        %4095 = vmatpush1.bf16.msra.mxu0 %v4076
        %4096 = vmatprep.subr.bf16.mxu0 0
        %4097 = vmatpush1.bf16.msra.mxu0 %v4077
        %4098 = vmatprep.subr.bf16.mxu0 0
        %4099 = vmatpush1.bf16.msra.mxu0 %v4078
        %4100 = vmatprep.subr.bf16.mxu0 0
        %4101 = vmatpush1.bf16.msra.mxu0 %v4079
        %4102 = vmatprep.subr.bf16.mxu0 0
        %4103 = vmatpush1.bf16.msra.mxu0 %v4080
        %4104 = vmatprep.subr.bf16.mxu0 0
        %4105 = vmatpush1.bf16.msra.mxu0 %v4081
        %4106 = vmatprep.subr.bf16.mxu0 0
        %4107 = vmatpush1.bf16.msra.mxu0 0
        %4108 = vmatprep.subr.bf16.mxu0 0
        %4109 = vmatpush1.bf16.msra.mxu0 0
        %4110 = vmatprep.subr.bf16.mxu0 0
        %4111 = vmatpush1.bf16.msra.mxu0 0
        %4112 = vmatprep.subr.bf16.mxu0 0
        %4113 = vmatpush1.bf16.msra.mxu0 0
        %4114 = vmatprep.subr.bf16.mxu0 0
        %4115 = vmatpush1.bf16.msra.mxu0 0
        %4116 = vmatprep.subr.bf16.mxu0 0
        %4117 = vmatpush1.bf16.msra.mxu0 0
        %4118 = vmatprep.subr.bf16.mxu0 0
        %4119 = vmatpush1.bf16.msra.mxu0 0
        %4120 = vmatprep.subr.bf16.mxu0 0
        %4121 = vmatpush1.bf16.msra.mxu0 0
        %4122 = vmatprep.mubr.bf16.mxu0 0
        %4123 = vmatmul.mubr.bf16.gmra.mrb[0].mxu0 %v4040
        %v4124 = vpop.f32.mrb[0].mxu0
        %v4125 = vadd.f32 0.0, %v4124
        %v4126 = vpop.f32.mrb[0].mxu0
        %v4127 = vpop.f32.mrb[0].mxu0
        %v4128 = vpop.f32.mrb[0].mxu0
        %4129 = vdwg.mxu0
        %v4130 = vadd.f32 %v4021, %v4125
        %s4131 = scalar_lea.vmem %s5, 256
        %v4132 = vld [vmem:[%s4131] sm:$0xf]
        %v4133 = vld [vmem:[%s4131 + $0x4] sm:$0xf]
        %v4134 = vld [vmem:[%s4131 + $0x8] sm:$0xf]
        %v4135 = vld [vmem:[%s4131 + $0xc] sm:$0xf]
        %v4136 = vld [vmem:[%s4131 + $0x10] sm:$0xf]
        %v4137 = vld [vmem:[%s4131 + $0x14] sm:$0xf]
        %v4138 = vld [vmem:[%s4131 + $0x18] sm:$0xf]
        %v4139 = vld [vmem:[%s4131 + $0x1c] sm:$0xf]
        %v4140 = vld [vmem:[%s4131 + $0x20] sm:$0xf]
        %v4141 = vld [vmem:[%s4131 + $0x24] sm:$0xf]
        %v4142 = vld [vmem:[%s4131 + $0x28] sm:$0xf]
        %v4143 = vld [vmem:[%s4131 + $0x2c] sm:$0xf]
        %v4144 = vld [vmem:[%s4131 + $0x30] sm:$0xf]
        %v4145 = vld [vmem:[%s4131 + $0x34] sm:$0xf]
        %v4146 = vld [vmem:[%s4131 + $0x38] sm:$0xf]
        %v4147 = vld [vmem:[%s4131 + $0x3c] sm:$0xf]
        %v4164 = vunpack.c.l.b16 %v4132
        %v4165 = vunpack.c.l.b16 %v4133
        %v4166 = vunpack.c.l.b16 %v4134
        %v4167 = vunpack.c.l.b16 %v4135
        %v4168 = vunpack.c.l.b16 %v4136
        %v4169 = vunpack.c.l.b16 %v4137
        %v4170 = vunpack.c.l.b16 %v4138
        %v4171 = vunpack.c.l.b16 %v4139
        %v4172 = vunpack.c.l.b16 %v4140
        %v4173 = vunpack.c.l.b16 %v4141
        %v4174 = vunpack.c.l.b16 %v4142
        %v4175 = vunpack.c.l.b16 %v4143
        %v4176 = vunpack.c.l.b16 %v4144
        %v4177 = vunpack.c.l.b16 %v4145
        %v4178 = vunpack.c.l.b16 %v4146
        %v4179 = vunpack.c.l.b16 %v4147
        %v4180 = vpack.c.b16 %v4165, %v4164
        %v4181 = vpack.c.b16 %v4167, %v4166
        %v4182 = vpack.c.b16 %v4169, %v4168
        %v4183 = vpack.c.b16 %v4171, %v4170
        %v4184 = vpack.c.b16 %v4173, %v4172
        %v4185 = vpack.c.b16 %v4175, %v4174
        %v4186 = vpack.c.b16 %v4177, %v4176
        %v4187 = vpack.c.b16 %v4179, %v4178
        %4196 = vmatprep.subr.bf16.mxu0 0
        %4197 = vmatpush1.bf16.msra.mxu0 %v4180
        %4198 = vmatprep.subr.bf16.mxu0 0
        %4199 = vmatpush1.bf16.msra.mxu0 %v4181
        %4200 = vmatprep.subr.bf16.mxu0 0
        %4201 = vmatpush1.bf16.msra.mxu0 %v4182
        %4202 = vmatprep.subr.bf16.mxu0 0
        %4203 = vmatpush1.bf16.msra.mxu0 %v4183
        %4204 = vmatprep.subr.bf16.mxu0 0
        %4205 = vmatpush1.bf16.msra.mxu0 %v4184
        %4206 = vmatprep.subr.bf16.mxu0 0
        %4207 = vmatpush1.bf16.msra.mxu0 %v4185
        %4208 = vmatprep.subr.bf16.mxu0 0
        %4209 = vmatpush1.bf16.msra.mxu0 %v4186
        %4210 = vmatprep.subr.bf16.mxu0 0
        %4211 = vmatpush1.bf16.msra.mxu0 %v4187
        %4212 = vmatprep.subr.bf16.mxu0 0
        %4213 = vmatpush1.bf16.msra.mxu0 0
        %4214 = vmatprep.subr.bf16.mxu0 0
        %4215 = vmatpush1.bf16.msra.mxu0 0
        %4216 = vmatprep.subr.bf16.mxu0 0
        %4217 = vmatpush1.bf16.msra.mxu0 0
        %4218 = vmatprep.subr.bf16.mxu0 0
        %4219 = vmatpush1.bf16.msra.mxu0 0
        %4220 = vmatprep.subr.bf16.mxu0 0
        %4221 = vmatpush1.bf16.msra.mxu0 0
        %4222 = vmatprep.subr.bf16.mxu0 0
        %4223 = vmatpush1.bf16.msra.mxu0 0
        %4224 = vmatprep.subr.bf16.mxu0 0
        %4225 = vmatpush1.bf16.msra.mxu0 0
        %4226 = vmatprep.subr.bf16.mxu0 0
        %4227 = vmatpush1.bf16.msra.mxu0 0
        %4228 = vmatprep.mubr.bf16.mxu0 0
        %4229 = vmatmul.mubr.bf16.gmra.mrb[0].mxu0 %v3694
        %v4230 = vpop.f32.mrb[0].mxu0
        %v4231 = vadd.f32 0.0, %v4230
        %v4232 = vpop.f32.mrb[0].mxu0
        %v4233 = vpop.f32.mrb[0].mxu0
        %v4234 = vpop.f32.mrb[0].mxu0
        %4235 = vdwg.mxu0
        %v4236 = vadd.f32 %v4130, %v4231
        %v4237 = vmax.f32 %v4236, 0.0
        %v4238 = vpack.c.bf16 %v4237, %v4237
        %v4239 = vld [vmem:[%s7] sm:$0xf]
        %v4240 = vld [vmem:[%s7 + $0x4] sm:$0xf]
        %v4241 = vld [vmem:[%s7 + $0x8] sm:$0xf]
        %v4242 = vld [vmem:[%s7 + $0xc] sm:$0xf]
        %v4243 = vld [vmem:[%s7 + $0x10] sm:$0xf]
        %v4244 = vld [vmem:[%s7 + $0x14] sm:$0xf]
        %v4245 = vld [vmem:[%s7 + $0x18] sm:$0xf]
        %v4246 = vld [vmem:[%s7 + $0x1c] sm:$0xf]
        %v4247 = vld [vmem:[%s7 + $0x20] sm:$0xf]
        %v4248 = vld [vmem:[%s7 + $0x24] sm:$0xf]
        %v4249 = vld [vmem:[%s7 + $0x28] sm:$0xf]
        %v4250 = vld [vmem:[%s7 + $0x2c] sm:$0xf]
        %v4251 = vld [vmem:[%s7 + $0x30] sm:$0xf]
        %v4252 = vld [vmem:[%s7 + $0x34] sm:$0xf]
        %v4253 = vld [vmem:[%s7 + $0x38] sm:$0xf]
        %v4254 = vld [vmem:[%s7 + $0x3c] sm:$0xf]
        %v4255 = vld [vmem:[%s8] sm:$0x1]
        %v4257 = vlaneseq
        %v4258 = vshrl.u32 %v4257, 7
        %v4259 = vsub.s32 0, %v4258
        %v4260 = vrot.slane %v4255, %v4259
        %v4278 = vunpack.c.l.b16 %v4239
        %v4279 = vunpack.c.l.b16 %v4240
        %v4280 = vunpack.c.l.b16 %v4241
        %v4281 = vunpack.c.l.b16 %v4242
        %v4282 = vunpack.c.l.b16 %v4243
        %v4283 = vunpack.c.l.b16 %v4244
        %v4284 = vunpack.c.l.b16 %v4245
        %v4285 = vunpack.c.l.b16 %v4246
        %v4286 = vunpack.c.l.b16 %v4247
        %v4287 = vunpack.c.l.b16 %v4248
        %v4288 = vunpack.c.l.b16 %v4249
        %v4289 = vunpack.c.l.b16 %v4250
        %v4290 = vunpack.c.l.b16 %v4251
        %v4291 = vunpack.c.l.b16 %v4252
        %v4292 = vunpack.c.l.b16 %v4253
        %v4293 = vunpack.c.l.b16 %v4254
        %v4294 = vpack.c.b16 %v4279, %v4278
        %v4295 = vpack.c.b16 %v4281, %v4280
        %v4296 = vpack.c.b16 %v4283, %v4282
        %v4297 = vpack.c.b16 %v4285, %v4284
        %v4298 = vpack.c.b16 %v4287, %v4286
        %v4299 = vpack.c.b16 %v4289, %v4288
        %v4300 = vpack.c.b16 %v4291, %v4290
        %v4301 = vpack.c.b16 %v4293, %v4292
        %4310 = vmatprep.subr.bf16.mxu0 0
        %4311 = vmatpush1.bf16.msra.mxu0 %v4294
        %4312 = vmatprep.subr.bf16.mxu0 0
        %4313 = vmatpush1.bf16.msra.mxu0 %v4295
        %4314 = vmatprep.subr.bf16.mxu0 0
        %4315 = vmatpush1.bf16.msra.mxu0 %v4296
        %4316 = vmatprep.subr.bf16.mxu0 0
        %4317 = vmatpush1.bf16.msra.mxu0 %v4297
        %4318 = vmatprep.subr.bf16.mxu0 0
        %4319 = vmatpush1.bf16.msra.mxu0 %v4298
        %4320 = vmatprep.subr.bf16.mxu0 0
        %4321 = vmatpush1.bf16.msra.mxu0 %v4299
        %4322 = vmatprep.subr.bf16.mxu0 0
        %4323 = vmatpush1.bf16.msra.mxu0 %v4300
        %4324 = vmatprep.subr.bf16.mxu0 0
        %4325 = vmatpush1.bf16.msra.mxu0 %v4301
        %4326 = vmatprep.subr.bf16.mxu0 0
        %4327 = vmatpush1.bf16.msra.mxu0 0
        %4328 = vmatprep.subr.bf16.mxu0 0
        %4329 = vmatpush1.bf16.msra.mxu0 0
        %4330 = vmatprep.subr.bf16.mxu0 0
        %4331 = vmatpush1.bf16.msra.mxu0 0
        %4332 = vmatprep.subr.bf16.mxu0 0
        %4333 = vmatpush1.bf16.msra.mxu0 0
        %4334 = vmatprep.subr.bf16.mxu0 0
        %4335 = vmatpush1.bf16.msra.mxu0 0
        %4336 = vmatprep.subr.bf16.mxu0 0
        %4337 = vmatpush1.bf16.msra.mxu0 0
        %4338 = vmatprep.subr.bf16.mxu0 0
        %4339 = vmatpush1.bf16.msra.mxu0 0
        %4340 = vmatprep.subr.bf16.mxu0 0
        %4341 = vmatpush1.bf16.msra.mxu0 0
        %4342 = vmatprep.mubr.bf16.mxu0 0
        %4343 = vmatmul.mubr.bf16.gmra.mrb[0].mxu0 %v4238
        %v4344 = vpop.f32.mrb[0].mxu0
        %v4345 = vadd.f32 %v4260, %v4344
        %v4346 = vpop.f32.mrb[0].mxu0
        %v4347 = vpop.f32.mrb[0].mxu0
        %v4348 = vpop.f32.mrb[0].mxu0
        %4349 = vdwg.mxu0
        %v4350 = vmax.f32 %v4345, 0.0
        %v4351 = vpack.c.bf16 %v4350, %v4350
        %v4352 = vld [vmem:[%s9] sm:$0xf]
        %v4353 = vld [vmem:[%s9 + $0x4] sm:$0xf]
        %v4354 = vld [vmem:[%s9 + $0x8] sm:$0xf]
        %v4355 = vld [vmem:[%s9 + $0xc] sm:$0xf]
        %v4356 = vld [vmem:[%s9 + $0x10] sm:$0xf]
        %v4357 = vld [vmem:[%s9 + $0x14] sm:$0xf]
        %v4358 = vld [vmem:[%s9 + $0x18] sm:$0xf]
        %v4359 = vld [vmem:[%s9 + $0x1c] sm:$0xf]
        %v4360 = vld [vmem:[%s9 + $0x20] sm:$0xf]
        %v4361 = vld [vmem:[%s9 + $0x24] sm:$0xf]
        %v4362 = vld [vmem:[%s9 + $0x28] sm:$0xf]
        %v4363 = vld [vmem:[%s9 + $0x2c] sm:$0xf]
        %v4364 = vld [vmem:[%s9 + $0x30] sm:$0xf]
        %v4365 = vld [vmem:[%s9 + $0x34] sm:$0xf]
        %v4366 = vld [vmem:[%s9 + $0x38] sm:$0xf]
        %v4367 = vld [vmem:[%s9 + $0x3c] sm:$0xf]
        %v4368 = vld [vmem:[%s10] sm:$0x1]
        %v4370 = vlaneseq
        %v4371 = vshrl.u32 %v4370, 7
        %v4372 = vsub.s32 0, %v4371
        %v4373 = vrot.slane %v4368, %v4372
        %v4391 = vunpack.c.l.b16 %v4352
        %v4392 = vunpack.c.l.b16 %v4353
        %v4393 = vunpack.c.l.b16 %v4354
        %v4394 = vunpack.c.l.b16 %v4355
        %v4395 = vunpack.c.l.b16 %v4356
        %v4396 = vunpack.c.l.b16 %v4357
        %v4397 = vunpack.c.l.b16 %v4358
        %v4398 = vunpack.c.l.b16 %v4359
        %v4399 = vunpack.c.l.b16 %v4360
        %v4400 = vunpack.c.l.b16 %v4361
        %v4401 = vunpack.c.l.b16 %v4362
        %v4402 = vunpack.c.l.b16 %v4363
        %v4403 = vunpack.c.l.b16 %v4364
        %v4404 = vunpack.c.l.b16 %v4365
        %v4405 = vunpack.c.l.b16 %v4366
        %v4406 = vunpack.c.l.b16 %v4367
        %v4407 = vpack.c.b16 %v4392, %v4391
        %v4408 = vpack.c.b16 %v4394, %v4393
        %v4409 = vpack.c.b16 %v4396, %v4395
        %v4410 = vpack.c.b16 %v4398, %v4397
        %v4411 = vpack.c.b16 %v4400, %v4399
        %v4412 = vpack.c.b16 %v4402, %v4401
        %v4413 = vpack.c.b16 %v4404, %v4403
        %v4414 = vpack.c.b16 %v4406, %v4405
        %4423 = vmatprep.subr.bf16.mxu0 0
        %4424 = vmatpush1.bf16.msra.mxu0 %v4407
        %4425 = vmatprep.subr.bf16.mxu0 0
        %4426 = vmatpush1.bf16.msra.mxu0 %v4408
        %4427 = vmatprep.subr.bf16.mxu0 0
        %4428 = vmatpush1.bf16.msra.mxu0 %v4409
        %4429 = vmatprep.subr.bf16.mxu0 0
        %4430 = vmatpush1.bf16.msra.mxu0 %v4410
        %4431 = vmatprep.subr.bf16.mxu0 0
        %4432 = vmatpush1.bf16.msra.mxu0 %v4411
        %4433 = vmatprep.subr.bf16.mxu0 0
        %4434 = vmatpush1.bf16.msra.mxu0 %v4412
        %4435 = vmatprep.subr.bf16.mxu0 0
        %4436 = vmatpush1.bf16.msra.mxu0 %v4413
        %4437 = vmatprep.subr.bf16.mxu0 0
        %4438 = vmatpush1.bf16.msra.mxu0 %v4414
        %4439 = vmatprep.subr.bf16.mxu0 0
        %4440 = vmatpush1.bf16.msra.mxu0 0
        %4441 = vmatprep.subr.bf16.mxu0 0
        %4442 = vmatpush1.bf16.msra.mxu0 0
        %4443 = vmatprep.subr.bf16.mxu0 0
        %4444 = vmatpush1.bf16.msra.mxu0 0
        %4445 = vmatprep.subr.bf16.mxu0 0
        %4446 = vmatpush1.bf16.msra.mxu0 0
        %4447 = vmatprep.subr.bf16.mxu0 0
        %4448 = vmatpush1.bf16.msra.mxu0 0
        %4449 = vmatprep.subr.bf16.mxu0 0
        %4450 = vmatpush1.bf16.msra.mxu0 0
        %4451 = vmatprep.subr.bf16.mxu0 0
        %4452 = vmatpush1.bf16.msra.mxu0 0
        %4453 = vmatprep.subr.bf16.mxu0 0
        %4454 = vmatpush1.bf16.msra.mxu0 0
        %4455 = vmatprep.mubr.bf16.mxu0 0
        %4456 = vmatmul.mubr.bf16.gmra.mrb[0].mxu0 %v4351
        %v4457 = vpop.f32.mrb[0].mxu0
        %v4458 = vadd.f32 %v4373, %v4457
        %v4459 = vpop.f32.mrb[0].mxu0
        %v4460 = vpop.f32.mrb[0].mxu0
        %v4461 = vpop.f32.mrb[0].mxu0
        %4462 = vdwg.mxu0
        %4463 = vst [vmem:[%s379] sm:$0xff] %v4458
        %s4464 = sand.u32 %s269, 1
        %s4465 = scalar_lea.sflag [#allocation3], %s4464
        %s4466 = sand.u32 %s269, 1
        %s4467 = smul.addr %s4466, 8
        %s4468 = scalar_lea.vmem [#allocation2], %s4467
        // Predicated region
        $region65: #{lenet_forward.1} parent=63 // pred_check
          %p4469 = pneg %p279
        $region66: #{lenet_forward.1} parent=63 // pred_check_branch
          %4471 = sbr.rel (%p4469) target = $region68
        $region67: #{lenet_forward.1} parent=63 // pred_region
          %s4473 = ssub.s32 128, 128
          %4474 = vsyncadd %s4465, %s4473
          %s4475 = smul.addr %s25, 128
          %s4476 = scalar_lea.hbm %s11, %s4475
          %s4478 = sshll.u32 %s4468, 4
          %s4479 = int_to_ptr.vmem [resolvable:$true] %s4478
          %4481 = dma.vmem_to_hbm [thread:$0]  %s4479, 128, %s4476, %s4465
        $region68: #{lenet_forward.1} parent=63 // pred_fallthru
          _
      $region64: #{lenet_forward.1} parent=5 // pred_fallthru
        _
      %p4482 = scmp.le.s32.totalorder 2, %s20
      // Predicated region
      $region69: #{lenet_forward.1} parent=5 // pred_check
        %p4483 = pneg %p4482
      $region70: #{lenet_forward.1} parent=5 // pred_check_branch
        %4485 = sbr.rel (%p4483) target = $region72
      $region71: #{lenet_forward.1} parent=5 // pred_region
        %s4486 = ssub.s32 %s20, 2
        // Predicated region
        $region73: #{lenet_forward.1} parent=71 // pred_check
          %p4487 = pneg %p285
        $region74: #{lenet_forward.1} parent=71 // pred_check_branch
          %4489 = sbr.rel (%p4487) target = $region76
        $region75: #{lenet_forward.1} parent=71 // pred_region
          %s4490 = sand.u32 %s270, 1
          %s4491 = scalar_lea.sflag [#allocation3], %s4490
          %s4492 = sand.u32 %s270, 1
          %s4493 = smul.addr %s4492, 8
          %s4494 = scalar_lea.vmem [#allocation2], %s4493
          %4495 = dma.done %s4491, 128
        $region76: #{lenet_forward.1} parent=71 // pred_fallthru
          _
      $region72: #{lenet_forward.1} parent=5 // pred_fallthru
        _
    $region6: #{lenet_forward.1} parent=1 // loop_footer
      %s24 = sadd.s32 1, %s20
    $region7: #{lenet_forward.1} parent=1 // loop_footer_branch
      %19 = sbr.rel target = $region3
    $region8: #{lenet_forward.1} parent=1 // loop_exit
      _
    %4496 = vsyncpa [#allocation3], 1
    %s4497 = scalar_lea.sflag [#allocation3], 1
    %4498 = vsyncpa %s4497, 1

</llo_original>
